<compile_context>
chip_gen: v6e
topology: v6e:2x2x1
jax: 0.10.0
libtpu: 0.0.40
codegen_flags: <defaults>
</compile_context>

<pallas_src>
import functools

import jax
import jax.numpy as jnp
from jax import lax
from jax.experimental import pallas as pl
from jax.experimental.pallas import tpu as pltpu

NEG = -1e30

# ----------------------------- config (synthetic) -----------------------------
NUMBER_FEATURES = 8     # config.number_features
EMBEDING_SIZE   = 16    # config.embeding_size
NUM_HEADS       = 2     # config.num_heads
TOP_K_RATIO     = 0.5   # config.top_k_ratio
FC_SIZE         = 32    # config.fc_size
# TODO(synk): nn.Dropout(0.5) / GATConv attention dropout are no-ops here
#             (eval semantics); training-mode dropout is not implemented.


def _bf16_dot(a, b):
    """MXU matmul: bf16 operands, f32 accumulation."""
    return jnp.dot(a.astype(jnp.bfloat16), b.astype(jnp.bfloat16),
                   preferred_element_type=jnp.float32)


# ------------------------------- fused kernel ---------------------------------
def _gnn_kernel(ratio, heads, hidden, x_ref, adj_ref, onehot_ref, *rest):
    """block1 -> block2 -> block3 -> sum(x1) -> fc MLP, all VMEM resident.

    `rest` layout: 3 blocks x 3 params, then 6 fc params, then the out ref.
    Per-block params (folded host-side):
      w_cat  [Cin, H*F + 2H]  = [per-head (W_gat_h @ W_lin_h) | a_src fold | a_dst fold]
      b_eff  [1, F]           = b_gat @ W_lin + b_lin
      p_unit [1, F]           = p_pool / ||p_pool||
    """
    nblk = 3
    blocks = [rest[i * 3:(i + 1) * 3] for i in range(nblk)]
    w1_ref, b1_ref, w2_ref, b2_ref, w3_ref, b3_ref = rest[nblk * 3:nblk * 3 + 6]
    out_ref = rest[nblk * 3 + 6]

    H, F = heads, hidden
    x = x_ref[...]                       # [N, Cin]
    A = adj_ref[...]                     # [N, N]   A[i, j] = edge j -> i
    onehot = onehot_ref[...]             # [N, G]
    N = x.shape[0]
    G = onehot.shape[1]

    # ---- graph-invariant precompute (hoisted out of the per-block work) ----
    idx_i = lax.broadcasted_iota(jnp.int32, (N, N), 0)
    idx_j = lax.broadcasted_iota(jnp.int32, (N, N), 1)
    eye = idx_i == idx_j
    tie = idx_j < idx_i                  # index tie-break for TopK ranking
    onehot_t = onehot.T                                                       # [G, N]
    same_graph = jnp.dot(onehot, onehot_t, preferred_element_type=jnp.float32)  # [N,N]

    mask = jnp.ones((N, 1), jnp.float32)           # all nodes alive initially
    x1_sum = jnp.zeros((G, 2 * F), jnp.float32)    # sum of the 3 pooled vectors

    for (w_cat_ref, b_eff_ref, p_unit_ref) in blocks:
        # ------------- GATConv + Linear (folded), heads vectorized -------------
        adj_self = jnp.logical_or(A > 0, eye)                   # [N,N] bool
        feat = _bf16_dot(x, w_cat_ref[...])                     # [N, H*F + 2H]
        xV = feat[:, :H * F]                                    # x @ (W_gat_h @ W_lin_h)
        alpha_src = feat[:, H * F:H * F + H]                    # [N, H]
        alpha_dst = feat[:, H * F + H:H * F + 2 * H]            # [N, H]

        # e[h, i, j] = a_dst . (W x_i)_h + a_src . (W x_j)_h
        e = alpha_dst.T[:, :, None] + alpha_src.T[:, None, :]   # [H, N, N]
        e = jnp.where(e > 0, e, 0.2 * e)                        # LeakyReLU(0.2)
        e = jnp.where(adj_self[None, :, :], e, NEG)
        e = e - jnp.max(e, axis=-1, keepdims=True)
        p = jnp.exp(e)                                          # masked -> exp(~-1e30) == 0
        attn = p * pl.reciprocal(jnp.sum(p, axis=-1, keepdims=True), approx=True)

        # xl = sum_h attn_h @ (x @ W'_h) + b_eff   (GAT heads + Linear in one pass)
        xl = b_eff_ref[...]                                     # [1, F] -> broadcast
        for h in range(H):
            xl = xl + _bf16_dot(attn[h], xV[:, h * F:(h + 1) * F])   # [N, F]

        # ------------------------------ TopKPooling ----------------------------
        score = jnp.sum(xl * p_unit_ref[...], axis=1, keepdims=True)           # [N, 1]

        counts = jnp.dot(onehot_t, mask, preferred_element_type=jnp.float32)   # [G,1]
        k_g = jnp.ceil(ratio * counts)                                          # [G,1]
        k_per_node = jnp.dot(onehot, k_g, preferred_element_type=jnp.float32)   # [N,1]

        # rank of each node inside its graph (descending score, index tie-break)
        greater = jnp.logical_or(score.T > score,
                                 jnp.logical_and(score.T == score, tie))
        rank = jnp.sum(same_graph * mask.T * greater.astype(jnp.float32),
                       axis=1, keepdims=True)                               # [N,1]
        keep = mask * (rank < k_per_node).astype(jnp.float32)               # [N,1]

        x_pool = xl * jnp.tanh(score) * keep                                # [N, F]
        A = A * keep * keep.T                                 # drop edges of removed nodes

        # ----------------- global_mean_pool / global_max_pool ------------------
        cnt_new = jnp.dot(onehot_t, keep, preferred_element_type=jnp.float32)      # [G,1]
        sum_pool = jnp.dot(onehot_t, x_pool, preferred_element_type=jnp.float32)   # [G,F]
        mean_pool = sum_pool * pl.reciprocal(jnp.maximum(cnt_new, 1.0), approx=True)

        sel = (keep * onehot).T                                             # [G, N]
        xg = jnp.where(sel[:, None, :] > 0, x_pool.T[None, :, :], NEG)      # [G, F, N]
        max_pool = jnp.max(xg, axis=-1)                                     # [G, F]
        max_pool = jnp.where(cnt_new > 0, max_pool, 0.0)

        x1_sum = x1_sum + jnp.concatenate([mean_pool, max_pool], axis=-1)   # [G, 2F]

        x = x_pool
        mask = keep

    # --------------------------------- fc MLP ----------------------------------
    h1 = jnp.maximum(_bf16_dot(x1_sum, w1_ref[...]) + b1_ref[...], 0.0)
    h2 = jnp.maximum(_bf16_dot(h1, w2_ref[...]) + b2_ref[...], 0.0)
    out_ref[...] = _bf16_dot(h2, w3_ref[...]) + b3_ref[...]                 # [G, 1]


# ------------------------------- JAX wrappers ---------------------------------
_VMEM = pl.BlockSpec(memory_space=pltpu.MemorySpace.VMEM)


def _fold_block_params(bp, heads, hidden):
    """Host-side algebraic folds so each block needs a single input matmul.

    - a_src / a_dst folded into [Cin, H] attention-logit weights.
    - the nn.Linear folded into the per-head value weights:
        W'_h = W_gat_h @ W_lin_h,  b_eff = b_gat @ W_lin + b_lin.
    - TopK projection pre-normalized: p_unit = p / ||p||.
    """
    cin = bp["w_gat"].shape[0]
    H, F = heads, hidden
    w3 = bp["w_gat"].reshape(cin, H, F)                          # [Cin, H, F]
    wa_src = jnp.einsum("chf,hf->ch", w3, bp["a_src"])           # [Cin, H]
    wa_dst = jnp.einsum("chf,hf->ch", w3, bp["a_dst"])           # [Cin, H]
    wl3 = bp["w_lin"].reshape(H, F, F)                           # [H, F, F]
    w_val = jnp.einsum("chf,hfg->chg", w3, wl3).reshape(cin, H * F)
    b_eff = bp["b_gat"] @ bp["w_lin"] + bp["b_lin"]              # [1, F]
    p = bp["p_pool"]
    p_unit = p * lax.rsqrt(jnp.sum(p * p))                       # [1, F]
    w_cat = jnp.concatenate([w_val, wa_src, wa_dst], axis=1)     # [Cin, H*F + 2H]
    return (w_cat, b_eff, p_unit)


@functools.partial(jax.jit,
                   static_argnames=("num_graphs", "heads", "hidden", "ratio"))
def gnn_forward(x, edge_index, edge_attr, batch_index, params,
                *, num_graphs, heads, hidden, ratio):
    del edge_attr  # edge attributes are carried but never used (GATConv ignores them)
    N = x.shape[0]
    A = jnp.zeros((N, N), jnp.float32).at[edge_index[1], edge_index[0]].set(1.0)
    onehot = jax.nn.one_hot(batch_index, num_graphs, dtype=jnp.float32)

    block_args = []
    for name in ("block1", "block2", "block3"):
        block_args.extend(_fold_block_params(params[name], heads, hidden))
    # block4 exists in __init__ but is never used in forward -> not executed.
    fc = params["fc"]
    fc_args = (fc["w1"], fc["b1"], fc["w2"], fc["b2"], fc["w3"], fc["b3"])

    n_in = 3 + len(block_args) + len(fc_args)
    kernel = functools.partial(_gnn_kernel, ratio, heads, hidden)
    out = pl.pallas_call(
        kernel,
        out_shape=jax.ShapeDtypeStruct((num_graphs, 1), jnp.float32),
        in_specs=[_VMEM] * n_in,
        out_specs=_VMEM,
    )(x, A, onehot, *block_args, *fc_args)
    return jnp.squeeze(out, axis=-1)                                         # [G]


# ------------------------------ parameter init ---------------------------------
def init_block_params(key, cin, hidden, heads):
    ks = jax.random.split(key, 6)
    s = 0.2
    hf = heads * hidden
    return dict(
        w_gat=(s * jax.random.normal(ks[0], (cin, hf))).astype(jnp.float32),
        a_src=(s * jax.random.normal(ks[1], (heads, hidden))).astype(jnp.float32),
        a_dst=(s * jax.random.normal(ks[2], (heads, hidden))).astype(jnp.float32),
        b_gat=jnp.zeros((1, hf), jnp.float32),
        w_lin=(s * jax.random.normal(ks[3], (hf, hidden))).astype(jnp.float32),
        b_lin=(s * jax.random.normal(ks[4], (1, hidden))).astype(jnp.float32),
        p_pool=(s * jax.random.normal(ks[5], (1, hidden))).astype(jnp.float32),
    )


def init_fc_params(key, hidden, fc_size):
    ks = jax.random.split(key, 6)
    s = 0.2
    return dict(
        w1=(s * jax.random.normal(ks[0], (2 * hidden, fc_size))).astype(jnp.float32),
        b1=(s * jax.random.normal(ks[1], (1, fc_size))).astype(jnp.float32),
        w2=(s * jax.random.normal(ks[2], (fc_size, fc_size // 2))).astype(jnp.float32),
        b2=(s * jax.random.normal(ks[3], (1, fc_size // 2))).astype(jnp.float32),
        w3=(s * jax.random.normal(ks[4], (fc_size // 2, 1))).astype(jnp.float32),
        b3=(s * jax.random.normal(ks[5], (1, 1))).astype(jnp.float32),
    )


# ------------------------------------ main --------------------------------------
if __name__ == "__main__":
    key = jax.random.PRNGKey(0)
    k_x, k_e, k_b1, k_b2, k_b3, k_fc = jax.random.split(key, 6)

    N, G = 16, 2                       # 16 nodes, 2 graphs of 8 nodes each
    x = jax.random.normal(k_x, (N, NUMBER_FEATURES), dtype=jnp.float32)

    # deterministic bidirectional ring within each graph (no self loops, no duplicates)
    edges = []
    for off in (0, 8):
        for i in range(8):
            j = (i + 1) % 8
            edges.append((off + i, off + j))
            edges.append((off + j, off + i))
    edge_index = jnp.array(edges, dtype=jnp.int32).T          # [2, 32] (row0=src, row1=dst)
    edge_attr = jax.random.normal(k_e, (edge_index.shape[1], 1), dtype=jnp.float32)  # unused
    batch_index = jnp.array([0] * 8 + [1] * 8, dtype=jnp.int32)

    params = dict(
        block1=init_block_params(k_b1, NUMBER_FEATURES, EMBEDING_SIZE, NUM_HEADS),
        block2=init_block_params(k_b2, EMBEDING_SIZE, EMBEDING_SIZE, NUM_HEADS),
        block3=init_block_params(k_b3, EMBEDING_SIZE, EMBEDING_SIZE, NUM_HEADS),
        fc=init_fc_params(k_fc, EMBEDING_SIZE, FC_SIZE),
    )

    out = gnn_forward(x, edge_index, edge_attr, batch_index, params,
                      num_graphs=G, heads=NUM_HEADS, hidden=EMBEDING_SIZE,
                      ratio=TOP_K_RATIO)
    out = jax.block_until_ready(out)
    assert out.shape == (G,)
    print("KERNEL_OK")
</pallas_src>

<mosaic_0001>
module attributes {stable_mosaic.version = 11 : i64} {
  func.func @_gnn_kernel(%arg0: memref<16x8xf32, #tpu.memory_space<vmem>>, %arg1: memref<16x16xf32, #tpu.memory_space<vmem>>, %arg2: memref<16x2xf32, #tpu.memory_space<vmem>>, %arg3: memref<8x36xf32, #tpu.memory_space<vmem>>, %arg4: memref<1x16xf32, #tpu.memory_space<vmem>>, %arg5: memref<1x16xf32, #tpu.memory_space<vmem>>, %arg6: memref<16x36xf32, #tpu.memory_space<vmem>>, %arg7: memref<1x16xf32, #tpu.memory_space<vmem>>, %arg8: memref<1x16xf32, #tpu.memory_space<vmem>>, %arg9: memref<16x36xf32, #tpu.memory_space<vmem>>, %arg10: memref<1x16xf32, #tpu.memory_space<vmem>>, %arg11: memref<1x16xf32, #tpu.memory_space<vmem>>, %arg12: memref<32x32xf32, #tpu.memory_space<vmem>>, %arg13: memref<1x32xf32, #tpu.memory_space<vmem>>, %arg14: memref<32x16xf32, #tpu.memory_space<vmem>>, %arg15: memref<1x16xf32, #tpu.memory_space<vmem>>, %arg16: memref<16x1xf32, #tpu.memory_space<vmem>>, %arg17: memref<1x1xf32, #tpu.memory_space<vmem>>, %arg18: memref<2x1xf32, #tpu.memory_space<vmem>>) attributes {dimension_semantics = [], scalar_prefetch = 0 : i64, scratch_operands = 0 : i64, tpu.core_type = #tpu.core_type<tc>} {
    %c0 = arith.constant 0 : index
    %c0_0 = arith.constant 0 : index
    %0 = vector.load %arg0[%c0, %c0_0] : memref<16x8xf32, #tpu.memory_space<vmem>>, vector<16x8xf32>
    %c0_1 = arith.constant 0 : index
    %c0_2 = arith.constant 0 : index
    %1 = vector.load %arg1[%c0_1, %c0_2] : memref<16x16xf32, #tpu.memory_space<vmem>>, vector<16x16xf32>
    %c0_3 = arith.constant 0 : index
    %c0_4 = arith.constant 0 : index
    %2 = vector.load %arg2[%c0_3, %c0_4] : memref<16x2xf32, #tpu.memory_space<vmem>>, vector<16x2xf32>
    %3 = tpu.iota {dimensions = array<i32: 0>} : vector<16x16xi32>
    %4 = tpu.iota {dimensions = array<i32: 1>} : vector<16x16xi32>
    %5 = arith.cmpi eq, %3, %4 : vector<16x16xi32>
    %6 = arith.cmpi slt, %4, %3 : vector<16x16xi32>
    %7 = tpu.transpose %2, [1, 0] : vector<16x2xf32> -> vector<2x16xf32>
    %cst = arith.constant dense<0.000000e+00> : vector<16x16xf32>
    %8 = tpu.matmul %2, %7, %cst {dimension_numbers = #tpu.dot_dimension_numbers<[1], [0], [0], [1], [0, 0, 1, 1], [], []>} : vector<16x2xf32>, vector<2x16xf32>, vector<16x16xf32> -> vector<16x16xf32>
    %cst_5 = arith.constant 1.000000e+00 : f32
    %9 = vector.broadcast %cst_5 : f32 to vector<16x1xf32>
    %cst_6 = arith.constant 0.000000e+00 : f32
    %10 = vector.broadcast %cst_6 : f32 to vector<2x32xf32>
    %cst_7 = arith.constant 0.000000e+00 : f32
    %11 = vector.broadcast %cst_7 : f32 to vector<16x16xf32>
    %12 = arith.cmpf ogt, %1, %11 : vector<16x16xf32>
    %13 = arith.ori %12, %5 : vector<16x16xi1>
    %c0_8 = arith.constant 0 : index
    %c0_9 = arith.constant 0 : index
    %14 = vector.load %arg3[%c0_8, %c0_9] : memref<8x36xf32, #tpu.memory_space<vmem>>, vector<8x36xf32>
    %15 = arith.truncf %0 : vector<16x8xf32> to vector<16x8xbf16>
    %16 = arith.truncf %14 : vector<8x36xf32> to vector<8x36xbf16>
    %cst_10 = arith.constant dense<0.000000e+00> : vector<16x36xf32>
    %17 = tpu.matmul %15, %16, %cst_10 {dimension_numbers = #tpu.dot_dimension_numbers<[1], [0], [0], [1], [0, 0, 1, 1], [], []>} : vector<16x8xbf16>, vector<8x36xbf16>, vector<16x36xf32> -> vector<16x36xf32>
    %18 = vector.extract_strided_slice %17 {offsets = [0, 0], sizes = [16, 32], strides = [1, 1]} : vector<16x36xf32> to vector<16x32xf32>
    %19 = vector.extract_strided_slice %17 {offsets = [0, 32], sizes = [16, 2], strides = [1, 1]} : vector<16x36xf32> to vector<16x2xf32>
    %20 = vector.extract_strided_slice %17 {offsets = [0, 34], sizes = [16, 2], strides = [1, 1]} : vector<16x36xf32> to vector<16x2xf32>
    %21 = tpu.transpose %20, [1, 0] : vector<16x2xf32> -> vector<2x16xf32>
    %22 = vector.shape_cast %21 : vector<2x16xf32> to vector<2x16x1xf32>
    %23 = tpu.transpose %19, [1, 0] : vector<16x2xf32> -> vector<2x16xf32>
    %24 = vector.shape_cast %23 : vector<2x16xf32> to vector<2x1x16xf32>
    %25 = vector.broadcast %22 : vector<2x16x1xf32> to vector<2x16x16xf32>
    %26 = vector.broadcast %24 : vector<2x1x16xf32> to vector<2x16x16xf32>
    %27 = arith.addf %25, %26 : vector<2x16x16xf32>
    %cst_11 = arith.constant 0.000000e+00 : f32
    %28 = vector.broadcast %cst_11 : f32 to vector<2x16x16xf32>
    %29 = arith.cmpf ogt, %27, %28 : vector<2x16x16xf32>
    %cst_12 = arith.constant 2.000000e-01 : f32
    %30 = vector.broadcast %cst_12 : f32 to vector<2x16x16xf32>
    %31 = arith.mulf %30, %27 : vector<2x16x16xf32>
    %32 = arith.select %29, %27, %31 : vector<2x16x16xi1>, vector<2x16x16xf32>
    %33 = vector.shape_cast %13 : vector<16x16xi1> to vector<1x16x16xi1>
    %cst_13 = arith.constant -1.000000e+30 : f32
    %34 = vector.shape_cast %33 : vector<1x16x16xi1> to vector<1x16x16xi1>
    %35 = vector.broadcast %34 : vector<1x16x16xi1> to vector<2x16x16xi1>
    %36 = vector.broadcast %cst_13 : f32 to vector<2x16x16xf32>
    %37 = arith.select %35, %32, %36 : vector<2x16x16xi1>, vector<2x16x16xf32>
    %cst_14 = arith.constant dense<0xFF800000> : vector<2x16xf32>
    %38 = vector.multi_reduction <maximumf>, %37, %cst_14 [2] : vector<2x16x16xf32> to vector<2x16xf32>
    %39 = vector.shape_cast %38 : vector<2x16xf32> to vector<2x16x1xf32>
    %40 = vector.broadcast %39 : vector<2x16x1xf32> to vector<2x16x16xf32>
    %41 = arith.subf %37, %40 : vector<2x16x16xf32>
    %42 = math.exp %41 : vector<2x16x16xf32>
    %cst_15 = arith.constant dense<0.000000e+00> : vector<2x16xf32>
    %43 = vector.multi_reduction <add>, %42, %cst_15 [2] : vector<2x16x16xf32> to vector<2x16xf32>
    %44 = vector.shape_cast %43 : vector<2x16xf32> to vector<2x16x1xf32>
    %45 = tpu.reciprocal %44 {approx = true} : vector<2x16x1xf32> -> vector<2x16x1xf32>
    %46 = vector.broadcast %45 : vector<2x16x1xf32> to vector<2x16x16xf32>
    %47 = arith.mulf %42, %46 : vector<2x16x16xf32>
    %c0_16 = arith.constant 0 : index
    %c0_17 = arith.constant 0 : index
    %48 = vector.load %arg4[%c0_16, %c0_17] : memref<1x16xf32, #tpu.memory_space<vmem>>, vector<1x16xf32>
    %49 = vector.extract_strided_slice %47 {offsets = [0, 0, 0], sizes = [1, 16, 16], strides = [1, 1, 1]} : vector<2x16x16xf32> to vector<1x16x16xf32>
    %50 = vector.shape_cast %49 : vector<1x16x16xf32> to vector<16x16xf32>
    %51 = vector.extract_strided_slice %18 {offsets = [0, 0], sizes = [16, 16], strides = [1, 1]} : vector<16x32xf32> to vector<16x16xf32>
    %52 = arith.truncf %50 : vector<16x16xf32> to vector<16x16xbf16>
    %53 = arith.truncf %51 : vector<16x16xf32> to vector<16x16xbf16>
    %cst_18 = arith.constant dense<0.000000e+00> : vector<16x16xf32>
    %54 = tpu.matmul %52, %53, %cst_18 {dimension_numbers = #tpu.dot_dimension_numbers<[1], [0], [0], [1], [0, 0, 1, 1], [], []>} : vector<16x16xbf16>, vector<16x16xbf16>, vector<16x16xf32> -> vector<16x16xf32>
    %55 = vector.broadcast %48 : vector<1x16xf32> to vector<16x16xf32>
    %56 = arith.addf %55, %54 : vector<16x16xf32>
    %57 = vector.extract_strided_slice %47 {offsets = [1, 0, 0], sizes = [1, 16, 16], strides = [1, 1, 1]} : vector<2x16x16xf32> to vector<1x16x16xf32>
    %58 = vector.shape_cast %57 : vector<1x16x16xf32> to vector<16x16xf32>
    %59 = vector.extract_strided_slice %18 {offsets = [0, 16], sizes = [16, 16], strides = [1, 1]} : vector<16x32xf32> to vector<16x16xf32>
    %60 = arith.truncf %58 : vector<16x16xf32> to vector<16x16xbf16>
    %61 = arith.truncf %59 : vector<16x16xf32> to vector<16x16xbf16>
    %cst_19 = arith.constant dense<0.000000e+00> : vector<16x16xf32>
    %62 = tpu.matmul %60, %61, %cst_19 {dimension_numbers = #tpu.dot_dimension_numbers<[1], [0], [0], [1], [0, 0, 1, 1], [], []>} : vector<16x16xbf16>, vector<16x16xbf16>, vector<16x16xf32> -> vector<16x16xf32>
    %63 = arith.addf %56, %62 : vector<16x16xf32>
    %c0_20 = arith.constant 0 : index
    %c0_21 = arith.constant 0 : index
    %64 = vector.load %arg5[%c0_20, %c0_21] : memref<1x16xf32, #tpu.memory_space<vmem>>, vector<1x16xf32>
    %65 = vector.broadcast %64 : vector<1x16xf32> to vector<16x16xf32>
    %66 = arith.mulf %63, %65 : vector<16x16xf32>
    %cst_22 = arith.constant dense<0.000000e+00> : vector<16xf32>
    %67 = vector.multi_reduction <add>, %66, %cst_22 [1] : vector<16x16xf32> to vector<16xf32>
    %68 = vector.shape_cast %67 : vector<16xf32> to vector<16x1xf32>
    %cst_23 = arith.constant dense<0.000000e+00> : vector<2x1xf32>
    %69 = tpu.matmul %7, %9, %cst_23 {dimension_numbers = #tpu.dot_dimension_numbers<[1], [0], [0], [1], [0, 0, 1, 1], [], []>} : vector<2x16xf32>, vector<16x1xf32>, vector<2x1xf32> -> vector<2x1xf32>
    %cst_24 = arith.constant 5.000000e-01 : f32
    %70 = vector.broadcast %cst_24 : f32 to vector<2x1xf32>
    %71 = arith.mulf %70, %69 : vector<2x1xf32>
    %72 = math.ceil %71 : vector<2x1xf32>
    %cst_25 = arith.constant dense<0.000000e+00> : vector<16x1xf32>
    %73 = tpu.matmul %2, %72, %cst_25 {dimension_numbers = #tpu.dot_dimension_numbers<[1], [0], [0], [1], [0, 0, 1, 1], [], []>} : vector<16x2xf32>, vector<2x1xf32>, vector<16x1xf32> -> vector<16x1xf32>
    %74 = tpu.transpose %68, [1, 0] : vector<16x1xf32> -> vector<1x16xf32>
    %75 = vector.broadcast %74 : vector<1x16xf32> to vector<16x16xf32>
    %76 = vector.broadcast %68 : vector<16x1xf32> to vector<16x16xf32>
    %77 = arith.cmpf ogt, %75, %76 : vector<16x16xf32>
    %78 = tpu.transpose %68, [1, 0] : vector<16x1xf32> -> vector<1x16xf32>
    %79 = vector.broadcast %78 : vector<1x16xf32> to vector<16x16xf32>
    %80 = vector.broadcast %68 : vector<16x1xf32> to vector<16x16xf32>
    %81 = arith.cmpf oeq, %79, %80 : vector<16x16xf32>
    %82 = arith.andi %81, %6 : vector<16x16xi1>
    %83 = arith.ori %77, %82 : vector<16x16xi1>
    %84 = tpu.transpose %9, [1, 0] : vector<16x1xf32> -> vector<1x16xf32>
    %85 = vector.broadcast %84 : vector<1x16xf32> to vector<16x16xf32>
    %86 = arith.mulf %8, %85 : vector<16x16xf32>
    %87 = arith.extui %83 : vector<16x16xi1> to vector<16x16xi32>
    %88 = arith.sitofp %87 : vector<16x16xi32> to vector<16x16xf32>
    %89 = arith.mulf %86, %88 : vector<16x16xf32>
    %cst_26 = arith.constant dense<0.000000e+00> : vector<16xf32>
    %90 = vector.multi_reduction <add>, %89, %cst_26 [1] : vector<16x16xf32> to vector<16xf32>
    %91 = vector.shape_cast %90 : vector<16xf32> to vector<16x1xf32>
    %92 = arith.cmpf olt, %91, %73 : vector<16x1xf32>
    %93 = arith.extui %92 : vector<16x1xi1> to vector<16x1xi32>
    %94 = arith.sitofp %93 : vector<16x1xi32> to vector<16x1xf32>
    %95 = arith.mulf %9, %94 : vector<16x1xf32>
    %96 = math.tanh %68 : vector<16x1xf32>
    %97 = vector.broadcast %96 : vector<16x1xf32> to vector<16x16xf32>
    %98 = arith.mulf %63, %97 : vector<16x16xf32>
    %99 = vector.broadcast %95 : vector<16x1xf32> to vector<16x16xf32>
    %100 = arith.mulf %98, %99 : vector<16x16xf32>
    %101 = vector.broadcast %95 : vector<16x1xf32> to vector<16x16xf32>
    %102 = arith.mulf %1, %101 : vector<16x16xf32>
    %103 = tpu.transpose %95, [1, 0] : vector<16x1xf32> -> vector<1x16xf32>
    %104 = vector.broadcast %103 : vector<1x16xf32> to vector<16x16xf32>
    %105 = arith.mulf %102, %104 : vector<16x16xf32>
    %cst_27 = arith.constant dense<0.000000e+00> : vector<2x1xf32>
    %106 = tpu.matmul %7, %95, %cst_27 {dimension_numbers = #tpu.dot_dimension_numbers<[1], [0], [0], [1], [0, 0, 1, 1], [], []>} : vector<2x16xf32>, vector<16x1xf32>, vector<2x1xf32> -> vector<2x1xf32>
    %cst_28 = arith.constant dense<0.000000e+00> : vector<2x16xf32>
    %107 = tpu.matmul %7, %100, %cst_28 {dimension_numbers = #tpu.dot_dimension_numbers<[1], [0], [0], [1], [0, 0, 1, 1], [], []>} : vector<2x16xf32>, vector<16x16xf32>, vector<2x16xf32> -> vector<2x16xf32>
    %cst_29 = arith.constant 1.000000e+00 : f32
    %108 = vector.broadcast %cst_29 : f32 to vector<2x1xf32>
    %109 = arith.maximumf %106, %108 : vector<2x1xf32>
    %110 = tpu.reciprocal %109 {approx = true} : vector<2x1xf32> -> vector<2x1xf32>
    %111 = vector.broadcast %110 : vector<2x1xf32> to vector<2x16xf32>
    %112 = arith.mulf %107, %111 : vector<2x16xf32>
    %113 = vector.broadcast %95 : vector<16x1xf32> to vector<16x2xf32>
    %114 = arith.mulf %113, %2 : vector<16x2xf32>
    %115 = tpu.transpose %114, [1, 0] : vector<16x2xf32> -> vector<2x16xf32>
    %116 = vector.shape_cast %115 : vector<2x16xf32> to vector<2x1x16xf32>
    %cst_30 = arith.constant 0.000000e+00 : f32
    %117 = vector.broadcast %cst_30 : f32 to vector<2x1x16xf32>
    %118 = arith.cmpf ogt, %116, %117 : vector<2x1x16xf32>
    %119 = tpu.transpose %100, [1, 0] : vector<16x16xf32> -> vector<16x16xf32>
    %120 = vector.shape_cast %119 : vector<16x16xf32> to vector<1x16x16xf32>
    %cst_31 = arith.constant -1.000000e+30 : f32
    %121 = vector.shape_cast %118 : vector<2x1x16xi1> to vector<2x1x16xi1>
    %122 = vector.broadcast %121 : vector<2x1x16xi1> to vector<2x16x16xi1>
    %123 = vector.shape_cast %120 : vector<1x16x16xf32> to vector<1x16x16xf32>
    %124 = vector.broadcast %123 : vector<1x16x16xf32> to vector<2x16x16xf32>
    %125 = vector.broadcast %cst_31 : f32 to vector<2x16x16xf32>
    %126 = arith.select %122, %124, %125 : vector<2x16x16xi1>, vector<2x16x16xf32>
    %cst_32 = arith.constant dense<0xFF800000> : vector<2x16xf32>
    %127 = vector.multi_reduction <maximumf>, %126, %cst_32 [2] : vector<2x16x16xf32> to vector<2x16xf32>
    %cst_33 = arith.constant 0.000000e+00 : f32
    %128 = vector.broadcast %cst_33 : f32 to vector<2x1xf32>
    %129 = arith.cmpf ogt, %106, %128 : vector<2x1xf32>
    %cst_34 = arith.constant 0.000000e+00 : f32
    %130 = vector.shape_cast %129 : vector<2x1xi1> to vector<2x1xi1>
    %131 = vector.broadcast %130 : vector<2x1xi1> to vector<2x16xi1>
    %132 = vector.broadcast %cst_34 : f32 to vector<2x16xf32>
    %133 = arith.select %131, %127, %132 : vector<2x16xi1>, vector<2x16xf32>
    %134 = tpu.concatenate %112, %133 in 1 : vector<2x16xf32>, vector<2x16xf32> -> vector<2x32xf32>
    %135 = arith.addf %10, %134 : vector<2x32xf32>
    %cst_35 = arith.constant 0.000000e+00 : f32
    %136 = vector.broadcast %cst_35 : f32 to vector<16x16xf32>
    %137 = arith.cmpf ogt, %105, %136 : vector<16x16xf32>
    %138 = arith.ori %137, %5 : vector<16x16xi1>
    %c0_36 = arith.constant 0 : index
    %c0_37 = arith.constant 0 : index
    %139 = vector.load %arg6[%c0_36, %c0_37] : memref<16x36xf32, #tpu.memory_space<vmem>>, vector<16x36xf32>
    %140 = arith.truncf %100 : vector<16x16xf32> to vector<16x16xbf16>
    %141 = arith.truncf %139 : vector<16x36xf32> to vector<16x36xbf16>
    %cst_38 = arith.constant dense<0.000000e+00> : vector<16x36xf32>
    %142 = tpu.matmul %140, %141, %cst_38 {dimension_numbers = #tpu.dot_dimension_numbers<[1], [0], [0], [1], [0, 0, 1, 1], [], []>} : vector<16x16xbf16>, vector<16x36xbf16>, vector<16x36xf32> -> vector<16x36xf32>
    %143 = vector.extract_strided_slice %142 {offsets = [0, 0], sizes = [16, 32], strides = [1, 1]} : vector<16x36xf32> to vector<16x32xf32>
    %144 = vector.extract_strided_slice %142 {offsets = [0, 32], sizes = [16, 2], strides = [1, 1]} : vector<16x36xf32> to vector<16x2xf32>
    %145 = vector.extract_strided_slice %142 {offsets = [0, 34], sizes = [16, 2], strides = [1, 1]} : vector<16x36xf32> to vector<16x2xf32>
    %146 = tpu.transpose %145, [1, 0] : vector<16x2xf32> -> vector<2x16xf32>
    %147 = vector.shape_cast %146 : vector<2x16xf32> to vector<2x16x1xf32>
    %148 = tpu.transpose %144, [1, 0] : vector<16x2xf32> -> vector<2x16xf32>
    %149 = vector.shape_cast %148 : vector<2x16xf32> to vector<2x1x16xf32>
    %150 = vector.broadcast %147 : vector<2x16x1xf32> to vector<2x16x16xf32>
    %151 = vector.broadcast %149 : vector<2x1x16xf32> to vector<2x16x16xf32>
    %152 = arith.addf %150, %151 : vector<2x16x16xf32>
    %cst_39 = arith.constant 0.000000e+00 : f32
    %153 = vector.broadcast %cst_39 : f32 to vector<2x16x16xf32>
    %154 = arith.cmpf ogt, %152, %153 : vector<2x16x16xf32>
    %cst_40 = arith.constant 2.000000e-01 : f32
    %155 = vector.broadcast %cst_40 : f32 to vector<2x16x16xf32>
    %156 = arith.mulf %155, %152 : vector<2x16x16xf32>
    %157 = arith.select %154, %152, %156 : vector<2x16x16xi1>, vector<2x16x16xf32>
    %158 = vector.shape_cast %138 : vector<16x16xi1> to vector<1x16x16xi1>
    %cst_41 = arith.constant -1.000000e+30 : f32
    %159 = vector.shape_cast %158 : vector<1x16x16xi1> to vector<1x16x16xi1>
    %160 = vector.broadcast %159 : vector<1x16x16xi1> to vector<2x16x16xi1>
    %161 = vector.broadcast %cst_41 : f32 to vector<2x16x16xf32>
    %162 = arith.select %160, %157, %161 : vector<2x16x16xi1>, vector<2x16x16xf32>
    %cst_42 = arith.constant dense<0xFF800000> : vector<2x16xf32>
    %163 = vector.multi_reduction <maximumf>, %162, %cst_42 [2] : vector<2x16x16xf32> to vector<2x16xf32>
    %164 = vector.shape_cast %163 : vector<2x16xf32> to vector<2x16x1xf32>
    %165 = vector.broadcast %164 : vector<2x16x1xf32> to vector<2x16x16xf32>
    %166 = arith.subf %162, %165 : vector<2x16x16xf32>
    %167 = math.exp %166 : vector<2x16x16xf32>
    %cst_43 = arith.constant dense<0.000000e+00> : vector<2x16xf32>
    %168 = vector.multi_reduction <add>, %167, %cst_43 [2] : vector<2x16x16xf32> to vector<2x16xf32>
    %169 = vector.shape_cast %168 : vector<2x16xf32> to vector<2x16x1xf32>
    %170 = tpu.reciprocal %169 {approx = true} : vector<2x16x1xf32> -> vector<2x16x1xf32>
    %171 = vector.broadcast %170 : vector<2x16x1xf32> to vector<2x16x16xf32>
    %172 = arith.mulf %167, %171 : vector<2x16x16xf32>
    %c0_44 = arith.constant 0 : index
    %c0_45 = arith.constant 0 : index
    %173 = vector.load %arg7[%c0_44, %c0_45] : memref<1x16xf32, #tpu.memory_space<vmem>>, vector<1x16xf32>
    %174 = vector.extract_strided_slice %172 {offsets = [0, 0, 0], sizes = [1, 16, 16], strides = [1, 1, 1]} : vector<2x16x16xf32> to vector<1x16x16xf32>
    %175 = vector.shape_cast %174 : vector<1x16x16xf32> to vector<16x16xf32>
    %176 = vector.extract_strided_slice %143 {offsets = [0, 0], sizes = [16, 16], strides = [1, 1]} : vector<16x32xf32> to vector<16x16xf32>
    %177 = arith.truncf %175 : vector<16x16xf32> to vector<16x16xbf16>
    %178 = arith.truncf %176 : vector<16x16xf32> to vector<16x16xbf16>
    %cst_46 = arith.constant dense<0.000000e+00> : vector<16x16xf32>
    %179 = tpu.matmul %177, %178, %cst_46 {dimension_numbers = #tpu.dot_dimension_numbers<[1], [0], [0], [1], [0, 0, 1, 1], [], []>} : vector<16x16xbf16>, vector<16x16xbf16>, vector<16x16xf32> -> vector<16x16xf32>
    %180 = vector.broadcast %173 : vector<1x16xf32> to vector<16x16xf32>
    %181 = arith.addf %180, %179 : vector<16x16xf32>
    %182 = vector.extract_strided_slice %172 {offsets = [1, 0, 0], sizes = [1, 16, 16], strides = [1, 1, 1]} : vector<2x16x16xf32> to vector<1x16x16xf32>
    %183 = vector.shape_cast %182 : vector<1x16x16xf32> to vector<16x16xf32>
    %184 = vector.extract_strided_slice %143 {offsets = [0, 16], sizes = [16, 16], strides = [1, 1]} : vector<16x32xf32> to vector<16x16xf32>
    %185 = arith.truncf %183 : vector<16x16xf32> to vector<16x16xbf16>
    %186 = arith.truncf %184 : vector<16x16xf32> to vector<16x16xbf16>
    %cst_47 = arith.constant dense<0.000000e+00> : vector<16x16xf32>
    %187 = tpu.matmul %185, %186, %cst_47 {dimension_numbers = #tpu.dot_dimension_numbers<[1], [0], [0], [1], [0, 0, 1, 1], [], []>} : vector<16x16xbf16>, vector<16x16xbf16>, vector<16x16xf32> -> vector<16x16xf32>
    %188 = arith.addf %181, %187 : vector<16x16xf32>
    %c0_48 = arith.constant 0 : index
    %c0_49 = arith.constant 0 : index
    %189 = vector.load %arg8[%c0_48, %c0_49] : memref<1x16xf32, #tpu.memory_space<vmem>>, vector<1x16xf32>
    %190 = vector.broadcast %189 : vector<1x16xf32> to vector<16x16xf32>
    %191 = arith.mulf %188, %190 : vector<16x16xf32>
    %cst_50 = arith.constant dense<0.000000e+00> : vector<16xf32>
    %192 = vector.multi_reduction <add>, %191, %cst_50 [1] : vector<16x16xf32> to vector<16xf32>
    %193 = vector.shape_cast %192 : vector<16xf32> to vector<16x1xf32>
    %cst_51 = arith.constant dense<0.000000e+00> : vector<2x1xf32>
    %194 = tpu.matmul %7, %95, %cst_51 {dimension_numbers = #tpu.dot_dimension_numbers<[1], [0], [0], [1], [0, 0, 1, 1], [], []>} : vector<2x16xf32>, vector<16x1xf32>, vector<2x1xf32> -> vector<2x1xf32>
    %cst_52 = arith.constant 5.000000e-01 : f32
    %195 = vector.broadcast %cst_52 : f32 to vector<2x1xf32>
    %196 = arith.mulf %195, %194 : vector<2x1xf32>
    %197 = math.ceil %196 : vector<2x1xf32>
    %cst_53 = arith.constant dense<0.000000e+00> : vector<16x1xf32>
    %198 = tpu.matmul %2, %197, %cst_53 {dimension_numbers = #tpu.dot_dimension_numbers<[1], [0], [0], [1], [0, 0, 1, 1], [], []>} : vector<16x2xf32>, vector<2x1xf32>, vector<16x1xf32> -> vector<16x1xf32>
    %199 = tpu.transpose %193, [1, 0] : vector<16x1xf32> -> vector<1x16xf32>
    %200 = vector.broadcast %199 : vector<1x16xf32> to vector<16x16xf32>
    %201 = vector.broadcast %193 : vector<16x1xf32> to vector<16x16xf32>
    %202 = arith.cmpf ogt, %200, %201 : vector<16x16xf32>
    %203 = tpu.transpose %193, [1, 0] : vector<16x1xf32> -> vector<1x16xf32>
    %204 = vector.broadcast %203 : vector<1x16xf32> to vector<16x16xf32>
    %205 = vector.broadcast %193 : vector<16x1xf32> to vector<16x16xf32>
    %206 = arith.cmpf oeq, %204, %205 : vector<16x16xf32>
    %207 = arith.andi %206, %6 : vector<16x16xi1>
    %208 = arith.ori %202, %207 : vector<16x16xi1>
    %209 = tpu.transpose %95, [1, 0] : vector<16x1xf32> -> vector<1x16xf32>
    %210 = vector.broadcast %209 : vector<1x16xf32> to vector<16x16xf32>
    %211 = arith.mulf %8, %210 : vector<16x16xf32>
    %212 = arith.extui %208 : vector<16x16xi1> to vector<16x16xi32>
    %213 = arith.sitofp %212 : vector<16x16xi32> to vector<16x16xf32>
    %214 = arith.mulf %211, %213 : vector<16x16xf32>
    %cst_54 = arith.constant dense<0.000000e+00> : vector<16xf32>
    %215 = vector.multi_reduction <add>, %214, %cst_54 [1] : vector<16x16xf32> to vector<16xf32>
    %216 = vector.shape_cast %215 : vector<16xf32> to vector<16x1xf32>
    %217 = arith.cmpf olt, %216, %198 : vector<16x1xf32>
    %218 = arith.extui %217 : vector<16x1xi1> to vector<16x1xi32>
    %219 = arith.sitofp %218 : vector<16x1xi32> to vector<16x1xf32>
    %220 = arith.mulf %95, %219 : vector<16x1xf32>
    %221 = math.tanh %193 : vector<16x1xf32>
    %222 = vector.broadcast %221 : vector<16x1xf32> to vector<16x16xf32>
    %223 = arith.mulf %188, %222 : vector<16x16xf32>
    %224 = vector.broadcast %220 : vector<16x1xf32> to vector<16x16xf32>
    %225 = arith.mulf %223, %224 : vector<16x16xf32>
    %226 = vector.broadcast %220 : vector<16x1xf32> to vector<16x16xf32>
    %227 = arith.mulf %105, %226 : vector<16x16xf32>
    %228 = tpu.transpose %220, [1, 0] : vector<16x1xf32> -> vector<1x16xf32>
    %229 = vector.broadcast %228 : vector<1x16xf32> to vector<16x16xf32>
    %230 = arith.mulf %227, %229 : vector<16x16xf32>
    %cst_55 = arith.constant dense<0.000000e+00> : vector<2x1xf32>
    %231 = tpu.matmul %7, %220, %cst_55 {dimension_numbers = #tpu.dot_dimension_numbers<[1], [0], [0], [1], [0, 0, 1, 1], [], []>} : vector<2x16xf32>, vector<16x1xf32>, vector<2x1xf32> -> vector<2x1xf32>
    %cst_56 = arith.constant dense<0.000000e+00> : vector<2x16xf32>
    %232 = tpu.matmul %7, %225, %cst_56 {dimension_numbers = #tpu.dot_dimension_numbers<[1], [0], [0], [1], [0, 0, 1, 1], [], []>} : vector<2x16xf32>, vector<16x16xf32>, vector<2x16xf32> -> vector<2x16xf32>
    %cst_57 = arith.constant 1.000000e+00 : f32
    %233 = vector.broadcast %cst_57 : f32 to vector<2x1xf32>
    %234 = arith.maximumf %231, %233 : vector<2x1xf32>
    %235 = tpu.reciprocal %234 {approx = true} : vector<2x1xf32> -> vector<2x1xf32>
    %236 = vector.broadcast %235 : vector<2x1xf32> to vector<2x16xf32>
    %237 = arith.mulf %232, %236 : vector<2x16xf32>
    %238 = vector.broadcast %220 : vector<16x1xf32> to vector<16x2xf32>
    %239 = arith.mulf %238, %2 : vector<16x2xf32>
    %240 = tpu.transpose %239, [1, 0] : vector<16x2xf32> -> vector<2x16xf32>
    %241 = vector.shape_cast %240 : vector<2x16xf32> to vector<2x1x16xf32>
    %cst_58 = arith.constant 0.000000e+00 : f32
    %242 = vector.broadcast %cst_58 : f32 to vector<2x1x16xf32>
    %243 = arith.cmpf ogt, %241, %242 : vector<2x1x16xf32>
    %244 = tpu.transpose %225, [1, 0] : vector<16x16xf32> -> vector<16x16xf32>
    %245 = vector.shape_cast %244 : vector<16x16xf32> to vector<1x16x16xf32>
    %cst_59 = arith.constant -1.000000e+30 : f32
    %246 = vector.shape_cast %243 : vector<2x1x16xi1> to vector<2x1x16xi1>
    %247 = vector.broadcast %246 : vector<2x1x16xi1> to vector<2x16x16xi1>
    %248 = vector.shape_cast %245 : vector<1x16x16xf32> to vector<1x16x16xf32>
    %249 = vector.broadcast %248 : vector<1x16x16xf32> to vector<2x16x16xf32>
    %250 = vector.broadcast %cst_59 : f32 to vector<2x16x16xf32>
    %251 = arith.select %247, %249, %250 : vector<2x16x16xi1>, vector<2x16x16xf32>
    %cst_60 = arith.constant dense<0xFF800000> : vector<2x16xf32>
    %252 = vector.multi_reduction <maximumf>, %251, %cst_60 [2] : vector<2x16x16xf32> to vector<2x16xf32>
    %cst_61 = arith.constant 0.000000e+00 : f32
    %253 = vector.broadcast %cst_61 : f32 to vector<2x1xf32>
    %254 = arith.cmpf ogt, %231, %253 : vector<2x1xf32>
    %cst_62 = arith.constant 0.000000e+00 : f32
    %255 = vector.shape_cast %254 : vector<2x1xi1> to vector<2x1xi1>
    %256 = vector.broadcast %255 : vector<2x1xi1> to vector<2x16xi1>
    %257 = vector.broadcast %cst_62 : f32 to vector<2x16xf32>
    %258 = arith.select %256, %252, %257 : vector<2x16xi1>, vector<2x16xf32>
    %259 = tpu.concatenate %237, %258 in 1 : vector<2x16xf32>, vector<2x16xf32> -> vector<2x32xf32>
    %260 = arith.addf %135, %259 : vector<2x32xf32>
    %cst_63 = arith.constant 0.000000e+00 : f32
    %261 = vector.broadcast %cst_63 : f32 to vector<16x16xf32>
    %262 = arith.cmpf ogt, %230, %261 : vector<16x16xf32>
    %263 = arith.ori %262, %5 : vector<16x16xi1>
    %c0_64 = arith.constant 0 : index
    %c0_65 = arith.constant 0 : index
    %264 = vector.load %arg9[%c0_64, %c0_65] : memref<16x36xf32, #tpu.memory_space<vmem>>, vector<16x36xf32>
    %265 = arith.truncf %225 : vector<16x16xf32> to vector<16x16xbf16>
    %266 = arith.truncf %264 : vector<16x36xf32> to vector<16x36xbf16>
    %cst_66 = arith.constant dense<0.000000e+00> : vector<16x36xf32>
    %267 = tpu.matmul %265, %266, %cst_66 {dimension_numbers = #tpu.dot_dimension_numbers<[1], [0], [0], [1], [0, 0, 1, 1], [], []>} : vector<16x16xbf16>, vector<16x36xbf16>, vector<16x36xf32> -> vector<16x36xf32>
    %268 = vector.extract_strided_slice %267 {offsets = [0, 0], sizes = [16, 32], strides = [1, 1]} : vector<16x36xf32> to vector<16x32xf32>
    %269 = vector.extract_strided_slice %267 {offsets = [0, 32], sizes = [16, 2], strides = [1, 1]} : vector<16x36xf32> to vector<16x2xf32>
    %270 = vector.extract_strided_slice %267 {offsets = [0, 34], sizes = [16, 2], strides = [1, 1]} : vector<16x36xf32> to vector<16x2xf32>
    %271 = tpu.transpose %270, [1, 0] : vector<16x2xf32> -> vector<2x16xf32>
    %272 = vector.shape_cast %271 : vector<2x16xf32> to vector<2x16x1xf32>
    %273 = tpu.transpose %269, [1, 0] : vector<16x2xf32> -> vector<2x16xf32>
    %274 = vector.shape_cast %273 : vector<2x16xf32> to vector<2x1x16xf32>
    %275 = vector.broadcast %272 : vector<2x16x1xf32> to vector<2x16x16xf32>
    %276 = vector.broadcast %274 : vector<2x1x16xf32> to vector<2x16x16xf32>
    %277 = arith.addf %275, %276 : vector<2x16x16xf32>
    %cst_67 = arith.constant 0.000000e+00 : f32
    %278 = vector.broadcast %cst_67 : f32 to vector<2x16x16xf32>
    %279 = arith.cmpf ogt, %277, %278 : vector<2x16x16xf32>
    %cst_68 = arith.constant 2.000000e-01 : f32
    %280 = vector.broadcast %cst_68 : f32 to vector<2x16x16xf32>
    %281 = arith.mulf %280, %277 : vector<2x16x16xf32>
    %282 = arith.select %279, %277, %281 : vector<2x16x16xi1>, vector<2x16x16xf32>
    %283 = vector.shape_cast %263 : vector<16x16xi1> to vector<1x16x16xi1>
    %cst_69 = arith.constant -1.000000e+30 : f32
    %284 = vector.shape_cast %283 : vector<1x16x16xi1> to vector<1x16x16xi1>
    %285 = vector.broadcast %284 : vector<1x16x16xi1> to vector<2x16x16xi1>
    %286 = vector.broadcast %cst_69 : f32 to vector<2x16x16xf32>
    %287 = arith.select %285, %282, %286 : vector<2x16x16xi1>, vector<2x16x16xf32>
    %cst_70 = arith.constant dense<0xFF800000> : vector<2x16xf32>
    %288 = vector.multi_reduction <maximumf>, %287, %cst_70 [2] : vector<2x16x16xf32> to vector<2x16xf32>
    %289 = vector.shape_cast %288 : vector<2x16xf32> to vector<2x16x1xf32>
    %290 = vector.broadcast %289 : vector<2x16x1xf32> to vector<2x16x16xf32>
    %291 = arith.subf %287, %290 : vector<2x16x16xf32>
    %292 = math.exp %291 : vector<2x16x16xf32>
    %cst_71 = arith.constant dense<0.000000e+00> : vector<2x16xf32>
    %293 = vector.multi_reduction <add>, %292, %cst_71 [2] : vector<2x16x16xf32> to vector<2x16xf32>
    %294 = vector.shape_cast %293 : vector<2x16xf32> to vector<2x16x1xf32>
    %295 = tpu.reciprocal %294 {approx = true} : vector<2x16x1xf32> -> vector<2x16x1xf32>
    %296 = vector.broadcast %295 : vector<2x16x1xf32> to vector<2x16x16xf32>
    %297 = arith.mulf %292, %296 : vector<2x16x16xf32>
    %c0_72 = arith.constant 0 : index
    %c0_73 = arith.constant 0 : index
    %298 = vector.load %arg10[%c0_72, %c0_73] : memref<1x16xf32, #tpu.memory_space<vmem>>, vector<1x16xf32>
    %299 = vector.extract_strided_slice %297 {offsets = [0, 0, 0], sizes = [1, 16, 16], strides = [1, 1, 1]} : vector<2x16x16xf32> to vector<1x16x16xf32>
    %300 = vector.shape_cast %299 : vector<1x16x16xf32> to vector<16x16xf32>
    %301 = vector.extract_strided_slice %268 {offsets = [0, 0], sizes = [16, 16], strides = [1, 1]} : vector<16x32xf32> to vector<16x16xf32>
    %302 = arith.truncf %300 : vector<16x16xf32> to vector<16x16xbf16>
    %303 = arith.truncf %301 : vector<16x16xf32> to vector<16x16xbf16>
    %cst_74 = arith.constant dense<0.000000e+00> : vector<16x16xf32>
    %304 = tpu.matmul %302, %303, %cst_74 {dimension_numbers = #tpu.dot_dimension_numbers<[1], [0], [0], [1], [0, 0, 1, 1], [], []>} : vector<16x16xbf16>, vector<16x16xbf16>, vector<16x16xf32> -> vector<16x16xf32>
    %305 = vector.broadcast %298 : vector<1x16xf32> to vector<16x16xf32>
    %306 = arith.addf %305, %304 : vector<16x16xf32>
    %307 = vector.extract_strided_slice %297 {offsets = [1, 0, 0], sizes = [1, 16, 16], strides = [1, 1, 1]} : vector<2x16x16xf32> to vector<1x16x16xf32>
    %308 = vector.shape_cast %307 : vector<1x16x16xf32> to vector<16x16xf32>
    %309 = vector.extract_strided_slice %268 {offsets = [0, 16], sizes = [16, 16], strides = [1, 1]} : vector<16x32xf32> to vector<16x16xf32>
    %310 = arith.truncf %308 : vector<16x16xf32> to vector<16x16xbf16>
    %311 = arith.truncf %309 : vector<16x16xf32> to vector<16x16xbf16>
    %cst_75 = arith.constant dense<0.000000e+00> : vector<16x16xf32>
    %312 = tpu.matmul %310, %311, %cst_75 {dimension_numbers = #tpu.dot_dimension_numbers<[1], [0], [0], [1], [0, 0, 1, 1], [], []>} : vector<16x16xbf16>, vector<16x16xbf16>, vector<16x16xf32> -> vector<16x16xf32>
    %313 = arith.addf %306, %312 : vector<16x16xf32>
    %c0_76 = arith.constant 0 : index
    %c0_77 = arith.constant 0 : index
    %314 = vector.load %arg11[%c0_76, %c0_77] : memref<1x16xf32, #tpu.memory_space<vmem>>, vector<1x16xf32>
    %315 = vector.broadcast %314 : vector<1x16xf32> to vector<16x16xf32>
    %316 = arith.mulf %313, %315 : vector<16x16xf32>
    %cst_78 = arith.constant dense<0.000000e+00> : vector<16xf32>
    %317 = vector.multi_reduction <add>, %316, %cst_78 [1] : vector<16x16xf32> to vector<16xf32>
    %318 = vector.shape_cast %317 : vector<16xf32> to vector<16x1xf32>
    %cst_79 = arith.constant dense<0.000000e+00> : vector<2x1xf32>
    %319 = tpu.matmul %7, %220, %cst_79 {dimension_numbers = #tpu.dot_dimension_numbers<[1], [0], [0], [1], [0, 0, 1, 1], [], []>} : vector<2x16xf32>, vector<16x1xf32>, vector<2x1xf32> -> vector<2x1xf32>
    %cst_80 = arith.constant 5.000000e-01 : f32
    %320 = vector.broadcast %cst_80 : f32 to vector<2x1xf32>
    %321 = arith.mulf %320, %319 : vector<2x1xf32>
    %322 = math.ceil %321 : vector<2x1xf32>
    %cst_81 = arith.constant dense<0.000000e+00> : vector<16x1xf32>
    %323 = tpu.matmul %2, %322, %cst_81 {dimension_numbers = #tpu.dot_dimension_numbers<[1], [0], [0], [1], [0, 0, 1, 1], [], []>} : vector<16x2xf32>, vector<2x1xf32>, vector<16x1xf32> -> vector<16x1xf32>
    %324 = tpu.transpose %318, [1, 0] : vector<16x1xf32> -> vector<1x16xf32>
    %325 = vector.broadcast %324 : vector<1x16xf32> to vector<16x16xf32>
    %326 = vector.broadcast %318 : vector<16x1xf32> to vector<16x16xf32>
    %327 = arith.cmpf ogt, %325, %326 : vector<16x16xf32>
    %328 = tpu.transpose %318, [1, 0] : vector<16x1xf32> -> vector<1x16xf32>
    %329 = vector.broadcast %328 : vector<1x16xf32> to vector<16x16xf32>
    %330 = vector.broadcast %318 : vector<16x1xf32> to vector<16x16xf32>
    %331 = arith.cmpf oeq, %329, %330 : vector<16x16xf32>
    %332 = arith.andi %331, %6 : vector<16x16xi1>
    %333 = arith.ori %327, %332 : vector<16x16xi1>
    %334 = tpu.transpose %220, [1, 0] : vector<16x1xf32> -> vector<1x16xf32>
    %335 = vector.broadcast %334 : vector<1x16xf32> to vector<16x16xf32>
    %336 = arith.mulf %8, %335 : vector<16x16xf32>
    %337 = arith.extui %333 : vector<16x16xi1> to vector<16x16xi32>
    %338 = arith.sitofp %337 : vector<16x16xi32> to vector<16x16xf32>
    %339 = arith.mulf %336, %338 : vector<16x16xf32>
    %cst_82 = arith.constant dense<0.000000e+00> : vector<16xf32>
    %340 = vector.multi_reduction <add>, %339, %cst_82 [1] : vector<16x16xf32> to vector<16xf32>
    %341 = vector.shape_cast %340 : vector<16xf32> to vector<16x1xf32>
    %342 = arith.cmpf olt, %341, %323 : vector<16x1xf32>
    %343 = arith.extui %342 : vector<16x1xi1> to vector<16x1xi32>
    %344 = arith.sitofp %343 : vector<16x1xi32> to vector<16x1xf32>
    %345 = arith.mulf %220, %344 : vector<16x1xf32>
    %346 = math.tanh %318 : vector<16x1xf32>
    %347 = vector.broadcast %346 : vector<16x1xf32> to vector<16x16xf32>
    %348 = arith.mulf %313, %347 : vector<16x16xf32>
    %349 = vector.broadcast %345 : vector<16x1xf32> to vector<16x16xf32>
    %350 = arith.mulf %348, %349 : vector<16x16xf32>
    %cst_83 = arith.constant dense<0.000000e+00> : vector<2x1xf32>
    %351 = tpu.matmul %7, %345, %cst_83 {dimension_numbers = #tpu.dot_dimension_numbers<[1], [0], [0], [1], [0, 0, 1, 1], [], []>} : vector<2x16xf32>, vector<16x1xf32>, vector<2x1xf32> -> vector<2x1xf32>
    %cst_84 = arith.constant dense<0.000000e+00> : vector<2x16xf32>
    %352 = tpu.matmul %7, %350, %cst_84 {dimension_numbers = #tpu.dot_dimension_numbers<[1], [0], [0], [1], [0, 0, 1, 1], [], []>} : vector<2x16xf32>, vector<16x16xf32>, vector<2x16xf32> -> vector<2x16xf32>
    %cst_85 = arith.constant 1.000000e+00 : f32
    %353 = vector.broadcast %cst_85 : f32 to vector<2x1xf32>
    %354 = arith.maximumf %351, %353 : vector<2x1xf32>
    %355 = tpu.reciprocal %354 {approx = true} : vector<2x1xf32> -> vector<2x1xf32>
    %356 = vector.broadcast %355 : vector<2x1xf32> to vector<2x16xf32>
    %357 = arith.mulf %352, %356 : vector<2x16xf32>
    %358 = vector.broadcast %345 : vector<16x1xf32> to vector<16x2xf32>
    %359 = arith.mulf %358, %2 : vector<16x2xf32>
    %360 = tpu.transpose %359, [1, 0] : vector<16x2xf32> -> vector<2x16xf32>
    %361 = vector.shape_cast %360 : vector<2x16xf32> to vector<2x1x16xf32>
    %cst_86 = arith.constant 0.000000e+00 : f32
    %362 = vector.broadcast %cst_86 : f32 to vector<2x1x16xf32>
    %363 = arith.cmpf ogt, %361, %362 : vector<2x1x16xf32>
    %364 = tpu.transpose %350, [1, 0] : vector<16x16xf32> -> vector<16x16xf32>
    %365 = vector.shape_cast %364 : vector<16x16xf32> to vector<1x16x16xf32>
    %cst_87 = arith.constant -1.000000e+30 : f32
    %366 = vector.shape_cast %363 : vector<2x1x16xi1> to vector<2x1x16xi1>
    %367 = vector.broadcast %366 : vector<2x1x16xi1> to vector<2x16x16xi1>
    %368 = vector.shape_cast %365 : vector<1x16x16xf32> to vector<1x16x16xf32>
    %369 = vector.broadcast %368 : vector<1x16x16xf32> to vector<2x16x16xf32>
    %370 = vector.broadcast %cst_87 : f32 to vector<2x16x16xf32>
    %371 = arith.select %367, %369, %370 : vector<2x16x16xi1>, vector<2x16x16xf32>
    %cst_88 = arith.constant dense<0xFF800000> : vector<2x16xf32>
    %372 = vector.multi_reduction <maximumf>, %371, %cst_88 [2] : vector<2x16x16xf32> to vector<2x16xf32>
    %cst_89 = arith.constant 0.000000e+00 : f32
    %373 = vector.broadcast %cst_89 : f32 to vector<2x1xf32>
    %374 = arith.cmpf ogt, %351, %373 : vector<2x1xf32>
    %cst_90 = arith.constant 0.000000e+00 : f32
    %375 = vector.shape_cast %374 : vector<2x1xi1> to vector<2x1xi1>
    %376 = vector.broadcast %375 : vector<2x1xi1> to vector<2x16xi1>
    %377 = vector.broadcast %cst_90 : f32 to vector<2x16xf32>
    %378 = arith.select %376, %372, %377 : vector<2x16xi1>, vector<2x16xf32>
    %379 = tpu.concatenate %357, %378 in 1 : vector<2x16xf32>, vector<2x16xf32> -> vector<2x32xf32>
    %380 = arith.addf %260, %379 : vector<2x32xf32>
    %c0_91 = arith.constant 0 : index
    %c0_92 = arith.constant 0 : index
    %381 = vector.load %arg12[%c0_91, %c0_92] : memref<32x32xf32, #tpu.memory_space<vmem>>, vector<32x32xf32>
    %382 = arith.truncf %380 : vector<2x32xf32> to vector<2x32xbf16>
    %383 = arith.truncf %381 : vector<32x32xf32> to vector<32x32xbf16>
    %cst_93 = arith.constant dense<0.000000e+00> : vector<2x32xf32>
    %384 = tpu.matmul %382, %383, %cst_93 {dimension_numbers = #tpu.dot_dimension_numbers<[1], [0], [0], [1], [0, 0, 1, 1], [], []>} : vector<2x32xbf16>, vector<32x32xbf16>, vector<2x32xf32> -> vector<2x32xf32>
    %c0_94 = arith.constant 0 : index
    %c0_95 = arith.constant 0 : index
    %385 = vector.load %arg13[%c0_94, %c0_95] : memref<1x32xf32, #tpu.memory_space<vmem>>, vector<1x32xf32>
    %386 = vector.broadcast %385 : vector<1x32xf32> to vector<2x32xf32>
    %387 = arith.addf %384, %386 : vector<2x32xf32>
    %cst_96 = arith.constant 0.000000e+00 : f32
    %388 = vector.broadcast %cst_96 : f32 to vector<2x32xf32>
    %389 = arith.maximumf %387, %388 : vector<2x32xf32>
    %c0_97 = arith.constant 0 : index
    %c0_98 = arith.constant 0 : index
    %390 = vector.load %arg14[%c0_97, %c0_98] : memref<32x16xf32, #tpu.memory_space<vmem>>, vector<32x16xf32>
    %391 = arith.truncf %389 : vector<2x32xf32> to vector<2x32xbf16>
    %392 = arith.truncf %390 : vector<32x16xf32> to vector<32x16xbf16>
    %cst_99 = arith.constant dense<0.000000e+00> : vector<2x16xf32>
    %393 = tpu.matmul %391, %392, %cst_99 {dimension_numbers = #tpu.dot_dimension_numbers<[1], [0], [0], [1], [0, 0, 1, 1], [], []>} : vector<2x32xbf16>, vector<32x16xbf16>, vector<2x16xf32> -> vector<2x16xf32>
    %c0_100 = arith.constant 0 : index
    %c0_101 = arith.constant 0 : index
    %394 = vector.load %arg15[%c0_100, %c0_101] : memref<1x16xf32, #tpu.memory_space<vmem>>, vector<1x16xf32>
    %395 = vector.broadcast %394 : vector<1x16xf32> to vector<2x16xf32>
    %396 = arith.addf %393, %395 : vector<2x16xf32>
    %cst_102 = arith.constant 0.000000e+00 : f32
    %397 = vector.broadcast %cst_102 : f32 to vector<2x16xf32>
    %398 = arith.maximumf %396, %397 : vector<2x16xf32>
    %c0_103 = arith.constant 0 : index
    %c0_104 = arith.constant 0 : index
    %399 = vector.load %arg16[%c0_103, %c0_104] : memref<16x1xf32, #tpu.memory_space<vmem>>, vector<16x1xf32>
    %400 = arith.truncf %398 : vector<2x16xf32> to vector<2x16xbf16>
    %401 = arith.truncf %399 : vector<16x1xf32> to vector<16x1xbf16>
    %cst_105 = arith.constant dense<0.000000e+00> : vector<2x1xf32>
    %402 = tpu.matmul %400, %401, %cst_105 {dimension_numbers = #tpu.dot_dimension_numbers<[1], [0], [0], [1], [0, 0, 1, 1], [], []>} : vector<2x16xbf16>, vector<16x1xbf16>, vector<2x1xf32> -> vector<2x1xf32>
    %c0_106 = arith.constant 0 : index
    %c0_107 = arith.constant 0 : index
    %403 = vector.load %arg17[%c0_106, %c0_107] : memref<1x1xf32, #tpu.memory_space<vmem>>, vector<1x1xf32>
    %404 = vector.broadcast %403 : vector<1x1xf32> to vector<2x1xf32>
    %405 = arith.addf %402, %404 : vector<2x1xf32>
    %c0_108 = arith.constant 0 : index
    %c0_109 = arith.constant 0 : index
    %406 = vector.load %arg18[%c0_108, %c0_109] : memref<2x1xf32, #tpu.memory_space<vmem>>, vector<2x1xf32>
    tpu.vector_store %arg18[%c0_108, %c0_109], %405 {strides = array<i32>} : memref<2x1xf32, #tpu.memory_space<vmem>>, vector<2x1xf32>,
    return
  }
}

</mosaic_0001>

<llo_original>
// kernel: gnn_forward.1
$region0: #{gnn_forward.1}
  #allocation0 [shape = 'u32[]', space=smem, size = 0x4, offset = 0x4, fixed_abs, tag = 'smem constant byte address 0x4 - core index']
  #allocation1 [shape = 'u32[144,128]{1,0:T(1,128)}', space=vmem, size = 0x12000, scoped, tag = 'internal scratch']
  #allocation2 [shape = 'f32[1,1]{1,0:T(1,128)S(1)}', space=vmem, size = 0x200, scoped, tag = 'scoped memory for gnn_forward.1']
  %s0 = inlined_call_operand.vmem [shape: f32[16,8], index: 0, kind: input, shape index: {}]
  %s1 = inlined_call_operand.vmem [shape: f32[16,16], index: 1, kind: input, shape index: {}]
  %s2 = inlined_call_operand.vmem [shape: f32[16,2], index: 2, kind: input, shape index: {}]
  %s3 = inlined_call_operand.vmem [shape: f32[8,36], index: 3, kind: input, shape index: {}]
  %s4 = inlined_call_operand.vmem [shape: f32[1,16], index: 4, kind: input, shape index: {}]
  %s5 = inlined_call_operand.vmem [shape: f32[1,16], index: 5, kind: input, shape index: {}]
  %s6 = inlined_call_operand.vmem [shape: f32[16,36], index: 6, kind: input, shape index: {}]
  %s7 = inlined_call_operand.vmem [shape: f32[1,16], index: 7, kind: input, shape index: {}]
  %s8 = inlined_call_operand.vmem [shape: f32[1,16], index: 8, kind: input, shape index: {}]
  %s9 = inlined_call_operand.vmem [shape: f32[16,36], index: 9, kind: input, shape index: {}]
  %s10 = inlined_call_operand.vmem [shape: f32[1,16], index: 10, kind: input, shape index: {}]
  %s11 = inlined_call_operand.vmem [shape: f32[1,16], index: 11, kind: input, shape index: {}]
  %s12 = inlined_call_operand.vmem [shape: f32[32,32], index: 12, kind: input, shape index: {}]
  %s13 = inlined_call_operand.vmem [shape: f32[1,32], index: 13, kind: input, shape index: {}]
  %s14 = inlined_call_operand.vmem [shape: f32[32,16], index: 14, kind: input, shape index: {}]
  %s15 = inlined_call_operand.vmem [shape: f32[1,16], index: 15, kind: input, shape index: {}]
  %s16 = inlined_call_operand.vmem [shape: f32[16,1], index: 16, kind: input, shape index: {}]
  %s17 = inlined_call_operand.<no memory space> [shape: f32[1,1], index: 17, kind: input, shape index: {}]
  %s18 = inlined_call_operand.vmem [shape: f32[2,1], index: 18, kind: output, shape index: {}]
  %s19 = sld [smem:[#allocation0]]
  $region82: #{gnn_forward.1} parent=0
    _
  %s21 = ssub.s32 1, %s19
  %s22 = scalar_select 0, %s21, %s19
  %v23 = vstv %s17
  %24 = vst [vmem:[#allocation2] sm:$0x1] %v23
  // Predicated region
  $region2: #{gnn_forward.1} parent=0 // pred_check
    _
  $region3: #{gnn_forward.1} parent=0 // pred_check_branch
    %26 = sbr.rel (0) target = $region5
  $region4: #{gnn_forward.1} parent=0 // pred_region
    _
  $region5: #{gnn_forward.1} parent=0 // pred_fallthru
    _
  // Predicated region
  $region6: #{gnn_forward.1} parent=0 // pred_check
    _
  $region7: #{gnn_forward.1} parent=0 // pred_check_branch
    %28 = sbr.rel (0) target = $region9
  $region8: #{gnn_forward.1} parent=0 // pred_region
    _
  $region9: #{gnn_forward.1} parent=0 // pred_fallthru
    _
  // Predicated region
  $region10: #{gnn_forward.1} parent=0 // pred_check
    _
  $region11: #{gnn_forward.1} parent=0 // pred_check_branch
    %30 = sbr.rel (0) target = $region13
  $region12: #{gnn_forward.1} parent=0 // pred_region
    _
  $region13: #{gnn_forward.1} parent=0 // pred_fallthru
    _
  // Predicated region
  $region14: #{gnn_forward.1} parent=0 // pred_check
    _
  $region15: #{gnn_forward.1} parent=0 // pred_check_branch
    %32 = sbr.rel (0) target = $region17
  $region16: #{gnn_forward.1} parent=0 // pred_region
    _
  $region17: #{gnn_forward.1} parent=0 // pred_fallthru
    _
  // Predicated region
  $region18: #{gnn_forward.1} parent=0 // pred_check
    _
  $region19: #{gnn_forward.1} parent=0 // pred_check_branch
    %34 = sbr.rel (0) target = $region21
  $region20: #{gnn_forward.1} parent=0 // pred_region
    _
  $region21: #{gnn_forward.1} parent=0 // pred_fallthru
    _
  // Predicated region
  $region22: #{gnn_forward.1} parent=0 // pred_check
    _
  $region23: #{gnn_forward.1} parent=0 // pred_check_branch
    %36 = sbr.rel (0) target = $region25
  $region24: #{gnn_forward.1} parent=0 // pred_region
    _
  $region25: #{gnn_forward.1} parent=0 // pred_fallthru
    _
  // Predicated region
  $region26: #{gnn_forward.1} parent=0 // pred_check
    _
  $region27: #{gnn_forward.1} parent=0 // pred_check_branch
    %38 = sbr.rel (0) target = $region29
  $region28: #{gnn_forward.1} parent=0 // pred_region
    _
  $region29: #{gnn_forward.1} parent=0 // pred_fallthru
    _
  // Predicated region
  $region30: #{gnn_forward.1} parent=0 // pred_check
    _
  $region31: #{gnn_forward.1} parent=0 // pred_check_branch
    %40 = sbr.rel (0) target = $region33
  $region32: #{gnn_forward.1} parent=0 // pred_region
    _
  $region33: #{gnn_forward.1} parent=0 // pred_fallthru
    _
  // Predicated region
  $region34: #{gnn_forward.1} parent=0 // pred_check
    _
  $region35: #{gnn_forward.1} parent=0 // pred_check_branch
    %42 = sbr.rel (0) target = $region37
  $region36: #{gnn_forward.1} parent=0 // pred_region
    _
  $region37: #{gnn_forward.1} parent=0 // pred_fallthru
    _
  // Predicated region
  $region38: #{gnn_forward.1} parent=0 // pred_check
    _
  $region39: #{gnn_forward.1} parent=0 // pred_check_branch
    %44 = sbr.rel (0) target = $region41
  $region40: #{gnn_forward.1} parent=0 // pred_region
    _
  $region41: #{gnn_forward.1} parent=0 // pred_fallthru
    _
  // Predicated region
  $region42: #{gnn_forward.1} parent=0 // pred_check
    _
  $region43: #{gnn_forward.1} parent=0 // pred_check_branch
    %46 = sbr.rel (0) target = $region45
  $region44: #{gnn_forward.1} parent=0 // pred_region
    _
  $region45: #{gnn_forward.1} parent=0 // pred_fallthru
    _
  // Predicated region
  $region46: #{gnn_forward.1} parent=0 // pred_check
    _
  $region47: #{gnn_forward.1} parent=0 // pred_check_branch
    %48 = sbr.rel (0) target = $region49
  $region48: #{gnn_forward.1} parent=0 // pred_region
    _
  $region49: #{gnn_forward.1} parent=0 // pred_fallthru
    _
  // Predicated region
  $region50: #{gnn_forward.1} parent=0 // pred_check
    _
  $region51: #{gnn_forward.1} parent=0 // pred_check_branch
    %50 = sbr.rel (0) target = $region53
  $region52: #{gnn_forward.1} parent=0 // pred_region
    _
  $region53: #{gnn_forward.1} parent=0 // pred_fallthru
    _
  // Predicated region
  $region54: #{gnn_forward.1} parent=0 // pred_check
    _
  $region55: #{gnn_forward.1} parent=0 // pred_check_branch
    %52 = sbr.rel (0) target = $region57
  $region56: #{gnn_forward.1} parent=0 // pred_region
    _
  $region57: #{gnn_forward.1} parent=0 // pred_fallthru
    _
  // Predicated region
  $region58: #{gnn_forward.1} parent=0 // pred_check
    _
  $region59: #{gnn_forward.1} parent=0 // pred_check_branch
    %54 = sbr.rel (0) target = $region61
  $region60: #{gnn_forward.1} parent=0 // pred_region
    _
  $region61: #{gnn_forward.1} parent=0 // pred_fallthru
    _
  // Predicated region
  $region62: #{gnn_forward.1} parent=0 // pred_check
    _
  $region63: #{gnn_forward.1} parent=0 // pred_check_branch
    %56 = sbr.rel (0) target = $region65
  $region64: #{gnn_forward.1} parent=0 // pred_region
    _
  $region65: #{gnn_forward.1} parent=0 // pred_fallthru
    _
  // Predicated region
  $region66: #{gnn_forward.1} parent=0 // pred_check
    _
  $region67: #{gnn_forward.1} parent=0 // pred_check_branch
    %58 = sbr.rel (0) target = $region69
  $region68: #{gnn_forward.1} parent=0 // pred_region
    _
  $region69: #{gnn_forward.1} parent=0 // pred_fallthru
    _
  // Predicated region
  $region70: #{gnn_forward.1} parent=0 // pred_check
    _
  $region71: #{gnn_forward.1} parent=0 // pred_check_branch
    %60 = sbr.rel (0) target = $region73
  $region72: #{gnn_forward.1} parent=0 // pred_region
    _
  $region73: #{gnn_forward.1} parent=0 // pred_fallthru
    _
  %v62 = vld [vmem:[%s0] sm:$0xff]
  %v63 = vld [vmem:[%s0 + $0x8] sm:$0xff]
  %v64 = vld [vmem:[%s1] sm:$0xff]
  %v65 = vld [vmem:[%s1 + $0x8] sm:$0xff]
  %v66 = vld [vmem:[%s2] sm:$0xff]
  %v67 = vld [vmem:[%s2 + $0x8] sm:$0xff]
  %v68 = vlaneseq
  %v69 = vshrl.u32 %v68, 7
  %v70 = vadd.s32 %v69, 8
  %v71 = vlaneseq
  %v72 = vand.u32 %v71, 127
  %vm73 = vcmp.eq.s32.totalorder %v69, %v72
  %vm74 = vcmp.eq.s32.totalorder %v70, %v72
  %vm75 = vcmp.lt.s32.totalorder %v72, %v69
  %vm76 = vcmp.lt.s32.totalorder %v72, %v70
  %77 = vxpose.xlu0.b32.start [1/16] %v66, 128
  %78 = vxpose.xlu0.b32.cont [2/16] %v67, 128
  %79 = vxpose.xlu0.b32.cont [3/16] 0.0, 128
  %80 = vxpose.xlu0.b32.cont [4/16] 0.0, 128
  %81 = vxpose.xlu0.b32.cont [5/16] 0.0, 128
  %82 = vxpose.xlu0.b32.cont [6/16] 0.0, 128
  %83 = vxpose.xlu0.b32.cont [7/16] 0.0, 128
  %84 = vxpose.xlu0.b32.cont [8/16] 0.0, 128
  %85 = vxpose.xlu0.b32.cont [9/16] 0.0, 128
  %86 = vxpose.xlu0.b32.cont [10/16] 0.0, 128
  %87 = vxpose.xlu0.b32.cont [11/16] 0.0, 128
  %88 = vxpose.xlu0.b32.cont [12/16] 0.0, 128
  %89 = vxpose.xlu0.b32.cont [13/16] 0.0, 128
  %90 = vxpose.xlu0.b32.cont [14/16] 0.0, 128
  %91 = vxpose.xlu0.b32.cont [15/16] 0.0, 128
  %92 = vxpose.xlu0.b32.end [16/16] 0.0, 128
  %v93 = vpop.trf.xlu0
  %v94 = vpop.trf.xlu0
  %v95 = vpop.trf.xlu0
  %v96 = vpop.trf.xlu0
  %v97 = vpop.trf.xlu0
  %v98 = vpop.trf.xlu0
  %v99 = vpop.trf.xlu0
  %v100 = vpop.trf.xlu0
  %v101 = vpop.trf.xlu0
  %v102 = vpop.trf.xlu0
  %v103 = vpop.trf.xlu0
  %v104 = vpop.trf.xlu0
  %v105 = vpop.trf.xlu0
  %v106 = vpop.trf.xlu0
  %v107 = vpop.trf.xlu0
  %v108 = vpop.trf.xlu0
  %vm109 = vcmask 15360
  %v111 = vsel %vm109, %v66, 0
  %v114 = vsel %vm109, %v67, 0
  %vm116 = vcmask 1041408
  %v118 = vsel %vm116, %v93, 0
  %120 = vmatprep.subr.mxu0 0.0
  %121 = vmatpush1.msra.mxu0 0.0
  %122 = vmatprep.subr.mxu0 0.0
  %123 = vmatpush1.msra.mxu0 0.0
  %124 = vmatprep.subr.mxu0 0.0
  %125 = vmatpush1.msra.mxu0 0.0
  %126 = vmatprep.subr.mxu0 0.0
  %127 = vmatpush1.msra.mxu0 0.0
  %128 = vmatprep.subr.mxu0 0.0
  %129 = vmatpush1.msra.mxu0 0.0
  %130 = vmatprep.subr.mxu0 0.0
  %131 = vmatpush1.msra.mxu0 0.0
  %132 = vmatprep.subr.mxu0 0.0
  %133 = vmatpush1.msra.mxu0 0.0
  %134 = vmatprep.subr.mxu0 0.0
  %135 = vmatpush1.msra.mxu0 0.0
  %136 = vmatprep.subr.mxu0 0.0
  %137 = vmatpush1.msra.mxu0 0.0
  %138 = vmatprep.subr.mxu0 0.0
  %139 = vmatpush1.msra.mxu0 0.0
  %140 = vmatprep.subr.mxu0 0.0
  %141 = vmatpush1.msra.mxu0 0.0
  %142 = vmatprep.subr.mxu0 0.0
  %143 = vmatpush1.msra.mxu0 0.0
  %144 = vmatprep.subr.mxu0 0.0
  %145 = vmatpush1.msra.mxu0 0.0
  %146 = vmatprep.subr.mxu0 0.0
  %147 = vmatpush1.msra.mxu0 0.0
  %148 = vmatprep.subr.mxu0 0.0
  %149 = vmatpush1.msra.mxu0 0.0
  %150 = vmatprep.subr.mxu0 0.0
  %151 = vmatpush1.msra.mxu0 %v118
  %152 = vmatprep.subr.mxu0 0.0
  %153 = vmatpush2.msra.mxu0 0.0
  %154 = vmatprep.subr.mxu0 0.0
  %155 = vmatpush2.msra.mxu0 0.0
  %156 = vmatprep.subr.mxu0 0.0
  %157 = vmatpush2.msra.mxu0 0.0
  %158 = vmatprep.subr.mxu0 0.0
  %159 = vmatpush2.msra.mxu0 0.0
  %160 = vmatprep.subr.mxu0 0.0
  %161 = vmatpush2.msra.mxu0 0.0
  %162 = vmatprep.subr.mxu0 0.0
  %163 = vmatpush2.msra.mxu0 0.0
  %164 = vmatprep.subr.mxu0 0.0
  %165 = vmatpush2.msra.mxu0 0.0
  %166 = vmatprep.subr.mxu0 0.0
  %167 = vmatpush2.msra.mxu0 0.0
  %168 = vmatprep.subr.mxu0 0.0
  %169 = vmatpush2.msra.mxu0 0.0
  %170 = vmatprep.subr.mxu0 0.0
  %171 = vmatpush2.msra.mxu0 0.0
  %172 = vmatprep.subr.mxu0 0.0
  %173 = vmatpush2.msra.mxu0 0.0
  %174 = vmatprep.subr.mxu0 0.0
  %175 = vmatpush2.msra.mxu0 0.0
  %176 = vmatprep.subr.mxu0 0.0
  %177 = vmatpush2.msra.mxu0 0.0
  %178 = vmatprep.subr.mxu0 0.0
  %179 = vmatpush2.msra.mxu0 0.0
  %180 = vmatprep.subr.mxu0 0.0
  %181 = vmatpush2.msra.mxu0 0.0
  %182 = vmatprep.subr.mxu0 0.0
  %183 = vmatpush2.msra.mxu0 0.0
  %184 = vmatprep.mubr.f32.mxu0 0.0
  %185 = vmatmul.mubr.f32.gmra.mxu0 %v111
  %v186 = vpop.f32.mrf.mxu0
  %v187 = vadd.f32 0.0, %v186
  %v188 = vpop.f32.mrf.mxu0
  %189 = vmatprep.mubr.f32.mxu0 0.0
  %190 = vmatmul.mubr.f32.gmra.mxu0 %v114
  %v191 = vpop.f32.mrf.mxu0
  %v192 = vadd.f32 0.0, %v191
  %v193 = vpop.f32.mrf.mxu0
  %194 = vdwg.mxu0
  %vm195 = vcmp.gt.f32.partialorder %v64, 0.0
  %vm196 = vcmp.gt.f32.partialorder %v65, 0.0
  %vm197 = vmor %vm195, %vm73
  %vm198 = vmor %vm196, %vm74
  %v199 = vld [vmem:[%s3] sm:$0xff]
  %v200 = vpack.c.bf16 %v63, %v62
  %v201 = vpack.c.bf16 %v199, %v199
  %vm202 = vcmask 64512
  %v204 = vsel %vm202, %v200, 0
  %vm206 = vcmask 1043456
  %v208 = vsel %vm206, %v201, 0
  %210 = vmatprep.subr.bf16.mxu0 0
  %211 = vmatpush1.bf16.msra.mxu0 0
  %212 = vmatprep.subr.bf16.mxu0 0
  %213 = vmatpush1.bf16.msra.mxu0 0
  %214 = vmatprep.subr.bf16.mxu0 0
  %215 = vmatpush1.bf16.msra.mxu0 0
  %216 = vmatprep.subr.bf16.mxu0 0
  %217 = vmatpush1.bf16.msra.mxu0 0
  %218 = vmatprep.subr.bf16.mxu0 0
  %219 = vmatpush1.bf16.msra.mxu0 0
  %220 = vmatprep.subr.bf16.mxu0 0
  %221 = vmatpush1.bf16.msra.mxu0 0
  %222 = vmatprep.subr.bf16.mxu0 0
  %223 = vmatpush1.bf16.msra.mxu0 0
  %224 = vmatprep.subr.bf16.mxu0 0
  %225 = vmatpush1.bf16.msra.mxu0 %v208
  %226 = vmatprep.subr.bf16.mxu0 0
  %227 = vmatpush2.bf16.msra.mxu0 0
  %228 = vmatprep.subr.bf16.mxu0 0
  %229 = vmatpush2.bf16.msra.mxu0 0
  %230 = vmatprep.subr.bf16.mxu0 0
  %231 = vmatpush2.bf16.msra.mxu0 0
  %232 = vmatprep.subr.bf16.mxu0 0
  %233 = vmatpush2.bf16.msra.mxu0 0
  %234 = vmatprep.subr.bf16.mxu0 0
  %235 = vmatpush2.bf16.msra.mxu0 0
  %236 = vmatprep.subr.bf16.mxu0 0
  %237 = vmatpush2.bf16.msra.mxu0 0
  %238 = vmatprep.subr.bf16.mxu0 0
  %239 = vmatpush2.bf16.msra.mxu0 0
  %240 = vmatprep.subr.bf16.mxu0 0
  %241 = vmatpush2.bf16.msra.mxu0 0
  %242 = vmatprep.mubr.bf16.mxu0 0
  %243 = vmatmul.mubr.bf16.gmra.mxu0 %v204
  %v244 = vpop.f32.mrf.mxu0
  %v245 = vadd.f32 0.0, %v244
  %v246 = vpop.f32.mrf.mxu0
  %v247 = vpop.f32.mrf.mxu0
  %v248 = vadd.f32 0.0, %v247
  %v249 = vpop.f32.mrf.mxu0
  %250 = vdwg.mxu0
  %253 = vrot.lane.b32.xlu0 %v245, 94
  %v254 = vpop.permute.xlu0 %253
  %255 = vrot.lane.b32.xlu0 %v248, 94
  %v256 = vpop.permute.xlu0 %255
  %259 = vxpose.xlu0.b32.start [1/16] %v254, 128
  %260 = vxpose.xlu0.b32.cont [2/16] %v256, 128
  %261 = vxpose.xlu0.b32.cont [3/16] 0.0, 128
  %262 = vxpose.xlu0.b32.cont [4/16] 0.0, 128
  %263 = vxpose.xlu0.b32.cont [5/16] 0.0, 128
  %264 = vxpose.xlu0.b32.cont [6/16] 0.0, 128
  %265 = vxpose.xlu0.b32.cont [7/16] 0.0, 128
  %266 = vxpose.xlu0.b32.cont [8/16] 0.0, 128
  %267 = vxpose.xlu0.b32.cont [9/16] 0.0, 128
  %268 = vxpose.xlu0.b32.cont [10/16] 0.0, 128
  %269 = vxpose.xlu0.b32.cont [11/16] 0.0, 128
  %270 = vxpose.xlu0.b32.cont [12/16] 0.0, 128
  %271 = vxpose.xlu0.b32.cont [13/16] 0.0, 128
  %272 = vxpose.xlu0.b32.cont [14/16] 0.0, 128
  %273 = vxpose.xlu0.b32.cont [15/16] 0.0, 128
  %274 = vxpose.xlu0.b32.end [16/16] 0.0, 128
  %v275 = vpop.trf.xlu0
  %v276 = vpop.trf.xlu0
  %v277 = vpop.trf.xlu0
  %v278 = vpop.trf.xlu0
  %v279 = vpop.trf.xlu0
  %v280 = vpop.trf.xlu0
  %v281 = vpop.trf.xlu0
  %v282 = vpop.trf.xlu0
  %v283 = vpop.trf.xlu0
  %v284 = vpop.trf.xlu0
  %v285 = vpop.trf.xlu0
  %v286 = vpop.trf.xlu0
  %v287 = vpop.trf.xlu0
  %v288 = vpop.trf.xlu0
  %v289 = vpop.trf.xlu0
  %v290 = vpop.trf.xlu0
  %v291 = vlaneseq
  %v292 = vshrl.u32 %v291, 7
  %v293 = vsub.s32 0, %v292
  %v294 = vrot.slane %v275, %v293
  %296 = vbcast.lane.b32.xlu0 %v294, 256
  %v297 = vpop.permute.xlu0 %296
  %s299 = sor.u32 256, 8
  %300 = vbcast.lane.b32.xlu0 %v294, %s299
  %v301 = vpop.permute.xlu0 %300
  %v302 = vlaneseq
  %v303 = vshrl.u32 %v302, 7
  %v304 = vsub.s32 1, %v303
  %v305 = vrot.slane %v275, %v304
  %307 = vbcast.lane.b32.xlu0 %v305, 256
  %v308 = vpop.permute.xlu0 %307
  %s310 = sor.u32 256, 8
  %311 = vbcast.lane.b32.xlu0 %v305, %s310
  %v312 = vpop.permute.xlu0 %311
  %313 = vrot.lane.b32.xlu0 %v245, 96
  %v314 = vpop.permute.xlu0 %313
  %315 = vrot.lane.b32.xlu0 %v248, 96
  %v316 = vpop.permute.xlu0 %315
  %319 = vxpose.xlu0.b32.start [1/16] %v314, 128
  %320 = vxpose.xlu0.b32.cont [2/16] %v316, 128
  %321 = vxpose.xlu0.b32.cont [3/16] 0.0, 128
  %322 = vxpose.xlu0.b32.cont [4/16] 0.0, 128
  %323 = vxpose.xlu0.b32.cont [5/16] 0.0, 128
  %324 = vxpose.xlu0.b32.cont [6/16] 0.0, 128
  %325 = vxpose.xlu0.b32.cont [7/16] 0.0, 128
  %326 = vxpose.xlu0.b32.cont [8/16] 0.0, 128
  %327 = vxpose.xlu0.b32.cont [9/16] 0.0, 128
  %328 = vxpose.xlu0.b32.cont [10/16] 0.0, 128
  %329 = vxpose.xlu0.b32.cont [11/16] 0.0, 128
  %330 = vxpose.xlu0.b32.cont [12/16] 0.0, 128
  %331 = vxpose.xlu0.b32.cont [13/16] 0.0, 128
  %332 = vxpose.xlu0.b32.cont [14/16] 0.0, 128
  %333 = vxpose.xlu0.b32.cont [15/16] 0.0, 128
  %334 = vxpose.xlu0.b32.end [16/16] 0.0, 128
  %v335 = vpop.trf.xlu0
  %v336 = vpop.trf.xlu0
  %v337 = vpop.trf.xlu0
  %v338 = vpop.trf.xlu0
  %v339 = vpop.trf.xlu0
  %v340 = vpop.trf.xlu0
  %v341 = vpop.trf.xlu0
  %v342 = vpop.trf.xlu0
  %v343 = vpop.trf.xlu0
  %v344 = vpop.trf.xlu0
  %v345 = vpop.trf.xlu0
  %v346 = vpop.trf.xlu0
  %v347 = vpop.trf.xlu0
  %v348 = vpop.trf.xlu0
  %v349 = vpop.trf.xlu0
  %v350 = vpop.trf.xlu0
  %v353 = vunpack.c.l.s4 1966171168
  %v354 = vunpack.c.0.s8 %v353
  %v355 = vlaneseq
  %v356 = vshrl.u32 %v355, 7
  %v357 = vsub.s32 %v354, %v356
  %v358 = vrot.slane %v335, %v357
  %v359 = vcombine.high %v358, %v358
  %v361 = vunpack.c.l.s4 1966171168
  %v362 = vunpack.c.0.s8 %v361
  %v363 = vlaneseq
  %v364 = vshrl.u32 %v363, 7
  %v365 = vsub.s32 %v362, %v364
  %v366 = vrot.slane %v358, %v365
  %v368 = vunpack.c.l.s4 1966171168
  %v369 = vunpack.c.0.s8 %v368
  %v370 = vlaneseq
  %v371 = vshrl.u32 %v370, 7
  %v372 = vsub.s32 %v369, %v371
  %v373 = vrot.slane %v359, %v372
  %v374 = vlaneseq
  %v375 = vshrl.u32 %v374, 7
  %v376 = vsub.s32 0, %v375
  %v377 = vrot.slane %v366, %v376
  %v378 = vlaneseq
  %v379 = vshrl.u32 %v378, 7
  %v380 = vsub.s32 0, %v379
  %v381 = vrot.slane %v373, %v380
  %v384 = vadd.f32 %v297, %v377
  %v385 = vadd.f32 %v301, %v377
  %v386 = vadd.f32 %v308, %v381
  %v387 = vadd.f32 %v312, %v381
  %vm388 = vcmp.gt.f32.partialorder %v384, 0.0
  %vm389 = vcmp.gt.f32.partialorder %v385, 0.0
  %vm390 = vcmp.gt.f32.partialorder %v386, 0.0
  %vm391 = vcmp.gt.f32.partialorder %v387, 0.0
  %v392 = vmul.f32 %v384, 0.2
  %v393 = vmul.f32 %v385, 0.2
  %v394 = vmul.f32 %v386, 0.2
  %v395 = vmul.f32 %v387, 0.2
  %v396 = vsel %vm388, %v384, %v392
  %v397 = vsel %vm389, %v385, %v393
  %v398 = vsel %vm390, %v386, %v394
  %v399 = vsel %vm391, %v387, %v395
  %v400 = vsel %vm197, 1, 0
  %v401 = vsel %vm198, 1, 0
  %vm402 = vcmp.eq.s32.totalorder %v400, 1
  %vm403 = vcmp.eq.s32.totalorder %v401, 1
  %v404 = vsel %vm402, %v396, -1e+30
  %v405 = vsel %vm403, %v397, -1e+30
  %v406 = vsel %vm402, %v398, -1e+30
  %v407 = vsel %vm403, %v399, -1e+30
  %vm408 = vcmask 130048
  %v409 = vsel %vm408, %v404, -inf
  %410 = vmax.xlane.f32.xlu0 %v409
  %v411 = vpop.xlane.xlu0 %410
  %v412 = vsel %vm408, %v405, -inf
  %413 = vmax.xlane.f32.xlu0 %v412
  %v414 = vpop.xlane.xlu0 %413
  %v415 = vsel %vm408, %v406, -inf
  %416 = vmax.xlane.f32.xlu0 %v415
  %v417 = vpop.xlane.xlu0 %416
  %v418 = vsel %vm408, %v407, -inf
  %419 = vmax.xlane.f32.xlu0 %v418
  %v420 = vpop.xlane.xlu0 %419
  %v421 = vsub.f32 %v404, %v411
  %v422 = vsub.f32 %v405, %v414
  %v423 = vsub.f32 %v406, %v417
  %v424 = vsub.f32 %v407, %v420
  %v425 = vmul.f32 %v421, 1.442695
  %v426 = vpow.pop %v425
  %v427 = vmul.f32 %v422, 1.442695
  %v428 = vpow.pop %v427
  %v429 = vmul.f32 %v423, 1.442695
  %v430 = vpow.pop %v429
  %v431 = vmul.f32 %v424, 1.442695
  %v432 = vpow.pop %v431
  %v433 = vsel %vm408, %v426, 0.0
  %434 = vadd.xlane.f32.xlu0 %v433
  %v435 = vpop.xlane.xlu0 %434
  %v436 = vsel %vm408, %v428, 0.0
  %437 = vadd.xlane.f32.xlu0 %v436
  %v438 = vpop.xlane.xlu0 %437
  %v439 = vsel %vm408, %v430, 0.0
  %440 = vadd.xlane.f32.xlu0 %v439
  %v441 = vpop.xlane.xlu0 %440
  %v442 = vsel %vm408, %v432, 0.0
  %443 = vadd.xlane.f32.xlu0 %v442
  %v444 = vpop.xlane.xlu0 %443
  %v445 = vrcp.pop %v435
  %v446 = vrcp.pop %v438
  %v447 = vrcp.pop %v441
  %v448 = vrcp.pop %v444
  %v449 = vmul.f32 %v426, %v445
  %v450 = vmul.f32 %v428, %v446
  %v451 = vmul.f32 %v430, %v447
  %v452 = vmul.f32 %v432, %v448
  %v453 = vld [vmem:[%s4] sm:$0x1]
  %v454 = vpack.c.bf16 %v450, %v449
  %v455 = vpack.c.bf16 %v248, %v245
  %v457 = vsel %vm408, %v454, 0
  %459 = vmatprep.subr.bf16.mxu0 0
  %460 = vmatpush1.bf16.msra.mxu0 0
  %461 = vmatprep.subr.bf16.mxu0 0
  %462 = vmatpush1.bf16.msra.mxu0 0
  %463 = vmatprep.subr.bf16.mxu0 0
  %464 = vmatpush1.bf16.msra.mxu0 0
  %465 = vmatprep.subr.bf16.mxu0 0
  %466 = vmatpush1.bf16.msra.mxu0 0
  %467 = vmatprep.subr.bf16.mxu0 0
  %468 = vmatpush1.bf16.msra.mxu0 0
  %469 = vmatprep.subr.bf16.mxu0 0
  %470 = vmatpush1.bf16.msra.mxu0 0
  %471 = vmatprep.subr.bf16.mxu0 0
  %472 = vmatpush1.bf16.msra.mxu0 0
  %473 = vmatprep.subr.bf16.mxu0 0
  %474 = vmatpush1.bf16.msra.mxu0 %v455
  %475 = vmatprep.subr.bf16.mxu0 0
  %476 = vmatpush2.bf16.msra.mxu0 0
  %477 = vmatprep.subr.bf16.mxu0 0
  %478 = vmatpush2.bf16.msra.mxu0 0
  %479 = vmatprep.subr.bf16.mxu0 0
  %480 = vmatpush2.bf16.msra.mxu0 0
  %481 = vmatprep.subr.bf16.mxu0 0
  %482 = vmatpush2.bf16.msra.mxu0 0
  %483 = vmatprep.subr.bf16.mxu0 0
  %484 = vmatpush2.bf16.msra.mxu0 0
  %485 = vmatprep.subr.bf16.mxu0 0
  %486 = vmatpush2.bf16.msra.mxu0 0
  %487 = vmatprep.subr.bf16.mxu0 0
  %488 = vmatpush2.bf16.msra.mxu0 0
  %489 = vmatprep.subr.bf16.mxu0 0
  %490 = vmatpush2.bf16.msra.mxu0 0
  %491 = vmatprep.mubr.bf16.mxu0 0
  %492 = vmatmul.mubr.bf16.gmra.mxu0 %v457
  %v493 = vpop.f32.mrf.mxu0
  %v494 = vadd.f32 0.0, %v493
  %v495 = vpop.f32.mrf.mxu0
  %v496 = vpop.f32.mrf.mxu0
  %v497 = vadd.f32 0.0, %v496
  %v498 = vpop.f32.mrf.mxu0
  %499 = vdwg.mxu0
  %v501 = vlaneseq
  %v502 = vshrl.u32 %v501, 7
  %v503 = vsub.s32 0, %v502
  %v504 = vrot.slane %v453, %v503
  %v506 = vadd.f32 %v504, %v494
  %v507 = vadd.f32 %v504, %v497
  %v508 = vpack.c.bf16 %v452, %v451
  %510 = vrot.lane.b32.xlu0 %v455, 112
  %v511 = vpop.permute.xlu0 %510
  %v514 = vsel %vm408, %v508, 0
  %516 = vmatprep.subr.bf16.mxu0 0
  %517 = vmatpush1.bf16.msra.mxu0 0
  %518 = vmatprep.subr.bf16.mxu0 0
  %519 = vmatpush1.bf16.msra.mxu0 0
  %520 = vmatprep.subr.bf16.mxu0 0
  %521 = vmatpush1.bf16.msra.mxu0 0
  %522 = vmatprep.subr.bf16.mxu0 0
  %523 = vmatpush1.bf16.msra.mxu0 0
  %524 = vmatprep.subr.bf16.mxu0 0
  %525 = vmatpush1.bf16.msra.mxu0 0
  %526 = vmatprep.subr.bf16.mxu0 0
  %527 = vmatpush1.bf16.msra.mxu0 0
  %528 = vmatprep.subr.bf16.mxu0 0
  %529 = vmatpush1.bf16.msra.mxu0 0
  %530 = vmatprep.subr.bf16.mxu0 0
  %531 = vmatpush1.bf16.msra.mxu0 %v511
  %532 = vmatprep.subr.bf16.mxu0 0
  %533 = vmatpush2.bf16.msra.mxu0 0
  %534 = vmatprep.subr.bf16.mxu0 0
  %535 = vmatpush2.bf16.msra.mxu0 0
  %536 = vmatprep.subr.bf16.mxu0 0
  %537 = vmatpush2.bf16.msra.mxu0 0
  %538 = vmatprep.subr.bf16.mxu0 0
  %539 = vmatpush2.bf16.msra.mxu0 0
  %540 = vmatprep.subr.bf16.mxu0 0
  %541 = vmatpush2.bf16.msra.mxu0 0
  %542 = vmatprep.subr.bf16.mxu0 0
  %543 = vmatpush2.bf16.msra.mxu0 0
  %544 = vmatprep.subr.bf16.mxu0 0
  %545 = vmatpush2.bf16.msra.mxu0 0
  %546 = vmatprep.subr.bf16.mxu0 0
  %547 = vmatpush2.bf16.msra.mxu0 0
  %548 = vmatprep.mubr.bf16.mxu0 0
  %549 = vmatmul.mubr.bf16.gmra.mxu0 %v514
  %v550 = vpop.f32.mrf.mxu0
  %v551 = vadd.f32 0.0, %v550
  %v552 = vpop.f32.mrf.mxu0
  %v553 = vpop.f32.mrf.mxu0
  %v554 = vadd.f32 0.0, %v553
  %v555 = vpop.f32.mrf.mxu0
  %556 = vdwg.mxu0
  %v557 = vadd.f32 %v506, %v551
  %v558 = vadd.f32 %v507, %v554
  %v559 = vld [vmem:[%s5] sm:$0x1]
  %v561 = vlaneseq
  %v562 = vshrl.u32 %v561, 7
  %v563 = vsub.s32 0, %v562
  %v564 = vrot.slane %v559, %v563
  %v566 = vmul.f32 %v557, %v564
  %v567 = vmul.f32 %v558, %v564
  %v568 = vsel %vm408, %v566, 0.0
  %569 = vadd.xlane.f32.xlu0 %v568
  %v570 = vpop.xlane.xlu0 %569
  %v571 = vsel %vm408, %v567, 0.0
  %572 = vadd.xlane.f32.xlu0 %v571
  %v573 = vpop.xlane.xlu0 %572
  %v574 = vsel %vm408, %v93, 0
  %576 = vmatprep.subr.mxu0 0.0
  %577 = vmatpush1.msra.mxu0 0.0
  %578 = vmatprep.subr.mxu0 0.0
  %579 = vmatpush1.msra.mxu0 0.0
  %580 = vmatprep.subr.mxu0 0.0
  %581 = vmatpush1.msra.mxu0 0.0
  %582 = vmatprep.subr.mxu0 0.0
  %583 = vmatpush1.msra.mxu0 0.0
  %584 = vmatprep.subr.mxu0 0.0
  %585 = vmatpush1.msra.mxu0 0.0
  %586 = vmatprep.subr.mxu0 0.0
  %587 = vmatpush1.msra.mxu0 0.0
  %588 = vmatprep.subr.mxu0 0.0
  %589 = vmatpush1.msra.mxu0 0.0
  %590 = vmatprep.subr.mxu0 0.0
  %591 = vmatpush1.msra.mxu0 0.0
  %592 = vmatprep.subr.mxu0 0.0
  %593 = vmatpush1.msra.mxu0 0.0
  %594 = vmatprep.subr.mxu0 0.0
  %595 = vmatpush1.msra.mxu0 0.0
  %596 = vmatprep.subr.mxu0 0.0
  %597 = vmatpush1.msra.mxu0 0.0
  %598 = vmatprep.subr.mxu0 0.0
  %599 = vmatpush1.msra.mxu0 0.0
  %600 = vmatprep.subr.mxu0 0.0
  %601 = vmatpush1.msra.mxu0 0.0
  %602 = vmatprep.subr.mxu0 0.0
  %603 = vmatpush1.msra.mxu0 0.0
  %604 = vmatprep.subr.mxu0 0.0
  %605 = vmatpush1.msra.mxu0 1.0
  %606 = vmatprep.subr.mxu0 0.0
  %607 = vmatpush1.msra.mxu0 1.0
  %608 = vmatprep.subr.mxu0 0.0
  %609 = vmatpush2.msra.mxu0 0.0
  %610 = vmatprep.subr.mxu0 0.0
  %611 = vmatpush2.msra.mxu0 0.0
  %612 = vmatprep.subr.mxu0 0.0
  %613 = vmatpush2.msra.mxu0 0.0
  %614 = vmatprep.subr.mxu0 0.0
  %615 = vmatpush2.msra.mxu0 0.0
  %616 = vmatprep.subr.mxu0 0.0
  %617 = vmatpush2.msra.mxu0 0.0
  %618 = vmatprep.subr.mxu0 0.0
  %619 = vmatpush2.msra.mxu0 0.0
  %620 = vmatprep.subr.mxu0 0.0
  %621 = vmatpush2.msra.mxu0 0.0
  %622 = vmatprep.subr.mxu0 0.0
  %623 = vmatpush2.msra.mxu0 0.0
  %624 = vmatprep.subr.mxu0 0.0
  %625 = vmatpush2.msra.mxu0 0.0
  %626 = vmatprep.subr.mxu0 0.0
  %627 = vmatpush2.msra.mxu0 0.0
  %628 = vmatprep.subr.mxu0 0.0
  %629 = vmatpush2.msra.mxu0 0.0
  %630 = vmatprep.subr.mxu0 0.0
  %631 = vmatpush2.msra.mxu0 0.0
  %632 = vmatprep.subr.mxu0 0.0
  %633 = vmatpush2.msra.mxu0 0.0
  %634 = vmatprep.subr.mxu0 0.0
  %635 = vmatpush2.msra.mxu0 0.0
  %636 = vmatprep.subr.mxu0 0.0
  %637 = vmatpush2.msra.mxu0 0.0
  %638 = vmatprep.subr.mxu0 0.0
  %639 = vmatpush2.msra.mxu0 0.0
  %640 = vmatprep.mubr.f32.mxu0 0.0
  %641 = vmatmul.mubr.f32.gmra.mxu0 %v574
  %v642 = vpop.f32.mrf.mxu0
  %v643 = vadd.f32 0.0, %v642
  %v644 = vpop.f32.mrf.mxu0
  %645 = vdwg.mxu0
  %v646 = vmul.f32 %v643, 0.5
  %v647 = vceil.f32 %v646
  %v649 = vsel %vm116, %v647, 0
  %651 = vmatprep.subr.mxu0 0.0
  %652 = vmatpush1.msra.mxu0 0.0
  %653 = vmatprep.subr.mxu0 0.0
  %654 = vmatpush1.msra.mxu0 0.0
  %655 = vmatprep.subr.mxu0 0.0
  %656 = vmatpush1.msra.mxu0 0.0
  %657 = vmatprep.subr.mxu0 0.0
  %658 = vmatpush1.msra.mxu0 0.0
  %659 = vmatprep.subr.mxu0 0.0
  %660 = vmatpush1.msra.mxu0 0.0
  %661 = vmatprep.subr.mxu0 0.0
  %662 = vmatpush1.msra.mxu0 0.0
  %663 = vmatprep.subr.mxu0 0.0
  %664 = vmatpush1.msra.mxu0 0.0
  %665 = vmatprep.subr.mxu0 0.0
  %666 = vmatpush1.msra.mxu0 0.0
  %667 = vmatprep.subr.mxu0 0.0
  %668 = vmatpush1.msra.mxu0 0.0
  %669 = vmatprep.subr.mxu0 0.0
  %670 = vmatpush1.msra.mxu0 0.0
  %671 = vmatprep.subr.mxu0 0.0
  %672 = vmatpush1.msra.mxu0 0.0
  %673 = vmatprep.subr.mxu0 0.0
  %674 = vmatpush1.msra.mxu0 0.0
  %675 = vmatprep.subr.mxu0 0.0
  %676 = vmatpush1.msra.mxu0 0.0
  %677 = vmatprep.subr.mxu0 0.0
  %678 = vmatpush1.msra.mxu0 0.0
  %679 = vmatprep.subr.mxu0 0.0
  %680 = vmatpush1.msra.mxu0 0.0
  %681 = vmatprep.subr.mxu0 0.0
  %682 = vmatpush1.msra.mxu0 %v649
  %683 = vmatprep.subr.mxu0 0.0
  %684 = vmatpush2.msra.mxu0 0.0
  %685 = vmatprep.subr.mxu0 0.0
  %686 = vmatpush2.msra.mxu0 0.0
  %687 = vmatprep.subr.mxu0 0.0
  %688 = vmatpush2.msra.mxu0 0.0
  %689 = vmatprep.subr.mxu0 0.0
  %690 = vmatpush2.msra.mxu0 0.0
  %691 = vmatprep.subr.mxu0 0.0
  %692 = vmatpush2.msra.mxu0 0.0
  %693 = vmatprep.subr.mxu0 0.0
  %694 = vmatpush2.msra.mxu0 0.0
  %695 = vmatprep.subr.mxu0 0.0
  %696 = vmatpush2.msra.mxu0 0.0
  %697 = vmatprep.subr.mxu0 0.0
  %698 = vmatpush2.msra.mxu0 0.0
  %699 = vmatprep.subr.mxu0 0.0
  %700 = vmatpush2.msra.mxu0 0.0
  %701 = vmatprep.subr.mxu0 0.0
  %702 = vmatpush2.msra.mxu0 0.0
  %703 = vmatprep.subr.mxu0 0.0
  %704 = vmatpush2.msra.mxu0 0.0
  %705 = vmatprep.subr.mxu0 0.0
  %706 = vmatpush2.msra.mxu0 0.0
  %707 = vmatprep.subr.mxu0 0.0
  %708 = vmatpush2.msra.mxu0 0.0
  %709 = vmatprep.subr.mxu0 0.0
  %710 = vmatpush2.msra.mxu0 0.0
  %711 = vmatprep.subr.mxu0 0.0
  %712 = vmatpush2.msra.mxu0 0.0
  %713 = vmatprep.subr.mxu0 0.0
  %714 = vmatpush2.msra.mxu0 0.0
  %715 = vmatprep.mubr.f32.mxu0 0.0
  %716 = vmatmul.mubr.f32.gmra.mxu0 %v111
  %v717 = vpop.f32.mrf.mxu0
  %v718 = vadd.f32 0.0, %v717
  %v719 = vpop.f32.mrf.mxu0
  %720 = vmatprep.mubr.f32.mxu0 0.0
  %721 = vmatmul.mubr.f32.gmra.mxu0 %v114
  %v722 = vpop.f32.mrf.mxu0
  %v723 = vadd.f32 0.0, %v722
  %v724 = vpop.f32.mrf.mxu0
  %725 = vdwg.mxu0
  %726 = vxpose.xlu0.b32.start [1/16] %v570, 128
  %727 = vxpose.xlu0.b32.cont [2/16] %v573, 128
  %728 = vxpose.xlu0.b32.cont [3/16] 0.0, 128
  %729 = vxpose.xlu0.b32.cont [4/16] 0.0, 128
  %730 = vxpose.xlu0.b32.cont [5/16] 0.0, 128
  %731 = vxpose.xlu0.b32.cont [6/16] 0.0, 128
  %732 = vxpose.xlu0.b32.cont [7/16] 0.0, 128
  %733 = vxpose.xlu0.b32.cont [8/16] 0.0, 128
  %734 = vxpose.xlu0.b32.cont [9/16] 0.0, 128
  %735 = vxpose.xlu0.b32.cont [10/16] 0.0, 128
  %736 = vxpose.xlu0.b32.cont [11/16] 0.0, 128
  %737 = vxpose.xlu0.b32.cont [12/16] 0.0, 128
  %738 = vxpose.xlu0.b32.cont [13/16] 0.0, 128
  %739 = vxpose.xlu0.b32.cont [14/16] 0.0, 128
  %740 = vxpose.xlu0.b32.cont [15/16] 0.0, 128
  %741 = vxpose.xlu0.b32.end [16/16] 0.0, 128
  %v742 = vpop.trf.xlu0
  %v743 = vpop.trf.xlu0
  %v744 = vpop.trf.xlu0
  %v745 = vpop.trf.xlu0
  %v746 = vpop.trf.xlu0
  %v747 = vpop.trf.xlu0
  %v748 = vpop.trf.xlu0
  %v749 = vpop.trf.xlu0
  %v750 = vpop.trf.xlu0
  %v751 = vpop.trf.xlu0
  %v752 = vpop.trf.xlu0
  %v753 = vpop.trf.xlu0
  %v754 = vpop.trf.xlu0
  %v755 = vpop.trf.xlu0
  %v756 = vpop.trf.xlu0
  %v757 = vpop.trf.xlu0
  %v758 = vlaneseq
  %v759 = vshrl.u32 %v758, 7
  %v760 = vsub.s32 0, %v759
  %v761 = vrot.slane %v742, %v760
  %vm762 = vcmp.gt.f32.partialorder %v761, %v570
  %vm763 = vcmp.gt.f32.partialorder %v761, %v573
  %vm764 = vcmp.eq.f32.partialorder %v761, %v570
  %vm765 = vcmp.eq.f32.partialorder %v761, %v573
  %vm766 = vmand %vm764, %vm75
  %vm767 = vmand %vm765, %vm76
  %vm768 = vmor %vm762, %vm766
  %vm769 = vmor %vm763, %vm767
  %770 = vxpose.xlu0.b32.start [1/16] 1.0, 128
  %771 = vxpose.xlu0.b32.cont [2/16] 1.0, 128
  %772 = vxpose.xlu0.b32.cont [3/16] 0.0, 128
  %773 = vxpose.xlu0.b32.cont [4/16] 0.0, 128
  %774 = vxpose.xlu0.b32.cont [5/16] 0.0, 128
  %775 = vxpose.xlu0.b32.cont [6/16] 0.0, 128
  %776 = vxpose.xlu0.b32.cont [7/16] 0.0, 128
  %777 = vxpose.xlu0.b32.cont [8/16] 0.0, 128
  %778 = vxpose.xlu0.b32.cont [9/16] 0.0, 128
  %779 = vxpose.xlu0.b32.cont [10/16] 0.0, 128
  %780 = vxpose.xlu0.b32.cont [11/16] 0.0, 128
  %781 = vxpose.xlu0.b32.cont [12/16] 0.0, 128
  %782 = vxpose.xlu0.b32.cont [13/16] 0.0, 128
  %783 = vxpose.xlu0.b32.cont [14/16] 0.0, 128
  %784 = vxpose.xlu0.b32.cont [15/16] 0.0, 128
  %785 = vxpose.xlu0.b32.end [16/16] 0.0, 128
  %v786 = vpop.trf.xlu0
  %v787 = vpop.trf.xlu0
  %v788 = vpop.trf.xlu0
  %v789 = vpop.trf.xlu0
  %v790 = vpop.trf.xlu0
  %v791 = vpop.trf.xlu0
  %v792 = vpop.trf.xlu0
  %v793 = vpop.trf.xlu0
  %v794 = vpop.trf.xlu0
  %v795 = vpop.trf.xlu0
  %v796 = vpop.trf.xlu0
  %v797 = vpop.trf.xlu0
  %v798 = vpop.trf.xlu0
  %v799 = vpop.trf.xlu0
  %v800 = vpop.trf.xlu0
  %v801 = vpop.trf.xlu0
  %v802 = vlaneseq
  %v803 = vshrl.u32 %v802, 7
  %v804 = vsub.s32 0, %v803
  %v805 = vrot.slane %v786, %v804
  %v806 = vmul.f32 %v187, %v805
  %v807 = vmul.f32 %v192, %v805
  %v808 = vsel %vm768, 1, 0
  %v809 = vsel %vm769, 1, 0
  %v810 = vcvt.s32.f32 %v808
  %v811 = vcvt.s32.f32 %v809
  %v812 = vmul.f32 %v806, %v810
  %v813 = vmul.f32 %v807, %v811
  %v814 = vsel %vm408, %v812, 0.0
  %815 = vadd.xlane.f32.xlu0 %v814
  %v816 = vpop.xlane.xlu0 %815
  %v817 = vsel %vm408, %v813, 0.0
  %818 = vadd.xlane.f32.xlu0 %v817
  %v819 = vpop.xlane.xlu0 %818
  %vm820 = vcmp.lt.f32.partialorder %v816, %v718
  %vm821 = vcmp.lt.f32.partialorder %v819, %v723
  %v822 = vsel %vm820, 1, 0
  %v823 = vsel %vm821, 1, 0
  %v824 = vcvt.s32.f32 %v822
  %v825 = vcvt.s32.f32 %v823
  %v826 = vtanh.pop %v570
  %v827 = vtanh.pop %v573
  %v828 = vmul.f32 %v557, %v826
  %v829 = vmul.f32 %v558, %v827
  %831 = vset.pattern.permute.xlu0 0
  %832 = vperm.xlu0 %831, %v824
  %v833 = vpop.permute.xlu0 %832
  %836 = vset.pattern.permute.xlu0 0
  %837 = vperm.xlu0 %836, %v825
  %v838 = vpop.permute.xlu0 %837
  %v840 = vmul.f32 %v828, %v833
  %v841 = vmul.f32 %v829, %v838
  %v842 = vmul.f32 %v64, %v833
  %v843 = vmul.f32 %v65, %v838
  %844 = vxpose.xlu0.b32.start [1/16] %v824, 128
  %845 = vxpose.xlu0.b32.cont [2/16] %v825, 128
  %846 = vxpose.xlu0.b32.cont [3/16] 0.0, 128
  %847 = vxpose.xlu0.b32.cont [4/16] 0.0, 128
  %848 = vxpose.xlu0.b32.cont [5/16] 0.0, 128
  %849 = vxpose.xlu0.b32.cont [6/16] 0.0, 128
  %850 = vxpose.xlu0.b32.cont [7/16] 0.0, 128
  %851 = vxpose.xlu0.b32.cont [8/16] 0.0, 128
  %852 = vxpose.xlu0.b32.cont [9/16] 0.0, 128
  %853 = vxpose.xlu0.b32.cont [10/16] 0.0, 128
  %854 = vxpose.xlu0.b32.cont [11/16] 0.0, 128
  %855 = vxpose.xlu0.b32.cont [12/16] 0.0, 128
  %856 = vxpose.xlu0.b32.cont [13/16] 0.0, 128
  %857 = vxpose.xlu0.b32.cont [14/16] 0.0, 128
  %858 = vxpose.xlu0.b32.cont [15/16] 0.0, 128
  %859 = vxpose.xlu0.b32.end [16/16] 0.0, 128
  %v860 = vpop.trf.xlu0
  %v861 = vpop.trf.xlu0
  %v862 = vpop.trf.xlu0
  %v863 = vpop.trf.xlu0
  %v864 = vpop.trf.xlu0
  %v865 = vpop.trf.xlu0
  %v866 = vpop.trf.xlu0
  %v867 = vpop.trf.xlu0
  %v868 = vpop.trf.xlu0
  %v869 = vpop.trf.xlu0
  %v870 = vpop.trf.xlu0
  %v871 = vpop.trf.xlu0
  %v872 = vpop.trf.xlu0
  %v873 = vpop.trf.xlu0
  %v874 = vpop.trf.xlu0
  %v875 = vpop.trf.xlu0
  %v876 = vlaneseq
  %v877 = vshrl.u32 %v876, 7
  %v878 = vsub.s32 0, %v877
  %v879 = vrot.slane %v860, %v878
  %v880 = vmul.f32 %v842, %v879
  %v881 = vmul.f32 %v843, %v879
  %882 = vmatprep.subr.mxu0 0.0
  %883 = vmatpush1.msra.mxu0 0.0
  %884 = vmatprep.subr.mxu0 0.0
  %885 = vmatpush1.msra.mxu0 0.0
  %886 = vmatprep.subr.mxu0 0.0
  %887 = vmatpush1.msra.mxu0 0.0
  %888 = vmatprep.subr.mxu0 0.0
  %889 = vmatpush1.msra.mxu0 0.0
  %890 = vmatprep.subr.mxu0 0.0
  %891 = vmatpush1.msra.mxu0 0.0
  %892 = vmatprep.subr.mxu0 0.0
  %893 = vmatpush1.msra.mxu0 0.0
  %894 = vmatprep.subr.mxu0 0.0
  %895 = vmatpush1.msra.mxu0 0.0
  %896 = vmatprep.subr.mxu0 0.0
  %897 = vmatpush1.msra.mxu0 0.0
  %898 = vmatprep.subr.mxu0 0.0
  %899 = vmatpush1.msra.mxu0 0.0
  %900 = vmatprep.subr.mxu0 0.0
  %901 = vmatpush1.msra.mxu0 0.0
  %902 = vmatprep.subr.mxu0 0.0
  %903 = vmatpush1.msra.mxu0 0.0
  %904 = vmatprep.subr.mxu0 0.0
  %905 = vmatpush1.msra.mxu0 0.0
  %906 = vmatprep.subr.mxu0 0.0
  %907 = vmatpush1.msra.mxu0 0.0
  %908 = vmatprep.subr.mxu0 0.0
  %909 = vmatpush1.msra.mxu0 0.0
  %910 = vmatprep.subr.mxu0 0.0
  %911 = vmatpush1.msra.mxu0 %v825
  %912 = vmatprep.subr.mxu0 0.0
  %913 = vmatpush1.msra.mxu0 %v824
  %914 = vmatprep.subr.mxu0 0.0
  %915 = vmatpush2.msra.mxu0 0.0
  %916 = vmatprep.subr.mxu0 0.0
  %917 = vmatpush2.msra.mxu0 0.0
  %918 = vmatprep.subr.mxu0 0.0
  %919 = vmatpush2.msra.mxu0 0.0
  %920 = vmatprep.subr.mxu0 0.0
  %921 = vmatpush2.msra.mxu0 0.0
  %922 = vmatprep.subr.mxu0 0.0
  %923 = vmatpush2.msra.mxu0 0.0
  %924 = vmatprep.subr.mxu0 0.0
  %925 = vmatpush2.msra.mxu0 0.0
  %926 = vmatprep.subr.mxu0 0.0
  %927 = vmatpush2.msra.mxu0 0.0
  %928 = vmatprep.subr.mxu0 0.0
  %929 = vmatpush2.msra.mxu0 0.0
  %930 = vmatprep.subr.mxu0 0.0
  %931 = vmatpush2.msra.mxu0 0.0
  %932 = vmatprep.subr.mxu0 0.0
  %933 = vmatpush2.msra.mxu0 0.0
  %934 = vmatprep.subr.mxu0 0.0
  %935 = vmatpush2.msra.mxu0 0.0
  %936 = vmatprep.subr.mxu0 0.0
  %937 = vmatpush2.msra.mxu0 0.0
  %938 = vmatprep.subr.mxu0 0.0
  %939 = vmatpush2.msra.mxu0 0.0
  %940 = vmatprep.subr.mxu0 0.0
  %941 = vmatpush2.msra.mxu0 0.0
  %942 = vmatprep.subr.mxu0 0.0
  %943 = vmatpush2.msra.mxu0 0.0
  %944 = vmatprep.subr.mxu0 0.0
  %945 = vmatpush2.msra.mxu0 0.0
  %946 = vmatprep.mubr.f32.mxu0 0.0
  %947 = vmatmul.mubr.f32.gmra.mxu0 %v574
  %v948 = vpop.f32.mrf.mxu0
  %v949 = vadd.f32 0.0, %v948
  %v950 = vpop.f32.mrf.mxu0
  %951 = vdwg.mxu0
  %952 = vmatprep.subr.mxu0 0.0
  %953 = vmatpush1.msra.mxu0 0.0
  %954 = vmatprep.subr.mxu0 0.0
  %955 = vmatpush1.msra.mxu0 0.0
  %956 = vmatprep.subr.mxu0 0.0
  %957 = vmatpush1.msra.mxu0 0.0
  %958 = vmatprep.subr.mxu0 0.0
  %959 = vmatpush1.msra.mxu0 0.0
  %960 = vmatprep.subr.mxu0 0.0
  %961 = vmatpush1.msra.mxu0 0.0
  %962 = vmatprep.subr.mxu0 0.0
  %963 = vmatpush1.msra.mxu0 0.0
  %964 = vmatprep.subr.mxu0 0.0
  %965 = vmatpush1.msra.mxu0 0.0
  %966 = vmatprep.subr.mxu0 0.0
  %967 = vmatpush1.msra.mxu0 0.0
  %968 = vmatprep.subr.mxu0 0.0
  %969 = vmatpush1.msra.mxu0 0.0
  %970 = vmatprep.subr.mxu0 0.0
  %971 = vmatpush1.msra.mxu0 0.0
  %972 = vmatprep.subr.mxu0 0.0
  %973 = vmatpush1.msra.mxu0 0.0
  %974 = vmatprep.subr.mxu0 0.0
  %975 = vmatpush1.msra.mxu0 0.0
  %976 = vmatprep.subr.mxu0 0.0
  %977 = vmatpush1.msra.mxu0 0.0
  %978 = vmatprep.subr.mxu0 0.0
  %979 = vmatpush1.msra.mxu0 0.0
  %980 = vmatprep.subr.mxu0 0.0
  %981 = vmatpush1.msra.mxu0 %v841
  %982 = vmatprep.subr.mxu0 0.0
  %983 = vmatpush1.msra.mxu0 %v840
  %984 = vmatprep.subr.mxu0 0.0
  %985 = vmatpush2.msra.mxu0 0.0
  %986 = vmatprep.subr.mxu0 0.0
  %987 = vmatpush2.msra.mxu0 0.0
  %988 = vmatprep.subr.mxu0 0.0
  %989 = vmatpush2.msra.mxu0 0.0
  %990 = vmatprep.subr.mxu0 0.0
  %991 = vmatpush2.msra.mxu0 0.0
  %992 = vmatprep.subr.mxu0 0.0
  %993 = vmatpush2.msra.mxu0 0.0
  %994 = vmatprep.subr.mxu0 0.0
  %995 = vmatpush2.msra.mxu0 0.0
  %996 = vmatprep.subr.mxu0 0.0
  %997 = vmatpush2.msra.mxu0 0.0
  %998 = vmatprep.subr.mxu0 0.0
  %999 = vmatpush2.msra.mxu0 0.0
  %1000 = vmatprep.subr.mxu0 0.0
  %1001 = vmatpush2.msra.mxu0 0.0
  %1002 = vmatprep.subr.mxu0 0.0
  %1003 = vmatpush2.msra.mxu0 0.0
  %1004 = vmatprep.subr.mxu0 0.0
  %1005 = vmatpush2.msra.mxu0 0.0
  %1006 = vmatprep.subr.mxu0 0.0
  %1007 = vmatpush2.msra.mxu0 0.0
  %1008 = vmatprep.subr.mxu0 0.0
  %1009 = vmatpush2.msra.mxu0 0.0
  %1010 = vmatprep.subr.mxu0 0.0
  %1011 = vmatpush2.msra.mxu0 0.0
  %1012 = vmatprep.subr.mxu0 0.0
  %1013 = vmatpush2.msra.mxu0 0.0
  %1014 = vmatprep.subr.mxu0 0.0
  %1015 = vmatpush2.msra.mxu0 0.0
  %1016 = vmatprep.mubr.f32.mxu0 0.0
  %1017 = vmatmul.mubr.f32.gmra.mxu0 %v574
  %v1018 = vpop.f32.mrf.mxu0
  %v1019 = vadd.f32 0.0, %v1018
  %v1020 = vpop.f32.mrf.mxu0
  %1021 = vdwg.mxu0
  %v1022 = vmax.f32 %v949, 1.0
  %v1023 = vrcp.pop %v1022
  %1025 = vset.pattern.permute.xlu0 0
  %1026 = vperm.xlu0 %1025, %v1023
  %v1027 = vpop.permute.xlu0 %1026
  %v1029 = vmul.f32 %v1019, %v1027
  %v1030 = vmul.f32 %v833, %v66
  %v1031 = vmul.f32 %v838, %v67
  %1032 = vxpose.xlu0.b32.start [1/16] %v1030, 128
  %1033 = vxpose.xlu0.b32.cont [2/16] %v1031, 128
  %1034 = vxpose.xlu0.b32.cont [3/16] 0.0, 128
  %1035 = vxpose.xlu0.b32.cont [4/16] 0.0, 128
  %1036 = vxpose.xlu0.b32.cont [5/16] 0.0, 128
  %1037 = vxpose.xlu0.b32.cont [6/16] 0.0, 128
  %1038 = vxpose.xlu0.b32.cont [7/16] 0.0, 128
  %1039 = vxpose.xlu0.b32.cont [8/16] 0.0, 128
  %1040 = vxpose.xlu0.b32.cont [9/16] 0.0, 128
  %1041 = vxpose.xlu0.b32.cont [10/16] 0.0, 128
  %1042 = vxpose.xlu0.b32.cont [11/16] 0.0, 128
  %1043 = vxpose.xlu0.b32.cont [12/16] 0.0, 128
  %1044 = vxpose.xlu0.b32.cont [13/16] 0.0, 128
  %1045 = vxpose.xlu0.b32.cont [14/16] 0.0, 128
  %1046 = vxpose.xlu0.b32.cont [15/16] 0.0, 128
  %1047 = vxpose.xlu0.b32.end [16/16] 0.0, 128
  %v1048 = vpop.trf.xlu0
  %v1049 = vpop.trf.xlu0
  %v1050 = vpop.trf.xlu0
  %v1051 = vpop.trf.xlu0
  %v1052 = vpop.trf.xlu0
  %v1053 = vpop.trf.xlu0
  %v1054 = vpop.trf.xlu0
  %v1055 = vpop.trf.xlu0
  %v1056 = vpop.trf.xlu0
  %v1057 = vpop.trf.xlu0
  %v1058 = vpop.trf.xlu0
  %v1059 = vpop.trf.xlu0
  %v1060 = vpop.trf.xlu0
  %v1061 = vpop.trf.xlu0
  %v1062 = vpop.trf.xlu0
  %v1063 = vpop.trf.xlu0
  %v1066 = vunpack.c.l.s4 1966171168
  %v1067 = vunpack.c.0.s8 %v1066
  %v1068 = vlaneseq
  %v1069 = vshrl.u32 %v1068, 7
  %v1070 = vsub.s32 %v1067, %v1069
  %v1071 = vrot.slane %v1048, %v1070
  %v1072 = vcombine.high %v1071, %v1071
  %v1074 = vunpack.c.l.s4 1966171168
  %v1075 = vunpack.c.0.s8 %v1074
  %v1076 = vlaneseq
  %v1077 = vshrl.u32 %v1076, 7
  %v1078 = vsub.s32 %v1075, %v1077
  %v1079 = vrot.slane %v1071, %v1078
  %v1081 = vunpack.c.l.s4 1966171168
  %v1082 = vunpack.c.0.s8 %v1081
  %v1083 = vlaneseq
  %v1084 = vshrl.u32 %v1083, 7
  %v1085 = vsub.s32 %v1082, %v1084
  %v1086 = vrot.slane %v1072, %v1085
  %vm1089 = vcmp.gt.f32.partialorder %v1079, 0.0
  %vm1090 = vcmp.gt.f32.partialorder %v1086, 0.0
  %1091 = vxpose.xlu0.b32.start [1/16] %v840, 128
  %1092 = vxpose.xlu0.b32.cont [2/16] %v841, 128
  %1093 = vxpose.xlu0.b32.cont [3/16] 0.0, 128
  %1094 = vxpose.xlu0.b32.cont [4/16] 0.0, 128
  %1095 = vxpose.xlu0.b32.cont [5/16] 0.0, 128
  %1096 = vxpose.xlu0.b32.cont [6/16] 0.0, 128
  %1097 = vxpose.xlu0.b32.cont [7/16] 0.0, 128
  %1098 = vxpose.xlu0.b32.cont [8/16] 0.0, 128
  %1099 = vxpose.xlu0.b32.cont [9/16] 0.0, 128
  %1100 = vxpose.xlu0.b32.cont [10/16] 0.0, 128
  %1101 = vxpose.xlu0.b32.cont [11/16] 0.0, 128
  %1102 = vxpose.xlu0.b32.cont [12/16] 0.0, 128
  %1103 = vxpose.xlu0.b32.cont [13/16] 0.0, 128
  %1104 = vxpose.xlu0.b32.cont [14/16] 0.0, 128
  %1105 = vxpose.xlu0.b32.cont [15/16] 0.0, 128
  %1106 = vxpose.xlu0.b32.end [16/16] 0.0, 128
  %v1107 = vpop.trf.xlu0
  %v1108 = vpop.trf.xlu0
  %v1109 = vpop.trf.xlu0
  %v1110 = vpop.trf.xlu0
  %v1111 = vpop.trf.xlu0
  %v1112 = vpop.trf.xlu0
  %v1113 = vpop.trf.xlu0
  %v1114 = vpop.trf.xlu0
  %v1115 = vpop.trf.xlu0
  %v1116 = vpop.trf.xlu0
  %v1117 = vpop.trf.xlu0
  %v1118 = vpop.trf.xlu0
  %v1119 = vpop.trf.xlu0
  %v1120 = vpop.trf.xlu0
  %v1121 = vpop.trf.xlu0
  %v1122 = vpop.trf.xlu0
  %v1123 = vsel %vm1089, 1, 0
  %v1124 = vsel %vm1090, 1, 0
  %v1125 = vlaneseq
  %v1126 = vshrl.u32 %v1125, 7
  %v1127 = vsub.s32 0, %v1126
  %v1128 = vrot.slane %v1123, %v1127
  %v1129 = vlaneseq
  %v1130 = vshrl.u32 %v1129, 7
  %v1131 = vsub.s32 0, %v1130
  %v1132 = vrot.slane %v1124, %v1131
  %vm1133 = vcmp.eq.s32.totalorder %v1128, 1
  %vm1134 = vcmp.eq.s32.totalorder %v1132, 1
  %v1135 = vsel %vm1133, %v1107, -1e+30
  %v1136 = vsel %vm1133, %v1108, -1e+30
  %v1137 = vsel %vm1134, %v1107, -1e+30
  %v1138 = vsel %vm1134, %v1108, -1e+30
  %v1139 = vsel %vm408, %v1135, -inf
  %1140 = vmax.xlane.f32.xlu0 %v1139
  %v1141 = vpop.xlane.xlu0 %1140
  %v1142 = vsel %vm408, %v1136, -inf
  %1143 = vmax.xlane.f32.xlu0 %v1142
  %v1144 = vpop.xlane.xlu0 %1143
  %v1145 = vsel %vm408, %v1137, -inf
  %1146 = vmax.xlane.f32.xlu0 %v1145
  %v1147 = vpop.xlane.xlu0 %1146
  %v1148 = vsel %vm408, %v1138, -inf
  %1149 = vmax.xlane.f32.xlu0 %v1148
  %v1150 = vpop.xlane.xlu0 %1149
  %vm1151 = vcmp.gt.f32.partialorder %v949, 0.0
  %v1152 = vsel %vm1151, 1, 0
  %1153 = vset.pattern.permute.xlu0 0
  %1154 = vperm.xlu0 %1153, %v1152
  %v1155 = vpop.permute.xlu0 %1154
  %vm1156 = vcmp.eq.s32.totalorder %v1155, 1
  %v1161 = vlaneseq
  %v1162 = vshrl.u32 %v1161, 7
  %v1163 = vsub.s32 %v72, %v1162
  %v1164 = vrot.slane %v1141, %v1163
  %v1165 = vadd.s32 %v72, 4294967288
  %v1166 = vlaneseq
  %v1167 = vshrl.u32 %v1166, 7
  %v1168 = vsub.s32 %v1165, %v1167
  %v1169 = vrot.slane %v1144, %v1168
  %vm1170 = vcmask 130112
  %v1171 = vsel %vm1170, %v1169, %v1164
  %v1172 = vlaneseq
  %v1173 = vshrl.u32 %v1172, 7
  %v1174 = vsub.s32 %v72, %v1173
  %v1175 = vrot.slane %v1147, %v1174
  %v1176 = vlaneseq
  %v1177 = vshrl.u32 %v1176, 7
  %v1178 = vsub.s32 %v1165, %v1177
  %v1179 = vrot.slane %v1150, %v1178
  %v1180 = vsel %vm1170, %v1179, %v1175
  %vm1181 = vcmask 1041409
  %v1182 = vsel %vm1181, %v1180, %v1171
  %v1184 = vsel %vm1156, %v1182, 0.0
  %1186 = vrot.lane.b32.xlu0 %v1184, 16
  %v1187 = vpop.permute.xlu0 %1186
  %v1189 = vsel %vm408, %v1029, %v1187
  %v1190 = vadd.f32 %v1189, 0.0
  %vm1191 = vcmp.gt.f32.partialorder %v880, 0.0
  %vm1192 = vcmp.gt.f32.partialorder %v881, 0.0
  %vm1193 = vmor %vm1191, %vm73
  %vm1194 = vmor %vm1192, %vm74
  %v1195 = vld [vmem:[%s6] sm:$0xff]
  %v1196 = vld [vmem:[%s6 + $0x8] sm:$0xff]
  %v1197 = vpack.c.bf16 %v841, %v840
  %v1198 = vpack.c.bf16 %v1196, %v1195
  %v1200 = vsel %vm408, %v1197, 0
  %1202 = vmatprep.subr.bf16.mxu0 0
  %1203 = vmatpush1.bf16.msra.mxu0 0
  %1204 = vmatprep.subr.bf16.mxu0 0
  %1205 = vmatpush1.bf16.msra.mxu0 0
  %1206 = vmatprep.subr.bf16.mxu0 0
  %1207 = vmatpush1.bf16.msra.mxu0 0
  %1208 = vmatprep.subr.bf16.mxu0 0
  %1209 = vmatpush1.bf16.msra.mxu0 0
  %1210 = vmatprep.subr.bf16.mxu0 0
  %1211 = vmatpush1.bf16.msra.mxu0 0
  %1212 = vmatprep.subr.bf16.mxu0 0
  %1213 = vmatpush1.bf16.msra.mxu0 0
  %1214 = vmatprep.subr.bf16.mxu0 0
  %1215 = vmatpush1.bf16.msra.mxu0 0
  %1216 = vmatprep.subr.bf16.mxu0 0
  %1217 = vmatpush1.bf16.msra.mxu0 %v1198
  %1218 = vmatprep.subr.bf16.mxu0 0
  %1219 = vmatpush2.bf16.msra.mxu0 0
  %1220 = vmatprep.subr.bf16.mxu0 0
  %1221 = vmatpush2.bf16.msra.mxu0 0
  %1222 = vmatprep.subr.bf16.mxu0 0
  %1223 = vmatpush2.bf16.msra.mxu0 0
  %1224 = vmatprep.subr.bf16.mxu0 0
  %1225 = vmatpush2.bf16.msra.mxu0 0
  %1226 = vmatprep.subr.bf16.mxu0 0
  %1227 = vmatpush2.bf16.msra.mxu0 0
  %1228 = vmatprep.subr.bf16.mxu0 0
  %1229 = vmatpush2.bf16.msra.mxu0 0
  %1230 = vmatprep.subr.bf16.mxu0 0
  %1231 = vmatpush2.bf16.msra.mxu0 0
  %1232 = vmatprep.subr.bf16.mxu0 0
  %1233 = vmatpush2.bf16.msra.mxu0 0
  %1234 = vmatprep.mubr.bf16.mxu0 0
  %1235 = vmatmul.mubr.bf16.gmra.mxu0 %v1200
  %v1236 = vpop.f32.mrf.mxu0
  %v1237 = vadd.f32 0.0, %v1236
  %v1238 = vpop.f32.mrf.mxu0
  %v1239 = vpop.f32.mrf.mxu0
  %v1240 = vadd.f32 0.0, %v1239
  %v1241 = vpop.f32.mrf.mxu0
  %1242 = vdwg.mxu0
  %1245 = vrot.lane.b32.xlu0 %v1237, 94
  %v1246 = vpop.permute.xlu0 %1245
  %1247 = vrot.lane.b32.xlu0 %v1240, 94
  %v1248 = vpop.permute.xlu0 %1247
  %1251 = vxpose.xlu0.b32.start [1/16] %v1246, 128
  %1252 = vxpose.xlu0.b32.cont [2/16] %v1248, 128
  %1253 = vxpose.xlu0.b32.cont [3/16] 0.0, 128
  %1254 = vxpose.xlu0.b32.cont [4/16] 0.0, 128
  %1255 = vxpose.xlu0.b32.cont [5/16] 0.0, 128
  %1256 = vxpose.xlu0.b32.cont [6/16] 0.0, 128
  %1257 = vxpose.xlu0.b32.cont [7/16] 0.0, 128
  %1258 = vxpose.xlu0.b32.cont [8/16] 0.0, 128
  %1259 = vxpose.xlu0.b32.cont [9/16] 0.0, 128
  %1260 = vxpose.xlu0.b32.cont [10/16] 0.0, 128
  %1261 = vxpose.xlu0.b32.cont [11/16] 0.0, 128
  %1262 = vxpose.xlu0.b32.cont [12/16] 0.0, 128
  %1263 = vxpose.xlu0.b32.cont [13/16] 0.0, 128
  %1264 = vxpose.xlu0.b32.cont [14/16] 0.0, 128
  %1265 = vxpose.xlu0.b32.cont [15/16] 0.0, 128
  %1266 = vxpose.xlu0.b32.end [16/16] 0.0, 128
  %v1267 = vpop.trf.xlu0
  %v1268 = vpop.trf.xlu0
  %v1269 = vpop.trf.xlu0
  %v1270 = vpop.trf.xlu0
  %v1271 = vpop.trf.xlu0
  %v1272 = vpop.trf.xlu0
  %v1273 = vpop.trf.xlu0
  %v1274 = vpop.trf.xlu0
  %v1275 = vpop.trf.xlu0
  %v1276 = vpop.trf.xlu0
  %v1277 = vpop.trf.xlu0
  %v1278 = vpop.trf.xlu0
  %v1279 = vpop.trf.xlu0
  %v1280 = vpop.trf.xlu0
  %v1281 = vpop.trf.xlu0
  %v1282 = vpop.trf.xlu0
  %v1283 = vlaneseq
  %v1284 = vshrl.u32 %v1283, 7
  %v1285 = vsub.s32 0, %v1284
  %v1286 = vrot.slane %v1267, %v1285
  %1288 = vbcast.lane.b32.xlu0 %v1286, 256
  %v1289 = vpop.permute.xlu0 %1288
  %s1291 = sor.u32 256, 8
  %1292 = vbcast.lane.b32.xlu0 %v1286, %s1291
  %v1293 = vpop.permute.xlu0 %1292
  %v1294 = vlaneseq
  %v1295 = vshrl.u32 %v1294, 7
  %v1296 = vsub.s32 1, %v1295
  %v1297 = vrot.slane %v1267, %v1296
  %1299 = vbcast.lane.b32.xlu0 %v1297, 256
  %v1300 = vpop.permute.xlu0 %1299
  %s1302 = sor.u32 256, 8
  %1303 = vbcast.lane.b32.xlu0 %v1297, %s1302
  %v1304 = vpop.permute.xlu0 %1303
  %1305 = vrot.lane.b32.xlu0 %v1237, 96
  %v1306 = vpop.permute.xlu0 %1305
  %1307 = vrot.lane.b32.xlu0 %v1240, 96
  %v1308 = vpop.permute.xlu0 %1307
  %1311 = vxpose.xlu0.b32.start [1/16] %v1306, 128
  %1312 = vxpose.xlu0.b32.cont [2/16] %v1308, 128
  %1313 = vxpose.xlu0.b32.cont [3/16] 0.0, 128
  %1314 = vxpose.xlu0.b32.cont [4/16] 0.0, 128
  %1315 = vxpose.xlu0.b32.cont [5/16] 0.0, 128
  %1316 = vxpose.xlu0.b32.cont [6/16] 0.0, 128
  %1317 = vxpose.xlu0.b32.cont [7/16] 0.0, 128
  %1318 = vxpose.xlu0.b32.cont [8/16] 0.0, 128
  %1319 = vxpose.xlu0.b32.cont [9/16] 0.0, 128
  %1320 = vxpose.xlu0.b32.cont [10/16] 0.0, 128
  %1321 = vxpose.xlu0.b32.cont [11/16] 0.0, 128
  %1322 = vxpose.xlu0.b32.cont [12/16] 0.0, 128
  %1323 = vxpose.xlu0.b32.cont [13/16] 0.0, 128
  %1324 = vxpose.xlu0.b32.cont [14/16] 0.0, 128
  %1325 = vxpose.xlu0.b32.cont [15/16] 0.0, 128
  %1326 = vxpose.xlu0.b32.end [16/16] 0.0, 128
  %v1327 = vpop.trf.xlu0
  %v1328 = vpop.trf.xlu0
  %v1329 = vpop.trf.xlu0
  %v1330 = vpop.trf.xlu0
  %v1331 = vpop.trf.xlu0
  %v1332 = vpop.trf.xlu0
  %v1333 = vpop.trf.xlu0
  %v1334 = vpop.trf.xlu0
  %v1335 = vpop.trf.xlu0
  %v1336 = vpop.trf.xlu0
  %v1337 = vpop.trf.xlu0
  %v1338 = vpop.trf.xlu0
  %v1339 = vpop.trf.xlu0
  %v1340 = vpop.trf.xlu0
  %v1341 = vpop.trf.xlu0
  %v1342 = vpop.trf.xlu0
  %v1345 = vunpack.c.l.s4 1966171168
  %v1346 = vunpack.c.0.s8 %v1345
  %v1347 = vlaneseq
  %v1348 = vshrl.u32 %v1347, 7
  %v1349 = vsub.s32 %v1346, %v1348
  %v1350 = vrot.slane %v1327, %v1349
  %v1351 = vcombine.high %v1350, %v1350
  %v1353 = vunpack.c.l.s4 1966171168
  %v1354 = vunpack.c.0.s8 %v1353
  %v1355 = vlaneseq
  %v1356 = vshrl.u32 %v1355, 7
  %v1357 = vsub.s32 %v1354, %v1356
  %v1358 = vrot.slane %v1350, %v1357
  %v1360 = vunpack.c.l.s4 1966171168
  %v1361 = vunpack.c.0.s8 %v1360
  %v1362 = vlaneseq
  %v1363 = vshrl.u32 %v1362, 7
  %v1364 = vsub.s32 %v1361, %v1363
  %v1365 = vrot.slane %v1351, %v1364
  %v1366 = vlaneseq
  %v1367 = vshrl.u32 %v1366, 7
  %v1368 = vsub.s32 0, %v1367
  %v1369 = vrot.slane %v1358, %v1368
  %v1370 = vlaneseq
  %v1371 = vshrl.u32 %v1370, 7
  %v1372 = vsub.s32 0, %v1371
  %v1373 = vrot.slane %v1365, %v1372
  %v1376 = vadd.f32 %v1289, %v1369
  %v1377 = vadd.f32 %v1293, %v1369
  %v1378 = vadd.f32 %v1300, %v1373
  %v1379 = vadd.f32 %v1304, %v1373
  %vm1380 = vcmp.gt.f32.partialorder %v1376, 0.0
  %vm1381 = vcmp.gt.f32.partialorder %v1377, 0.0
  %vm1382 = vcmp.gt.f32.partialorder %v1378, 0.0
  %vm1383 = vcmp.gt.f32.partialorder %v1379, 0.0
  %v1384 = vmul.f32 %v1376, 0.2
  %v1385 = vmul.f32 %v1377, 0.2
  %v1386 = vmul.f32 %v1378, 0.2
  %v1387 = vmul.f32 %v1379, 0.2
  %v1388 = vsel %vm1380, %v1376, %v1384
  %v1389 = vsel %vm1381, %v1377, %v1385
  %v1390 = vsel %vm1382, %v1378, %v1386
  %v1391 = vsel %vm1383, %v1379, %v1387
  %v1392 = vsel %vm1193, 1, 0
  %v1393 = vsel %vm1194, 1, 0
  %vm1394 = vcmp.eq.s32.totalorder %v1392, 1
  %vm1395 = vcmp.eq.s32.totalorder %v1393, 1
  %v1396 = vsel %vm1394, %v1388, -1e+30
  %v1397 = vsel %vm1395, %v1389, -1e+30
  %v1398 = vsel %vm1394, %v1390, -1e+30
  %v1399 = vsel %vm1395, %v1391, -1e+30
  %v1400 = vsel %vm408, %v1396, -inf
  %1401 = vmax.xlane.f32.xlu0 %v1400
  %v1402 = vpop.xlane.xlu0 %1401
  %v1403 = vsel %vm408, %v1397, -inf
  %1404 = vmax.xlane.f32.xlu0 %v1403
  %v1405 = vpop.xlane.xlu0 %1404
  %v1406 = vsel %vm408, %v1398, -inf
  %1407 = vmax.xlane.f32.xlu0 %v1406
  %v1408 = vpop.xlane.xlu0 %1407
  %v1409 = vsel %vm408, %v1399, -inf
  %1410 = vmax.xlane.f32.xlu0 %v1409
  %v1411 = vpop.xlane.xlu0 %1410
  %v1412 = vsub.f32 %v1396, %v1402
  %v1413 = vsub.f32 %v1397, %v1405
  %v1414 = vsub.f32 %v1398, %v1408
  %v1415 = vsub.f32 %v1399, %v1411
  %v1416 = vmul.f32 %v1412, 1.442695
  %v1417 = vpow.pop %v1416
  %v1418 = vmul.f32 %v1413, 1.442695
  %v1419 = vpow.pop %v1418
  %v1420 = vmul.f32 %v1414, 1.442695
  %v1421 = vpow.pop %v1420
  %v1422 = vmul.f32 %v1415, 1.442695
  %v1423 = vpow.pop %v1422
  %v1424 = vsel %vm408, %v1417, 0.0
  %1425 = vadd.xlane.f32.xlu0 %v1424
  %v1426 = vpop.xlane.xlu0 %1425
  %v1427 = vsel %vm408, %v1419, 0.0
  %1428 = vadd.xlane.f32.xlu0 %v1427
  %v1429 = vpop.xlane.xlu0 %1428
  %v1430 = vsel %vm408, %v1421, 0.0
  %1431 = vadd.xlane.f32.xlu0 %v1430
  %v1432 = vpop.xlane.xlu0 %1431
  %v1433 = vsel %vm408, %v1423, 0.0
  %1434 = vadd.xlane.f32.xlu0 %v1433
  %v1435 = vpop.xlane.xlu0 %1434
  %v1436 = vrcp.pop %v1426
  %v1437 = vrcp.pop %v1429
  %v1438 = vrcp.pop %v1432
  %v1439 = vrcp.pop %v1435
  %v1440 = vmul.f32 %v1417, %v1436
  %v1441 = vmul.f32 %v1419, %v1437
  %v1442 = vmul.f32 %v1421, %v1438
  %v1443 = vmul.f32 %v1423, %v1439
  %v1444 = vld [vmem:[%s7] sm:$0x1]
  %v1445 = vpack.c.bf16 %v1441, %v1440
  %v1446 = vpack.c.bf16 %v1240, %v1237
  %v1448 = vsel %vm408, %v1445, 0
  %1450 = vmatprep.subr.bf16.mxu0 0
  %1451 = vmatpush1.bf16.msra.mxu0 0
  %1452 = vmatprep.subr.bf16.mxu0 0
  %1453 = vmatpush1.bf16.msra.mxu0 0
  %1454 = vmatprep.subr.bf16.mxu0 0
  %1455 = vmatpush1.bf16.msra.mxu0 0
  %1456 = vmatprep.subr.bf16.mxu0 0
  %1457 = vmatpush1.bf16.msra.mxu0 0
  %1458 = vmatprep.subr.bf16.mxu0 0
  %1459 = vmatpush1.bf16.msra.mxu0 0
  %1460 = vmatprep.subr.bf16.mxu0 0
  %1461 = vmatpush1.bf16.msra.mxu0 0
  %1462 = vmatprep.subr.bf16.mxu0 0
  %1463 = vmatpush1.bf16.msra.mxu0 0
  %1464 = vmatprep.subr.bf16.mxu0 0
  %1465 = vmatpush1.bf16.msra.mxu0 %v1446
  %1466 = vmatprep.subr.bf16.mxu0 0
  %1467 = vmatpush2.bf16.msra.mxu0 0
  %1468 = vmatprep.subr.bf16.mxu0 0
  %1469 = vmatpush2.bf16.msra.mxu0 0
  %1470 = vmatprep.subr.bf16.mxu0 0
  %1471 = vmatpush2.bf16.msra.mxu0 0
  %1472 = vmatprep.subr.bf16.mxu0 0
  %1473 = vmatpush2.bf16.msra.mxu0 0
  %1474 = vmatprep.subr.bf16.mxu0 0
  %1475 = vmatpush2.bf16.msra.mxu0 0
  %1476 = vmatprep.subr.bf16.mxu0 0
  %1477 = vmatpush2.bf16.msra.mxu0 0
  %1478 = vmatprep.subr.bf16.mxu0 0
  %1479 = vmatpush2.bf16.msra.mxu0 0
  %1480 = vmatprep.subr.bf16.mxu0 0
  %1481 = vmatpush2.bf16.msra.mxu0 0
  %1482 = vmatprep.mubr.bf16.mxu0 0
  %1483 = vmatmul.mubr.bf16.gmra.mxu0 %v1448
  %v1484 = vpop.f32.mrf.mxu0
  %v1485 = vadd.f32 0.0, %v1484
  %v1486 = vpop.f32.mrf.mxu0
  %v1487 = vpop.f32.mrf.mxu0
  %v1488 = vadd.f32 0.0, %v1487
  %v1489 = vpop.f32.mrf.mxu0
  %1490 = vdwg.mxu0
  %v1492 = vlaneseq
  %v1493 = vshrl.u32 %v1492, 7
  %v1494 = vsub.s32 0, %v1493
  %v1495 = vrot.slane %v1444, %v1494
  %v1497 = vadd.f32 %v1495, %v1485
  %v1498 = vadd.f32 %v1495, %v1488
  %v1499 = vpack.c.bf16 %v1443, %v1442
  %1501 = vrot.lane.b32.xlu0 %v1446, 112
  %v1502 = vpop.permute.xlu0 %1501
  %v1505 = vsel %vm408, %v1499, 0
  %1507 = vmatprep.subr.bf16.mxu0 0
  %1508 = vmatpush1.bf16.msra.mxu0 0
  %1509 = vmatprep.subr.bf16.mxu0 0
  %1510 = vmatpush1.bf16.msra.mxu0 0
  %1511 = vmatprep.subr.bf16.mxu0 0
  %1512 = vmatpush1.bf16.msra.mxu0 0
  %1513 = vmatprep.subr.bf16.mxu0 0
  %1514 = vmatpush1.bf16.msra.mxu0 0
  %1515 = vmatprep.subr.bf16.mxu0 0
  %1516 = vmatpush1.bf16.msra.mxu0 0
  %1517 = vmatprep.subr.bf16.mxu0 0
  %1518 = vmatpush1.bf16.msra.mxu0 0
  %1519 = vmatprep.subr.bf16.mxu0 0
  %1520 = vmatpush1.bf16.msra.mxu0 0
  %1521 = vmatprep.subr.bf16.mxu0 0
  %1522 = vmatpush1.bf16.msra.mxu0 %v1502
  %1523 = vmatprep.subr.bf16.mxu0 0
  %1524 = vmatpush2.bf16.msra.mxu0 0
  %1525 = vmatprep.subr.bf16.mxu0 0
  %1526 = vmatpush2.bf16.msra.mxu0 0
  %1527 = vmatprep.subr.bf16.mxu0 0
  %1528 = vmatpush2.bf16.msra.mxu0 0
  %1529 = vmatprep.subr.bf16.mxu0 0
  %1530 = vmatpush2.bf16.msra.mxu0 0
  %1531 = vmatprep.subr.bf16.mxu0 0
  %1532 = vmatpush2.bf16.msra.mxu0 0
  %1533 = vmatprep.subr.bf16.mxu0 0
  %1534 = vmatpush2.bf16.msra.mxu0 0
  %1535 = vmatprep.subr.bf16.mxu0 0
  %1536 = vmatpush2.bf16.msra.mxu0 0
  %1537 = vmatprep.subr.bf16.mxu0 0
  %1538 = vmatpush2.bf16.msra.mxu0 0
  %1539 = vmatprep.mubr.bf16.mxu0 0
  %1540 = vmatmul.mubr.bf16.gmra.mxu0 %v1505
  %v1541 = vpop.f32.mrf.mxu0
  %v1542 = vadd.f32 0.0, %v1541
  %v1543 = vpop.f32.mrf.mxu0
  %v1544 = vpop.f32.mrf.mxu0
  %v1545 = vadd.f32 0.0, %v1544
  %v1546 = vpop.f32.mrf.mxu0
  %1547 = vdwg.mxu0
  %v1548 = vadd.f32 %v1497, %v1542
  %v1549 = vadd.f32 %v1498, %v1545
  %v1550 = vld [vmem:[%s8] sm:$0x1]
  %v1552 = vlaneseq
  %v1553 = vshrl.u32 %v1552, 7
  %v1554 = vsub.s32 0, %v1553
  %v1555 = vrot.slane %v1550, %v1554
  %v1557 = vmul.f32 %v1548, %v1555
  %v1558 = vmul.f32 %v1549, %v1555
  %v1559 = vsel %vm408, %v1557, 0.0
  %1560 = vadd.xlane.f32.xlu0 %v1559
  %v1561 = vpop.xlane.xlu0 %1560
  %v1562 = vsel %vm408, %v1558, 0.0
  %1563 = vadd.xlane.f32.xlu0 %v1562
  %v1564 = vpop.xlane.xlu0 %1563
  %v1565 = vmul.f32 %v949, 0.5
  %v1566 = vceil.f32 %v1565
  %v1568 = vsel %vm116, %v1566, 0
  %1570 = vmatprep.subr.mxu0 0.0
  %1571 = vmatpush1.msra.mxu0 0.0
  %1572 = vmatprep.subr.mxu0 0.0
  %1573 = vmatpush1.msra.mxu0 0.0
  %1574 = vmatprep.subr.mxu0 0.0
  %1575 = vmatpush1.msra.mxu0 0.0
  %1576 = vmatprep.subr.mxu0 0.0
  %1577 = vmatpush1.msra.mxu0 0.0
  %1578 = vmatprep.subr.mxu0 0.0
  %1579 = vmatpush1.msra.mxu0 0.0
  %1580 = vmatprep.subr.mxu0 0.0
  %1581 = vmatpush1.msra.mxu0 0.0
  %1582 = vmatprep.subr.mxu0 0.0
  %1583 = vmatpush1.msra.mxu0 0.0
  %1584 = vmatprep.subr.mxu0 0.0
  %1585 = vmatpush1.msra.mxu0 0.0
  %1586 = vmatprep.subr.mxu0 0.0
  %1587 = vmatpush1.msra.mxu0 0.0
  %1588 = vmatprep.subr.mxu0 0.0
  %1589 = vmatpush1.msra.mxu0 0.0
  %1590 = vmatprep.subr.mxu0 0.0
  %1591 = vmatpush1.msra.mxu0 0.0
  %1592 = vmatprep.subr.mxu0 0.0
  %1593 = vmatpush1.msra.mxu0 0.0
  %1594 = vmatprep.subr.mxu0 0.0
  %1595 = vmatpush1.msra.mxu0 0.0
  %1596 = vmatprep.subr.mxu0 0.0
  %1597 = vmatpush1.msra.mxu0 0.0
  %1598 = vmatprep.subr.mxu0 0.0
  %1599 = vmatpush1.msra.mxu0 0.0
  %1600 = vmatprep.subr.mxu0 0.0
  %1601 = vmatpush1.msra.mxu0 %v1568
  %1602 = vmatprep.subr.mxu0 0.0
  %1603 = vmatpush2.msra.mxu0 0.0
  %1604 = vmatprep.subr.mxu0 0.0
  %1605 = vmatpush2.msra.mxu0 0.0
  %1606 = vmatprep.subr.mxu0 0.0
  %1607 = vmatpush2.msra.mxu0 0.0
  %1608 = vmatprep.subr.mxu0 0.0
  %1609 = vmatpush2.msra.mxu0 0.0
  %1610 = vmatprep.subr.mxu0 0.0
  %1611 = vmatpush2.msra.mxu0 0.0
  %1612 = vmatprep.subr.mxu0 0.0
  %1613 = vmatpush2.msra.mxu0 0.0
  %1614 = vmatprep.subr.mxu0 0.0
  %1615 = vmatpush2.msra.mxu0 0.0
  %1616 = vmatprep.subr.mxu0 0.0
  %1617 = vmatpush2.msra.mxu0 0.0
  %1618 = vmatprep.subr.mxu0 0.0
  %1619 = vmatpush2.msra.mxu0 0.0
  %1620 = vmatprep.subr.mxu0 0.0
  %1621 = vmatpush2.msra.mxu0 0.0
  %1622 = vmatprep.subr.mxu0 0.0
  %1623 = vmatpush2.msra.mxu0 0.0
  %1624 = vmatprep.subr.mxu0 0.0
  %1625 = vmatpush2.msra.mxu0 0.0
  %1626 = vmatprep.subr.mxu0 0.0
  %1627 = vmatpush2.msra.mxu0 0.0
  %1628 = vmatprep.subr.mxu0 0.0
  %1629 = vmatpush2.msra.mxu0 0.0
  %1630 = vmatprep.subr.mxu0 0.0
  %1631 = vmatpush2.msra.mxu0 0.0
  %1632 = vmatprep.subr.mxu0 0.0
  %1633 = vmatpush2.msra.mxu0 0.0
  %1634 = vmatprep.mubr.f32.mxu0 0.0
  %1635 = vmatmul.mubr.f32.gmra.mxu0 %v111
  %v1636 = vpop.f32.mrf.mxu0
  %v1637 = vadd.f32 0.0, %v1636
  %v1638 = vpop.f32.mrf.mxu0
  %1639 = vmatprep.mubr.f32.mxu0 0.0
  %1640 = vmatmul.mubr.f32.gmra.mxu0 %v114
  %v1641 = vpop.f32.mrf.mxu0
  %v1642 = vadd.f32 0.0, %v1641
  %v1643 = vpop.f32.mrf.mxu0
  %1644 = vdwg.mxu0
  %1645 = vxpose.xlu0.b32.start [1/16] %v1561, 128
  %1646 = vxpose.xlu0.b32.cont [2/16] %v1564, 128
  %1647 = vxpose.xlu0.b32.cont [3/16] 0.0, 128
  %1648 = vxpose.xlu0.b32.cont [4/16] 0.0, 128
  %1649 = vxpose.xlu0.b32.cont [5/16] 0.0, 128
  %1650 = vxpose.xlu0.b32.cont [6/16] 0.0, 128
  %1651 = vxpose.xlu0.b32.cont [7/16] 0.0, 128
  %1652 = vxpose.xlu0.b32.cont [8/16] 0.0, 128
  %1653 = vxpose.xlu0.b32.cont [9/16] 0.0, 128
  %1654 = vxpose.xlu0.b32.cont [10/16] 0.0, 128
  %1655 = vxpose.xlu0.b32.cont [11/16] 0.0, 128
  %1656 = vxpose.xlu0.b32.cont [12/16] 0.0, 128
  %1657 = vxpose.xlu0.b32.cont [13/16] 0.0, 128
  %1658 = vxpose.xlu0.b32.cont [14/16] 0.0, 128
  %1659 = vxpose.xlu0.b32.cont [15/16] 0.0, 128
  %1660 = vxpose.xlu0.b32.end [16/16] 0.0, 128
  %v1661 = vpop.trf.xlu0
  %v1662 = vpop.trf.xlu0
  %v1663 = vpop.trf.xlu0
  %v1664 = vpop.trf.xlu0
  %v1665 = vpop.trf.xlu0
  %v1666 = vpop.trf.xlu0
  %v1667 = vpop.trf.xlu0
  %v1668 = vpop.trf.xlu0
  %v1669 = vpop.trf.xlu0
  %v1670 = vpop.trf.xlu0
  %v1671 = vpop.trf.xlu0
  %v1672 = vpop.trf.xlu0
  %v1673 = vpop.trf.xlu0
  %v1674 = vpop.trf.xlu0
  %v1675 = vpop.trf.xlu0
  %v1676 = vpop.trf.xlu0
  %v1677 = vlaneseq
  %v1678 = vshrl.u32 %v1677, 7
  %v1679 = vsub.s32 0, %v1678
  %v1680 = vrot.slane %v1661, %v1679
  %vm1681 = vcmp.gt.f32.partialorder %v1680, %v1561
  %vm1682 = vcmp.gt.f32.partialorder %v1680, %v1564
  %vm1683 = vcmp.eq.f32.partialorder %v1680, %v1561
  %vm1684 = vcmp.eq.f32.partialorder %v1680, %v1564
  %vm1685 = vmand %vm1683, %vm75
  %vm1686 = vmand %vm1684, %vm76
  %vm1687 = vmor %vm1681, %vm1685
  %vm1688 = vmor %vm1682, %vm1686
  %v1689 = vmul.f32 %v187, %v879
  %v1690 = vmul.f32 %v192, %v879
  %v1691 = vsel %vm1687, 1, 0
  %v1692 = vsel %vm1688, 1, 0
  %v1693 = vcvt.s32.f32 %v1691
  %v1694 = vcvt.s32.f32 %v1692
  %v1695 = vmul.f32 %v1689, %v1693
  %v1696 = vmul.f32 %v1690, %v1694
  %v1697 = vsel %vm408, %v1695, 0.0
  %1698 = vadd.xlane.f32.xlu0 %v1697
  %v1699 = vpop.xlane.xlu0 %1698
  %v1700 = vsel %vm408, %v1696, 0.0
  %1701 = vadd.xlane.f32.xlu0 %v1700
  %v1702 = vpop.xlane.xlu0 %1701
  %vm1703 = vcmp.lt.f32.partialorder %v1699, %v1637
  %vm1704 = vcmp.lt.f32.partialorder %v1702, %v1642
  %v1705 = vsel %vm1703, 1, 0
  %v1706 = vsel %vm1704, 1, 0
  %v1707 = vcvt.s32.f32 %v1705
  %v1708 = vcvt.s32.f32 %v1706
  %v1709 = vmul.f32 %v824, %v1707
  %v1710 = vmul.f32 %v825, %v1708
  %v1711 = vtanh.pop %v1561
  %v1712 = vtanh.pop %v1564
  %v1713 = vmul.f32 %v1548, %v1711
  %v1714 = vmul.f32 %v1549, %v1712
  %1716 = vset.pattern.permute.xlu0 0
  %1717 = vperm.xlu0 %1716, %v1709
  %v1718 = vpop.permute.xlu0 %1717
  %1721 = vset.pattern.permute.xlu0 0
  %1722 = vperm.xlu0 %1721, %v1710
  %v1723 = vpop.permute.xlu0 %1722
  %v1725 = vmul.f32 %v1713, %v1718
  %v1726 = vmul.f32 %v1714, %v1723
  %v1727 = vmul.f32 %v880, %v1718
  %v1728 = vmul.f32 %v881, %v1723
  %1729 = vxpose.xlu0.b32.start [1/16] %v1709, 128
  %1730 = vxpose.xlu0.b32.cont [2/16] %v1710, 128
  %1731 = vxpose.xlu0.b32.cont [3/16] 0.0, 128
  %1732 = vxpose.xlu0.b32.cont [4/16] 0.0, 128
  %1733 = vxpose.xlu0.b32.cont [5/16] 0.0, 128
  %1734 = vxpose.xlu0.b32.cont [6/16] 0.0, 128
  %1735 = vxpose.xlu0.b32.cont [7/16] 0.0, 128
  %1736 = vxpose.xlu0.b32.cont [8/16] 0.0, 128
  %1737 = vxpose.xlu0.b32.cont [9/16] 0.0, 128
  %1738 = vxpose.xlu0.b32.cont [10/16] 0.0, 128
  %1739 = vxpose.xlu0.b32.cont [11/16] 0.0, 128
  %1740 = vxpose.xlu0.b32.cont [12/16] 0.0, 128
  %1741 = vxpose.xlu0.b32.cont [13/16] 0.0, 128
  %1742 = vxpose.xlu0.b32.cont [14/16] 0.0, 128
  %1743 = vxpose.xlu0.b32.cont [15/16] 0.0, 128
  %1744 = vxpose.xlu0.b32.end [16/16] 0.0, 128
  %v1745 = vpop.trf.xlu0
  %v1746 = vpop.trf.xlu0
  %v1747 = vpop.trf.xlu0
  %v1748 = vpop.trf.xlu0
  %v1749 = vpop.trf.xlu0
  %v1750 = vpop.trf.xlu0
  %v1751 = vpop.trf.xlu0
  %v1752 = vpop.trf.xlu0
  %v1753 = vpop.trf.xlu0
  %v1754 = vpop.trf.xlu0
  %v1755 = vpop.trf.xlu0
  %v1756 = vpop.trf.xlu0
  %v1757 = vpop.trf.xlu0
  %v1758 = vpop.trf.xlu0
  %v1759 = vpop.trf.xlu0
  %v1760 = vpop.trf.xlu0
  %v1761 = vlaneseq
  %v1762 = vshrl.u32 %v1761, 7
  %v1763 = vsub.s32 0, %v1762
  %v1764 = vrot.slane %v1745, %v1763
  %v1765 = vmul.f32 %v1727, %v1764
  %v1766 = vmul.f32 %v1728, %v1764
  %1767 = vmatprep.subr.mxu0 0.0
  %1768 = vmatpush1.msra.mxu0 0.0
  %1769 = vmatprep.subr.mxu0 0.0
  %1770 = vmatpush1.msra.mxu0 0.0
  %1771 = vmatprep.subr.mxu0 0.0
  %1772 = vmatpush1.msra.mxu0 0.0
  %1773 = vmatprep.subr.mxu0 0.0
  %1774 = vmatpush1.msra.mxu0 0.0
  %1775 = vmatprep.subr.mxu0 0.0
  %1776 = vmatpush1.msra.mxu0 0.0
  %1777 = vmatprep.subr.mxu0 0.0
  %1778 = vmatpush1.msra.mxu0 0.0
  %1779 = vmatprep.subr.mxu0 0.0
  %1780 = vmatpush1.msra.mxu0 0.0
  %1781 = vmatprep.subr.mxu0 0.0
  %1782 = vmatpush1.msra.mxu0 0.0
  %1783 = vmatprep.subr.mxu0 0.0
  %1784 = vmatpush1.msra.mxu0 0.0
  %1785 = vmatprep.subr.mxu0 0.0
  %1786 = vmatpush1.msra.mxu0 0.0
  %1787 = vmatprep.subr.mxu0 0.0
  %1788 = vmatpush1.msra.mxu0 0.0
  %1789 = vmatprep.subr.mxu0 0.0
  %1790 = vmatpush1.msra.mxu0 0.0
  %1791 = vmatprep.subr.mxu0 0.0
  %1792 = vmatpush1.msra.mxu0 0.0
  %1793 = vmatprep.subr.mxu0 0.0
  %1794 = vmatpush1.msra.mxu0 0.0
  %1795 = vmatprep.subr.mxu0 0.0
  %1796 = vmatpush1.msra.mxu0 %v1710
  %1797 = vmatprep.subr.mxu0 0.0
  %1798 = vmatpush1.msra.mxu0 %v1709
  %1799 = vmatprep.subr.mxu0 0.0
  %1800 = vmatpush2.msra.mxu0 0.0
  %1801 = vmatprep.subr.mxu0 0.0
  %1802 = vmatpush2.msra.mxu0 0.0
  %1803 = vmatprep.subr.mxu0 0.0
  %1804 = vmatpush2.msra.mxu0 0.0
  %1805 = vmatprep.subr.mxu0 0.0
  %1806 = vmatpush2.msra.mxu0 0.0
  %1807 = vmatprep.subr.mxu0 0.0
  %1808 = vmatpush2.msra.mxu0 0.0
  %1809 = vmatprep.subr.mxu0 0.0
  %1810 = vmatpush2.msra.mxu0 0.0
  %1811 = vmatprep.subr.mxu0 0.0
  %1812 = vmatpush2.msra.mxu0 0.0
  %1813 = vmatprep.subr.mxu0 0.0
  %1814 = vmatpush2.msra.mxu0 0.0
  %1815 = vmatprep.subr.mxu0 0.0
  %1816 = vmatpush2.msra.mxu0 0.0
  %1817 = vmatprep.subr.mxu0 0.0
  %1818 = vmatpush2.msra.mxu0 0.0
  %1819 = vmatprep.subr.mxu0 0.0
  %1820 = vmatpush2.msra.mxu0 0.0
  %1821 = vmatprep.subr.mxu0 0.0
  %1822 = vmatpush2.msra.mxu0 0.0
  %1823 = vmatprep.subr.mxu0 0.0
  %1824 = vmatpush2.msra.mxu0 0.0
  %1825 = vmatprep.subr.mxu0 0.0
  %1826 = vmatpush2.msra.mxu0 0.0
  %1827 = vmatprep.subr.mxu0 0.0
  %1828 = vmatpush2.msra.mxu0 0.0
  %1829 = vmatprep.subr.mxu0 0.0
  %1830 = vmatpush2.msra.mxu0 0.0
  %1831 = vmatprep.mubr.f32.mxu0 0.0
  %1832 = vmatmul.mubr.f32.gmra.mxu0 %v574
  %v1833 = vpop.f32.mrf.mxu0
  %v1834 = vadd.f32 0.0, %v1833
  %v1835 = vpop.f32.mrf.mxu0
  %1836 = vdwg.mxu0
  %1837 = vmatprep.subr.mxu0 0.0
  %1838 = vmatpush1.msra.mxu0 0.0
  %1839 = vmatprep.subr.mxu0 0.0
  %1840 = vmatpush1.msra.mxu0 0.0
  %1841 = vmatprep.subr.mxu0 0.0
  %1842 = vmatpush1.msra.mxu0 0.0
  %1843 = vmatprep.subr.mxu0 0.0
  %1844 = vmatpush1.msra.mxu0 0.0
  %1845 = vmatprep.subr.mxu0 0.0
  %1846 = vmatpush1.msra.mxu0 0.0
  %1847 = vmatprep.subr.mxu0 0.0
  %1848 = vmatpush1.msra.mxu0 0.0
  %1849 = vmatprep.subr.mxu0 0.0
  %1850 = vmatpush1.msra.mxu0 0.0
  %1851 = vmatprep.subr.mxu0 0.0
  %1852 = vmatpush1.msra.mxu0 0.0
  %1853 = vmatprep.subr.mxu0 0.0
  %1854 = vmatpush1.msra.mxu0 0.0
  %1855 = vmatprep.subr.mxu0 0.0
  %1856 = vmatpush1.msra.mxu0 0.0
  %1857 = vmatprep.subr.mxu0 0.0
  %1858 = vmatpush1.msra.mxu0 0.0
  %1859 = vmatprep.subr.mxu0 0.0
  %1860 = vmatpush1.msra.mxu0 0.0
  %1861 = vmatprep.subr.mxu0 0.0
  %1862 = vmatpush1.msra.mxu0 0.0
  %1863 = vmatprep.subr.mxu0 0.0
  %1864 = vmatpush1.msra.mxu0 0.0
  %1865 = vmatprep.subr.mxu0 0.0
  %1866 = vmatpush1.msra.mxu0 %v1726
  %1867 = vmatprep.subr.mxu0 0.0
  %1868 = vmatpush1.msra.mxu0 %v1725
  %1869 = vmatprep.subr.mxu0 0.0
  %1870 = vmatpush2.msra.mxu0 0.0
  %1871 = vmatprep.subr.mxu0 0.0
  %1872 = vmatpush2.msra.mxu0 0.0
  %1873 = vmatprep.subr.mxu0 0.0
  %1874 = vmatpush2.msra.mxu0 0.0
  %1875 = vmatprep.subr.mxu0 0.0
  %1876 = vmatpush2.msra.mxu0 0.0
  %1877 = vmatprep.subr.mxu0 0.0
  %1878 = vmatpush2.msra.mxu0 0.0
  %1879 = vmatprep.subr.mxu0 0.0
  %1880 = vmatpush2.msra.mxu0 0.0
  %1881 = vmatprep.subr.mxu0 0.0
  %1882 = vmatpush2.msra.mxu0 0.0
  %1883 = vmatprep.subr.mxu0 0.0
  %1884 = vmatpush2.msra.mxu0 0.0
  %1885 = vmatprep.subr.mxu0 0.0
  %1886 = vmatpush2.msra.mxu0 0.0
  %1887 = vmatprep.subr.mxu0 0.0
  %1888 = vmatpush2.msra.mxu0 0.0
  %1889 = vmatprep.subr.mxu0 0.0
  %1890 = vmatpush2.msra.mxu0 0.0
  %1891 = vmatprep.subr.mxu0 0.0
  %1892 = vmatpush2.msra.mxu0 0.0
  %1893 = vmatprep.subr.mxu0 0.0
  %1894 = vmatpush2.msra.mxu0 0.0
  %1895 = vmatprep.subr.mxu0 0.0
  %1896 = vmatpush2.msra.mxu0 0.0
  %1897 = vmatprep.subr.mxu0 0.0
  %1898 = vmatpush2.msra.mxu0 0.0
  %1899 = vmatprep.subr.mxu0 0.0
  %1900 = vmatpush2.msra.mxu0 0.0
  %1901 = vmatprep.mubr.f32.mxu0 0.0
  %1902 = vmatmul.mubr.f32.gmra.mxu0 %v574
  %v1903 = vpop.f32.mrf.mxu0
  %v1904 = vadd.f32 0.0, %v1903
  %v1905 = vpop.f32.mrf.mxu0
  %1906 = vdwg.mxu0
  %v1907 = vmax.f32 %v1834, 1.0
  %v1908 = vrcp.pop %v1907
  %1910 = vset.pattern.permute.xlu0 0
  %1911 = vperm.xlu0 %1910, %v1908
  %v1912 = vpop.permute.xlu0 %1911
  %v1914 = vmul.f32 %v1904, %v1912
  %v1915 = vmul.f32 %v1718, %v66
  %v1916 = vmul.f32 %v1723, %v67
  %1917 = vxpose.xlu0.b32.start [1/16] %v1915, 128
  %1918 = vxpose.xlu0.b32.cont [2/16] %v1916, 128
  %1919 = vxpose.xlu0.b32.cont [3/16] 0.0, 128
  %1920 = vxpose.xlu0.b32.cont [4/16] 0.0, 128
  %1921 = vxpose.xlu0.b32.cont [5/16] 0.0, 128
  %1922 = vxpose.xlu0.b32.cont [6/16] 0.0, 128
  %1923 = vxpose.xlu0.b32.cont [7/16] 0.0, 128
  %1924 = vxpose.xlu0.b32.cont [8/16] 0.0, 128
  %1925 = vxpose.xlu0.b32.cont [9/16] 0.0, 128
  %1926 = vxpose.xlu0.b32.cont [10/16] 0.0, 128
  %1927 = vxpose.xlu0.b32.cont [11/16] 0.0, 128
  %1928 = vxpose.xlu0.b32.cont [12/16] 0.0, 128
  %1929 = vxpose.xlu0.b32.cont [13/16] 0.0, 128
  %1930 = vxpose.xlu0.b32.cont [14/16] 0.0, 128
  %1931 = vxpose.xlu0.b32.cont [15/16] 0.0, 128
  %1932 = vxpose.xlu0.b32.end [16/16] 0.0, 128
  %v1933 = vpop.trf.xlu0
  %v1934 = vpop.trf.xlu0
  %v1935 = vpop.trf.xlu0
  %v1936 = vpop.trf.xlu0
  %v1937 = vpop.trf.xlu0
  %v1938 = vpop.trf.xlu0
  %v1939 = vpop.trf.xlu0
  %v1940 = vpop.trf.xlu0
  %v1941 = vpop.trf.xlu0
  %v1942 = vpop.trf.xlu0
  %v1943 = vpop.trf.xlu0
  %v1944 = vpop.trf.xlu0
  %v1945 = vpop.trf.xlu0
  %v1946 = vpop.trf.xlu0
  %v1947 = vpop.trf.xlu0
  %v1948 = vpop.trf.xlu0
  %v1951 = vunpack.c.l.s4 1966171168
  %v1952 = vunpack.c.0.s8 %v1951
  %v1953 = vlaneseq
  %v1954 = vshrl.u32 %v1953, 7
  %v1955 = vsub.s32 %v1952, %v1954
  %v1956 = vrot.slane %v1933, %v1955
  %v1957 = vcombine.high %v1956, %v1956
  %v1959 = vunpack.c.l.s4 1966171168
  %v1960 = vunpack.c.0.s8 %v1959
  %v1961 = vlaneseq
  %v1962 = vshrl.u32 %v1961, 7
  %v1963 = vsub.s32 %v1960, %v1962
  %v1964 = vrot.slane %v1956, %v1963
  %v1966 = vunpack.c.l.s4 1966171168
  %v1967 = vunpack.c.0.s8 %v1966
  %v1968 = vlaneseq
  %v1969 = vshrl.u32 %v1968, 7
  %v1970 = vsub.s32 %v1967, %v1969
  %v1971 = vrot.slane %v1957, %v1970
  %vm1974 = vcmp.gt.f32.partialorder %v1964, 0.0
  %vm1975 = vcmp.gt.f32.partialorder %v1971, 0.0
  %1976 = vxpose.xlu0.b32.start [1/16] %v1725, 128
  %1977 = vxpose.xlu0.b32.cont [2/16] %v1726, 128
  %1978 = vxpose.xlu0.b32.cont [3/16] 0.0, 128
  %1979 = vxpose.xlu0.b32.cont [4/16] 0.0, 128
  %1980 = vxpose.xlu0.b32.cont [5/16] 0.0, 128
  %1981 = vxpose.xlu0.b32.cont [6/16] 0.0, 128
  %1982 = vxpose.xlu0.b32.cont [7/16] 0.0, 128
  %1983 = vxpose.xlu0.b32.cont [8/16] 0.0, 128
  %1984 = vxpose.xlu0.b32.cont [9/16] 0.0, 128
  %1985 = vxpose.xlu0.b32.cont [10/16] 0.0, 128
  %1986 = vxpose.xlu0.b32.cont [11/16] 0.0, 128
  %1987 = vxpose.xlu0.b32.cont [12/16] 0.0, 128
  %1988 = vxpose.xlu0.b32.cont [13/16] 0.0, 128
  %1989 = vxpose.xlu0.b32.cont [14/16] 0.0, 128
  %1990 = vxpose.xlu0.b32.cont [15/16] 0.0, 128
  %1991 = vxpose.xlu0.b32.end [16/16] 0.0, 128
  %v1992 = vpop.trf.xlu0
  %v1993 = vpop.trf.xlu0
  %v1994 = vpop.trf.xlu0
  %v1995 = vpop.trf.xlu0
  %v1996 = vpop.trf.xlu0
  %v1997 = vpop.trf.xlu0
  %v1998 = vpop.trf.xlu0
  %v1999 = vpop.trf.xlu0
  %v2000 = vpop.trf.xlu0
  %v2001 = vpop.trf.xlu0
  %v2002 = vpop.trf.xlu0
  %v2003 = vpop.trf.xlu0
  %v2004 = vpop.trf.xlu0
  %v2005 = vpop.trf.xlu0
  %v2006 = vpop.trf.xlu0
  %v2007 = vpop.trf.xlu0
  %v2008 = vsel %vm1974, 1, 0
  %v2009 = vsel %vm1975, 1, 0
  %v2010 = vlaneseq
  %v2011 = vshrl.u32 %v2010, 7
  %v2012 = vsub.s32 0, %v2011
  %v2013 = vrot.slane %v2008, %v2012
  %v2014 = vlaneseq
  %v2015 = vshrl.u32 %v2014, 7
  %v2016 = vsub.s32 0, %v2015
  %v2017 = vrot.slane %v2009, %v2016
  %vm2018 = vcmp.eq.s32.totalorder %v2013, 1
  %vm2019 = vcmp.eq.s32.totalorder %v2017, 1
  %v2020 = vsel %vm2018, %v1992, -1e+30
  %v2021 = vsel %vm2018, %v1993, -1e+30
  %v2022 = vsel %vm2019, %v1992, -1e+30
  %v2023 = vsel %vm2019, %v1993, -1e+30
  %v2024 = vsel %vm408, %v2020, -inf
  %2025 = vmax.xlane.f32.xlu0 %v2024
  %v2026 = vpop.xlane.xlu0 %2025
  %v2027 = vsel %vm408, %v2021, -inf
  %2028 = vmax.xlane.f32.xlu0 %v2027
  %v2029 = vpop.xlane.xlu0 %2028
  %v2030 = vsel %vm408, %v2022, -inf
  %2031 = vmax.xlane.f32.xlu0 %v2030
  %v2032 = vpop.xlane.xlu0 %2031
  %v2033 = vsel %vm408, %v2023, -inf
  %2034 = vmax.xlane.f32.xlu0 %v2033
  %v2035 = vpop.xlane.xlu0 %2034
  %vm2036 = vcmp.gt.f32.partialorder %v1834, 0.0
  %v2037 = vsel %vm2036, 1, 0
  %2038 = vset.pattern.permute.xlu0 0
  %2039 = vperm.xlu0 %2038, %v2037
  %v2040 = vpop.permute.xlu0 %2039
  %vm2041 = vcmp.eq.s32.totalorder %v2040, 1
  %v2046 = vlaneseq
  %v2047 = vshrl.u32 %v2046, 7
  %v2048 = vsub.s32 %v72, %v2047
  %v2049 = vrot.slane %v2026, %v2048
  %v2050 = vlaneseq
  %v2051 = vshrl.u32 %v2050, 7
  %v2052 = vsub.s32 %v1165, %v2051
  %v2053 = vrot.slane %v2029, %v2052
  %v2054 = vsel %vm1170, %v2053, %v2049
  %v2055 = vlaneseq
  %v2056 = vshrl.u32 %v2055, 7
  %v2057 = vsub.s32 %v72, %v2056
  %v2058 = vrot.slane %v2032, %v2057
  %v2059 = vlaneseq
  %v2060 = vshrl.u32 %v2059, 7
  %v2061 = vsub.s32 %v1165, %v2060
  %v2062 = vrot.slane %v2035, %v2061
  %v2063 = vsel %vm1170, %v2062, %v2058
  %v2064 = vsel %vm1181, %v2063, %v2054
  %v2066 = vsel %vm2041, %v2064, 0.0
  %2068 = vrot.lane.b32.xlu0 %v2066, 16
  %v2069 = vpop.permute.xlu0 %2068
  %v2071 = vsel %vm408, %v1914, %v2069
  %v2072 = vadd.f32 %v1190, %v2071
  %vm2073 = vcmp.gt.f32.partialorder %v1765, 0.0
  %vm2074 = vcmp.gt.f32.partialorder %v1766, 0.0
  %vm2075 = vmor %vm2073, %vm73
  %vm2076 = vmor %vm2074, %vm74
  %v2077 = vld [vmem:[%s9] sm:$0xff]
  %v2078 = vld [vmem:[%s9 + $0x8] sm:$0xff]
  %v2079 = vpack.c.bf16 %v1726, %v1725
  %v2080 = vpack.c.bf16 %v2078, %v2077
  %v2082 = vsel %vm408, %v2079, 0
  %2084 = vmatprep.subr.bf16.mxu0 0
  %2085 = vmatpush1.bf16.msra.mxu0 0
  %2086 = vmatprep.subr.bf16.mxu0 0
  %2087 = vmatpush1.bf16.msra.mxu0 0
  %2088 = vmatprep.subr.bf16.mxu0 0
  %2089 = vmatpush1.bf16.msra.mxu0 0
  %2090 = vmatprep.subr.bf16.mxu0 0
  %2091 = vmatpush1.bf16.msra.mxu0 0
  %2092 = vmatprep.subr.bf16.mxu0 0
  %2093 = vmatpush1.bf16.msra.mxu0 0
  %2094 = vmatprep.subr.bf16.mxu0 0
  %2095 = vmatpush1.bf16.msra.mxu0 0
  %2096 = vmatprep.subr.bf16.mxu0 0
  %2097 = vmatpush1.bf16.msra.mxu0 0
  %2098 = vmatprep.subr.bf16.mxu0 0
  %2099 = vmatpush1.bf16.msra.mxu0 %v2080
  %2100 = vmatprep.subr.bf16.mxu0 0
  %2101 = vmatpush2.bf16.msra.mxu0 0
  %2102 = vmatprep.subr.bf16.mxu0 0
  %2103 = vmatpush2.bf16.msra.mxu0 0
  %2104 = vmatprep.subr.bf16.mxu0 0
  %2105 = vmatpush2.bf16.msra.mxu0 0
  %2106 = vmatprep.subr.bf16.mxu0 0
  %2107 = vmatpush2.bf16.msra.mxu0 0
  %2108 = vmatprep.subr.bf16.mxu0 0
  %2109 = vmatpush2.bf16.msra.mxu0 0
  %2110 = vmatprep.subr.bf16.mxu0 0
  %2111 = vmatpush2.bf16.msra.mxu0 0
  %2112 = vmatprep.subr.bf16.mxu0 0
  %2113 = vmatpush2.bf16.msra.mxu0 0
  %2114 = vmatprep.subr.bf16.mxu0 0
  %2115 = vmatpush2.bf16.msra.mxu0 0
  %2116 = vmatprep.mubr.bf16.mxu0 0
  %2117 = vmatmul.mubr.bf16.gmra.mxu0 %v2082
  %v2118 = vpop.f32.mrf.mxu0
  %v2119 = vadd.f32 0.0, %v2118
  %v2120 = vpop.f32.mrf.mxu0
  %v2121 = vpop.f32.mrf.mxu0
  %v2122 = vadd.f32 0.0, %v2121
  %v2123 = vpop.f32.mrf.mxu0
  %2124 = vdwg.mxu0
  %2127 = vrot.lane.b32.xlu0 %v2119, 94
  %v2128 = vpop.permute.xlu0 %2127
  %2129 = vrot.lane.b32.xlu0 %v2122, 94
  %v2130 = vpop.permute.xlu0 %2129
  %2133 = vxpose.xlu0.b32.start [1/16] %v2128, 128
  %2134 = vxpose.xlu0.b32.cont [2/16] %v2130, 128
  %2135 = vxpose.xlu0.b32.cont [3/16] 0.0, 128
  %2136 = vxpose.xlu0.b32.cont [4/16] 0.0, 128
  %2137 = vxpose.xlu0.b32.cont [5/16] 0.0, 128
  %2138 = vxpose.xlu0.b32.cont [6/16] 0.0, 128
  %2139 = vxpose.xlu0.b32.cont [7/16] 0.0, 128
  %2140 = vxpose.xlu0.b32.cont [8/16] 0.0, 128
  %2141 = vxpose.xlu0.b32.cont [9/16] 0.0, 128
  %2142 = vxpose.xlu0.b32.cont [10/16] 0.0, 128
  %2143 = vxpose.xlu0.b32.cont [11/16] 0.0, 128
  %2144 = vxpose.xlu0.b32.cont [12/16] 0.0, 128
  %2145 = vxpose.xlu0.b32.cont [13/16] 0.0, 128
  %2146 = vxpose.xlu0.b32.cont [14/16] 0.0, 128
  %2147 = vxpose.xlu0.b32.cont [15/16] 0.0, 128
  %2148 = vxpose.xlu0.b32.end [16/16] 0.0, 128
  %v2149 = vpop.trf.xlu0
  %v2150 = vpop.trf.xlu0
  %v2151 = vpop.trf.xlu0
  %v2152 = vpop.trf.xlu0
  %v2153 = vpop.trf.xlu0
  %v2154 = vpop.trf.xlu0
  %v2155 = vpop.trf.xlu0
  %v2156 = vpop.trf.xlu0
  %v2157 = vpop.trf.xlu0
  %v2158 = vpop.trf.xlu0
  %v2159 = vpop.trf.xlu0
  %v2160 = vpop.trf.xlu0
  %v2161 = vpop.trf.xlu0
  %v2162 = vpop.trf.xlu0
  %v2163 = vpop.trf.xlu0
  %v2164 = vpop.trf.xlu0
  %v2165 = vlaneseq
  %v2166 = vshrl.u32 %v2165, 7
  %v2167 = vsub.s32 0, %v2166
  %v2168 = vrot.slane %v2149, %v2167
  %2170 = vbcast.lane.b32.xlu0 %v2168, 256
  %v2171 = vpop.permute.xlu0 %2170
  %s2173 = sor.u32 256, 8
  %2174 = vbcast.lane.b32.xlu0 %v2168, %s2173
  %v2175 = vpop.permute.xlu0 %2174
  %v2176 = vlaneseq
  %v2177 = vshrl.u32 %v2176, 7
  %v2178 = vsub.s32 1, %v2177
  %v2179 = vrot.slane %v2149, %v2178
  %2181 = vbcast.lane.b32.xlu0 %v2179, 256
  %v2182 = vpop.permute.xlu0 %2181
  %s2184 = sor.u32 256, 8
  %2185 = vbcast.lane.b32.xlu0 %v2179, %s2184
  %v2186 = vpop.permute.xlu0 %2185
  %2187 = vrot.lane.b32.xlu0 %v2119, 96
  %v2188 = vpop.permute.xlu0 %2187
  %2189 = vrot.lane.b32.xlu0 %v2122, 96
  %v2190 = vpop.permute.xlu0 %2189
  %2193 = vxpose.xlu0.b32.start [1/16] %v2188, 128
  %2194 = vxpose.xlu0.b32.cont [2/16] %v2190, 128
  %2195 = vxpose.xlu0.b32.cont [3/16] 0.0, 128
  %2196 = vxpose.xlu0.b32.cont [4/16] 0.0, 128
  %2197 = vxpose.xlu0.b32.cont [5/16] 0.0, 128
  %2198 = vxpose.xlu0.b32.cont [6/16] 0.0, 128
  %2199 = vxpose.xlu0.b32.cont [7/16] 0.0, 128
  %2200 = vxpose.xlu0.b32.cont [8/16] 0.0, 128
  %2201 = vxpose.xlu0.b32.cont [9/16] 0.0, 128
  %2202 = vxpose.xlu0.b32.cont [10/16] 0.0, 128
  %2203 = vxpose.xlu0.b32.cont [11/16] 0.0, 128
  %2204 = vxpose.xlu0.b32.cont [12/16] 0.0, 128
  %2205 = vxpose.xlu0.b32.cont [13/16] 0.0, 128
  %2206 = vxpose.xlu0.b32.cont [14/16] 0.0, 128
  %2207 = vxpose.xlu0.b32.cont [15/16] 0.0, 128
  %2208 = vxpose.xlu0.b32.end [16/16] 0.0, 128
  %v2209 = vpop.trf.xlu0
  %v2210 = vpop.trf.xlu0
  %v2211 = vpop.trf.xlu0
  %v2212 = vpop.trf.xlu0
  %v2213 = vpop.trf.xlu0
  %v2214 = vpop.trf.xlu0
  %v2215 = vpop.trf.xlu0
  %v2216 = vpop.trf.xlu0
  %v2217 = vpop.trf.xlu0
  %v2218 = vpop.trf.xlu0
  %v2219 = vpop.trf.xlu0
  %v2220 = vpop.trf.xlu0
  %v2221 = vpop.trf.xlu0
  %v2222 = vpop.trf.xlu0
  %v2223 = vpop.trf.xlu0
  %v2224 = vpop.trf.xlu0
  %v2227 = vunpack.c.l.s4 1966171168
  %v2228 = vunpack.c.0.s8 %v2227
  %v2229 = vlaneseq
  %v2230 = vshrl.u32 %v2229, 7
  %v2231 = vsub.s32 %v2228, %v2230
  %v2232 = vrot.slane %v2209, %v2231
  %v2233 = vcombine.high %v2232, %v2232
  %v2235 = vunpack.c.l.s4 1966171168
  %v2236 = vunpack.c.0.s8 %v2235
  %v2237 = vlaneseq
  %v2238 = vshrl.u32 %v2237, 7
  %v2239 = vsub.s32 %v2236, %v2238
  %v2240 = vrot.slane %v2232, %v2239
  %v2242 = vunpack.c.l.s4 1966171168
  %v2243 = vunpack.c.0.s8 %v2242
  %v2244 = vlaneseq
  %v2245 = vshrl.u32 %v2244, 7
  %v2246 = vsub.s32 %v2243, %v2245
  %v2247 = vrot.slane %v2233, %v2246
  %v2248 = vlaneseq
  %v2249 = vshrl.u32 %v2248, 7
  %v2250 = vsub.s32 0, %v2249
  %v2251 = vrot.slane %v2240, %v2250
  %v2252 = vlaneseq
  %v2253 = vshrl.u32 %v2252, 7
  %v2254 = vsub.s32 0, %v2253
  %v2255 = vrot.slane %v2247, %v2254
  %v2258 = vadd.f32 %v2171, %v2251
  %v2259 = vadd.f32 %v2175, %v2251
  %v2260 = vadd.f32 %v2182, %v2255
  %v2261 = vadd.f32 %v2186, %v2255
  %vm2262 = vcmp.gt.f32.partialorder %v2258, 0.0
  %vm2263 = vcmp.gt.f32.partialorder %v2259, 0.0
  %vm2264 = vcmp.gt.f32.partialorder %v2260, 0.0
  %vm2265 = vcmp.gt.f32.partialorder %v2261, 0.0
  %v2266 = vmul.f32 %v2258, 0.2
  %v2267 = vmul.f32 %v2259, 0.2
  %v2268 = vmul.f32 %v2260, 0.2
  %v2269 = vmul.f32 %v2261, 0.2
  %v2270 = vsel %vm2262, %v2258, %v2266
  %v2271 = vsel %vm2263, %v2259, %v2267
  %v2272 = vsel %vm2264, %v2260, %v2268
  %v2273 = vsel %vm2265, %v2261, %v2269
  %v2274 = vsel %vm2075, 1, 0
  %v2275 = vsel %vm2076, 1, 0
  %vm2276 = vcmp.eq.s32.totalorder %v2274, 1
  %vm2277 = vcmp.eq.s32.totalorder %v2275, 1
  %v2278 = vsel %vm2276, %v2270, -1e+30
  %v2279 = vsel %vm2277, %v2271, -1e+30
  %v2280 = vsel %vm2276, %v2272, -1e+30
  %v2281 = vsel %vm2277, %v2273, -1e+30
  %v2282 = vsel %vm408, %v2278, -inf
  %2283 = vmax.xlane.f32.xlu0 %v2282
  %v2284 = vpop.xlane.xlu0 %2283
  %v2285 = vsel %vm408, %v2279, -inf
  %2286 = vmax.xlane.f32.xlu0 %v2285
  %v2287 = vpop.xlane.xlu0 %2286
  %v2288 = vsel %vm408, %v2280, -inf
  %2289 = vmax.xlane.f32.xlu0 %v2288
  %v2290 = vpop.xlane.xlu0 %2289
  %v2291 = vsel %vm408, %v2281, -inf
  %2292 = vmax.xlane.f32.xlu0 %v2291
  %v2293 = vpop.xlane.xlu0 %2292
  %v2294 = vsub.f32 %v2278, %v2284
  %v2295 = vsub.f32 %v2279, %v2287
  %v2296 = vsub.f32 %v2280, %v2290
  %v2297 = vsub.f32 %v2281, %v2293
  %v2298 = vmul.f32 %v2294, 1.442695
  %v2299 = vpow.pop %v2298
  %v2300 = vmul.f32 %v2295, 1.442695
  %v2301 = vpow.pop %v2300
  %v2302 = vmul.f32 %v2296, 1.442695
  %v2303 = vpow.pop %v2302
  %v2304 = vmul.f32 %v2297, 1.442695
  %v2305 = vpow.pop %v2304
  %v2306 = vsel %vm408, %v2299, 0.0
  %2307 = vadd.xlane.f32.xlu0 %v2306
  %v2308 = vpop.xlane.xlu0 %2307
  %v2309 = vsel %vm408, %v2301, 0.0
  %2310 = vadd.xlane.f32.xlu0 %v2309
  %v2311 = vpop.xlane.xlu0 %2310
  %v2312 = vsel %vm408, %v2303, 0.0
  %2313 = vadd.xlane.f32.xlu0 %v2312
  %v2314 = vpop.xlane.xlu0 %2313
  %v2315 = vsel %vm408, %v2305, 0.0
  %2316 = vadd.xlane.f32.xlu0 %v2315
  %v2317 = vpop.xlane.xlu0 %2316
  %v2318 = vrcp.pop %v2308
  %v2319 = vrcp.pop %v2311
  %v2320 = vrcp.pop %v2314
  %v2321 = vrcp.pop %v2317
  %v2322 = vmul.f32 %v2299, %v2318
  %v2323 = vmul.f32 %v2301, %v2319
  %v2324 = vmul.f32 %v2303, %v2320
  %v2325 = vmul.f32 %v2305, %v2321
  %v2326 = vld [vmem:[%s10] sm:$0x1]
  %v2327 = vpack.c.bf16 %v2323, %v2322
  %v2328 = vpack.c.bf16 %v2122, %v2119
  %v2330 = vsel %vm408, %v2327, 0
  %2332 = vmatprep.subr.bf16.mxu0 0
  %2333 = vmatpush1.bf16.msra.mxu0 0
  %2334 = vmatprep.subr.bf16.mxu0 0
  %2335 = vmatpush1.bf16.msra.mxu0 0
  %2336 = vmatprep.subr.bf16.mxu0 0
  %2337 = vmatpush1.bf16.msra.mxu0 0
  %2338 = vmatprep.subr.bf16.mxu0 0
  %2339 = vmatpush1.bf16.msra.mxu0 0
  %2340 = vmatprep.subr.bf16.mxu0 0
  %2341 = vmatpush1.bf16.msra.mxu0 0
  %2342 = vmatprep.subr.bf16.mxu0 0
  %2343 = vmatpush1.bf16.msra.mxu0 0
  %2344 = vmatprep.subr.bf16.mxu0 0
  %2345 = vmatpush1.bf16.msra.mxu0 0
  %2346 = vmatprep.subr.bf16.mxu0 0
  %2347 = vmatpush1.bf16.msra.mxu0 %v2328
  %2348 = vmatprep.subr.bf16.mxu0 0
  %2349 = vmatpush2.bf16.msra.mxu0 0
  %2350 = vmatprep.subr.bf16.mxu0 0
  %2351 = vmatpush2.bf16.msra.mxu0 0
  %2352 = vmatprep.subr.bf16.mxu0 0
  %2353 = vmatpush2.bf16.msra.mxu0 0
  %2354 = vmatprep.subr.bf16.mxu0 0
  %2355 = vmatpush2.bf16.msra.mxu0 0
  %2356 = vmatprep.subr.bf16.mxu0 0
  %2357 = vmatpush2.bf16.msra.mxu0 0
  %2358 = vmatprep.subr.bf16.mxu0 0
  %2359 = vmatpush2.bf16.msra.mxu0 0
  %2360 = vmatprep.subr.bf16.mxu0 0
  %2361 = vmatpush2.bf16.msra.mxu0 0
  %2362 = vmatprep.subr.bf16.mxu0 0
  %2363 = vmatpush2.bf16.msra.mxu0 0
  %2364 = vmatprep.mubr.bf16.mxu0 0
  %2365 = vmatmul.mubr.bf16.gmra.mxu0 %v2330
  %v2366 = vpop.f32.mrf.mxu0
  %v2367 = vadd.f32 0.0, %v2366
  %v2368 = vpop.f32.mrf.mxu0
  %v2369 = vpop.f32.mrf.mxu0
  %v2370 = vadd.f32 0.0, %v2369
  %v2371 = vpop.f32.mrf.mxu0
  %2372 = vdwg.mxu0
  %v2374 = vlaneseq
  %v2375 = vshrl.u32 %v2374, 7
  %v2376 = vsub.s32 0, %v2375
  %v2377 = vrot.slane %v2326, %v2376
  %v2379 = vadd.f32 %v2377, %v2367
  %v2380 = vadd.f32 %v2377, %v2370
  %v2381 = vpack.c.bf16 %v2325, %v2324
  %2383 = vrot.lane.b32.xlu0 %v2328, 112
  %v2384 = vpop.permute.xlu0 %2383
  %v2387 = vsel %vm408, %v2381, 0
  %2389 = vmatprep.subr.bf16.mxu0 0
  %2390 = vmatpush1.bf16.msra.mxu0 0
  %2391 = vmatprep.subr.bf16.mxu0 0
  %2392 = vmatpush1.bf16.msra.mxu0 0
  %2393 = vmatprep.subr.bf16.mxu0 0
  %2394 = vmatpush1.bf16.msra.mxu0 0
  %2395 = vmatprep.subr.bf16.mxu0 0
  %2396 = vmatpush1.bf16.msra.mxu0 0
  %2397 = vmatprep.subr.bf16.mxu0 0
  %2398 = vmatpush1.bf16.msra.mxu0 0
  %2399 = vmatprep.subr.bf16.mxu0 0
  %2400 = vmatpush1.bf16.msra.mxu0 0
  %2401 = vmatprep.subr.bf16.mxu0 0
  %2402 = vmatpush1.bf16.msra.mxu0 0
  %2403 = vmatprep.subr.bf16.mxu0 0
  %2404 = vmatpush1.bf16.msra.mxu0 %v2384
  %2405 = vmatprep.subr.bf16.mxu0 0
  %2406 = vmatpush2.bf16.msra.mxu0 0
  %2407 = vmatprep.subr.bf16.mxu0 0
  %2408 = vmatpush2.bf16.msra.mxu0 0
  %2409 = vmatprep.subr.bf16.mxu0 0
  %2410 = vmatpush2.bf16.msra.mxu0 0
  %2411 = vmatprep.subr.bf16.mxu0 0
  %2412 = vmatpush2.bf16.msra.mxu0 0
  %2413 = vmatprep.subr.bf16.mxu0 0
  %2414 = vmatpush2.bf16.msra.mxu0 0
  %2415 = vmatprep.subr.bf16.mxu0 0
  %2416 = vmatpush2.bf16.msra.mxu0 0
  %2417 = vmatprep.subr.bf16.mxu0 0
  %2418 = vmatpush2.bf16.msra.mxu0 0
  %2419 = vmatprep.subr.bf16.mxu0 0
  %2420 = vmatpush2.bf16.msra.mxu0 0
  %2421 = vmatprep.mubr.bf16.mxu0 0
  %2422 = vmatmul.mubr.bf16.gmra.mxu0 %v2387
  %v2423 = vpop.f32.mrf.mxu0
  %v2424 = vadd.f32 0.0, %v2423
  %v2425 = vpop.f32.mrf.mxu0
  %v2426 = vpop.f32.mrf.mxu0
  %v2427 = vadd.f32 0.0, %v2426
  %v2428 = vpop.f32.mrf.mxu0
  %2429 = vdwg.mxu0
  %v2430 = vadd.f32 %v2379, %v2424
  %v2431 = vadd.f32 %v2380, %v2427
  %v2432 = vld [vmem:[%s11] sm:$0x1]
  %v2434 = vlaneseq
  %v2435 = vshrl.u32 %v2434, 7
  %v2436 = vsub.s32 0, %v2435
  %v2437 = vrot.slane %v2432, %v2436
  %v2439 = vmul.f32 %v2430, %v2437
  %v2440 = vmul.f32 %v2431, %v2437
  %v2441 = vsel %vm408, %v2439, 0.0
  %2442 = vadd.xlane.f32.xlu0 %v2441
  %v2443 = vpop.xlane.xlu0 %2442
  %v2444 = vsel %vm408, %v2440, 0.0
  %2445 = vadd.xlane.f32.xlu0 %v2444
  %v2446 = vpop.xlane.xlu0 %2445
  %v2447 = vmul.f32 %v1834, 0.5
  %v2448 = vceil.f32 %v2447
  %v2450 = vsel %vm116, %v2448, 0
  %2452 = vmatprep.subr.mxu0 0.0
  %2453 = vmatpush1.msra.mxu0 0.0
  %2454 = vmatprep.subr.mxu0 0.0
  %2455 = vmatpush1.msra.mxu0 0.0
  %2456 = vmatprep.subr.mxu0 0.0
  %2457 = vmatpush1.msra.mxu0 0.0
  %2458 = vmatprep.subr.mxu0 0.0
  %2459 = vmatpush1.msra.mxu0 0.0
  %2460 = vmatprep.subr.mxu0 0.0
  %2461 = vmatpush1.msra.mxu0 0.0
  %2462 = vmatprep.subr.mxu0 0.0
  %2463 = vmatpush1.msra.mxu0 0.0
  %2464 = vmatprep.subr.mxu0 0.0
  %2465 = vmatpush1.msra.mxu0 0.0
  %2466 = vmatprep.subr.mxu0 0.0
  %2467 = vmatpush1.msra.mxu0 0.0
  %2468 = vmatprep.subr.mxu0 0.0
  %2469 = vmatpush1.msra.mxu0 0.0
  %2470 = vmatprep.subr.mxu0 0.0
  %2471 = vmatpush1.msra.mxu0 0.0
  %2472 = vmatprep.subr.mxu0 0.0
  %2473 = vmatpush1.msra.mxu0 0.0
  %2474 = vmatprep.subr.mxu0 0.0
  %2475 = vmatpush1.msra.mxu0 0.0
  %2476 = vmatprep.subr.mxu0 0.0
  %2477 = vmatpush1.msra.mxu0 0.0
  %2478 = vmatprep.subr.mxu0 0.0
  %2479 = vmatpush1.msra.mxu0 0.0
  %2480 = vmatprep.subr.mxu0 0.0
  %2481 = vmatpush1.msra.mxu0 0.0
  %2482 = vmatprep.subr.mxu0 0.0
  %2483 = vmatpush1.msra.mxu0 %v2450
  %2484 = vmatprep.subr.mxu0 0.0
  %2485 = vmatpush2.msra.mxu0 0.0
  %2486 = vmatprep.subr.mxu0 0.0
  %2487 = vmatpush2.msra.mxu0 0.0
  %2488 = vmatprep.subr.mxu0 0.0
  %2489 = vmatpush2.msra.mxu0 0.0
  %2490 = vmatprep.subr.mxu0 0.0
  %2491 = vmatpush2.msra.mxu0 0.0
  %2492 = vmatprep.subr.mxu0 0.0
  %2493 = vmatpush2.msra.mxu0 0.0
  %2494 = vmatprep.subr.mxu0 0.0
  %2495 = vmatpush2.msra.mxu0 0.0
  %2496 = vmatprep.subr.mxu0 0.0
  %2497 = vmatpush2.msra.mxu0 0.0
  %2498 = vmatprep.subr.mxu0 0.0
  %2499 = vmatpush2.msra.mxu0 0.0
  %2500 = vmatprep.subr.mxu0 0.0
  %2501 = vmatpush2.msra.mxu0 0.0
  %2502 = vmatprep.subr.mxu0 0.0
  %2503 = vmatpush2.msra.mxu0 0.0
  %2504 = vmatprep.subr.mxu0 0.0
  %2505 = vmatpush2.msra.mxu0 0.0
  %2506 = vmatprep.subr.mxu0 0.0
  %2507 = vmatpush2.msra.mxu0 0.0
  %2508 = vmatprep.subr.mxu0 0.0
  %2509 = vmatpush2.msra.mxu0 0.0
  %2510 = vmatprep.subr.mxu0 0.0
  %2511 = vmatpush2.msra.mxu0 0.0
  %2512 = vmatprep.subr.mxu0 0.0
  %2513 = vmatpush2.msra.mxu0 0.0
  %2514 = vmatprep.subr.mxu0 0.0
  %2515 = vmatpush2.msra.mxu0 0.0
  %2516 = vmatprep.mubr.f32.mxu0 0.0
  %2517 = vmatmul.mubr.f32.gmra.mxu0 %v111
  %v2518 = vpop.f32.mrf.mxu0
  %v2519 = vadd.f32 0.0, %v2518
  %v2520 = vpop.f32.mrf.mxu0
  %2521 = vmatprep.mubr.f32.mxu0 0.0
  %2522 = vmatmul.mubr.f32.gmra.mxu0 %v114
  %v2523 = vpop.f32.mrf.mxu0
  %v2524 = vadd.f32 0.0, %v2523
  %v2525 = vpop.f32.mrf.mxu0
  %2526 = vdwg.mxu0
  %2527 = vxpose.xlu0.b32.start [1/16] %v2443, 128
  %2528 = vxpose.xlu0.b32.cont [2/16] %v2446, 128
  %2529 = vxpose.xlu0.b32.cont [3/16] 0.0, 128
  %2530 = vxpose.xlu0.b32.cont [4/16] 0.0, 128
  %2531 = vxpose.xlu0.b32.cont [5/16] 0.0, 128
  %2532 = vxpose.xlu0.b32.cont [6/16] 0.0, 128
  %2533 = vxpose.xlu0.b32.cont [7/16] 0.0, 128
  %2534 = vxpose.xlu0.b32.cont [8/16] 0.0, 128
  %2535 = vxpose.xlu0.b32.cont [9/16] 0.0, 128
  %2536 = vxpose.xlu0.b32.cont [10/16] 0.0, 128
  %2537 = vxpose.xlu0.b32.cont [11/16] 0.0, 128
  %2538 = vxpose.xlu0.b32.cont [12/16] 0.0, 128
  %2539 = vxpose.xlu0.b32.cont [13/16] 0.0, 128
  %2540 = vxpose.xlu0.b32.cont [14/16] 0.0, 128
  %2541 = vxpose.xlu0.b32.cont [15/16] 0.0, 128
  %2542 = vxpose.xlu0.b32.end [16/16] 0.0, 128
  %v2543 = vpop.trf.xlu0
  %v2544 = vpop.trf.xlu0
  %v2545 = vpop.trf.xlu0
  %v2546 = vpop.trf.xlu0
  %v2547 = vpop.trf.xlu0
  %v2548 = vpop.trf.xlu0
  %v2549 = vpop.trf.xlu0
  %v2550 = vpop.trf.xlu0
  %v2551 = vpop.trf.xlu0
  %v2552 = vpop.trf.xlu0
  %v2553 = vpop.trf.xlu0
  %v2554 = vpop.trf.xlu0
  %v2555 = vpop.trf.xlu0
  %v2556 = vpop.trf.xlu0
  %v2557 = vpop.trf.xlu0
  %v2558 = vpop.trf.xlu0
  %v2559 = vlaneseq
  %v2560 = vshrl.u32 %v2559, 7
  %v2561 = vsub.s32 0, %v2560
  %v2562 = vrot.slane %v2543, %v2561
  %vm2563 = vcmp.gt.f32.partialorder %v2562, %v2443
  %vm2564 = vcmp.gt.f32.partialorder %v2562, %v2446
  %vm2565 = vcmp.eq.f32.partialorder %v2562, %v2443
  %vm2566 = vcmp.eq.f32.partialorder %v2562, %v2446
  %vm2567 = vmand %vm2565, %vm75
  %vm2568 = vmand %vm2566, %vm76
  %vm2569 = vmor %vm2563, %vm2567
  %vm2570 = vmor %vm2564, %vm2568
  %v2571 = vmul.f32 %v187, %v1764
  %v2572 = vmul.f32 %v192, %v1764
  %v2573 = vsel %vm2569, 1, 0
  %v2574 = vsel %vm2570, 1, 0
  %v2575 = vcvt.s32.f32 %v2573
  %v2576 = vcvt.s32.f32 %v2574
  %v2577 = vmul.f32 %v2571, %v2575
  %v2578 = vmul.f32 %v2572, %v2576
  %v2579 = vsel %vm408, %v2577, 0.0
  %2580 = vadd.xlane.f32.xlu0 %v2579
  %v2581 = vpop.xlane.xlu0 %2580
  %v2582 = vsel %vm408, %v2578, 0.0
  %2583 = vadd.xlane.f32.xlu0 %v2582
  %v2584 = vpop.xlane.xlu0 %2583
  %vm2585 = vcmp.lt.f32.partialorder %v2581, %v2519
  %vm2586 = vcmp.lt.f32.partialorder %v2584, %v2524
  %v2587 = vsel %vm2585, 1, 0
  %v2588 = vsel %vm2586, 1, 0
  %v2589 = vcvt.s32.f32 %v2587
  %v2590 = vcvt.s32.f32 %v2588
  %v2591 = vmul.f32 %v1709, %v2589
  %v2592 = vmul.f32 %v1710, %v2590
  %v2593 = vtanh.pop %v2443
  %v2594 = vtanh.pop %v2446
  %v2595 = vmul.f32 %v2430, %v2593
  %v2596 = vmul.f32 %v2431, %v2594
  %2598 = vset.pattern.permute.xlu0 0
  %2599 = vperm.xlu0 %2598, %v2591
  %v2600 = vpop.permute.xlu0 %2599
  %2603 = vset.pattern.permute.xlu0 0
  %2604 = vperm.xlu0 %2603, %v2592
  %v2605 = vpop.permute.xlu0 %2604
  %v2607 = vmul.f32 %v2595, %v2600
  %v2608 = vmul.f32 %v2596, %v2605
  %2609 = vmatprep.subr.mxu0 0.0
  %2610 = vmatpush1.msra.mxu0 0.0
  %2611 = vmatprep.subr.mxu0 0.0
  %2612 = vmatpush1.msra.mxu0 0.0
  %2613 = vmatprep.subr.mxu0 0.0
  %2614 = vmatpush1.msra.mxu0 0.0
  %2615 = vmatprep.subr.mxu0 0.0
  %2616 = vmatpush1.msra.mxu0 0.0
  %2617 = vmatprep.subr.mxu0 0.0
  %2618 = vmatpush1.msra.mxu0 0.0
  %2619 = vmatprep.subr.mxu0 0.0
  %2620 = vmatpush1.msra.mxu0 0.0
  %2621 = vmatprep.subr.mxu0 0.0
  %2622 = vmatpush1.msra.mxu0 0.0
  %2623 = vmatprep.subr.mxu0 0.0
  %2624 = vmatpush1.msra.mxu0 0.0
  %2625 = vmatprep.subr.mxu0 0.0
  %2626 = vmatpush1.msra.mxu0 0.0
  %2627 = vmatprep.subr.mxu0 0.0
  %2628 = vmatpush1.msra.mxu0 0.0
  %2629 = vmatprep.subr.mxu0 0.0
  %2630 = vmatpush1.msra.mxu0 0.0
  %2631 = vmatprep.subr.mxu0 0.0
  %2632 = vmatpush1.msra.mxu0 0.0
  %2633 = vmatprep.subr.mxu0 0.0
  %2634 = vmatpush1.msra.mxu0 0.0
  %2635 = vmatprep.subr.mxu0 0.0
  %2636 = vmatpush1.msra.mxu0 0.0
  %2637 = vmatprep.subr.mxu0 0.0
  %2638 = vmatpush1.msra.mxu0 %v2592
  %2639 = vmatprep.subr.mxu0 0.0
  %2640 = vmatpush1.msra.mxu0 %v2591
  %2641 = vmatprep.subr.mxu0 0.0
  %2642 = vmatpush2.msra.mxu0 0.0
  %2643 = vmatprep.subr.mxu0 0.0
  %2644 = vmatpush2.msra.mxu0 0.0
  %2645 = vmatprep.subr.mxu0 0.0
  %2646 = vmatpush2.msra.mxu0 0.0
  %2647 = vmatprep.subr.mxu0 0.0
  %2648 = vmatpush2.msra.mxu0 0.0
  %2649 = vmatprep.subr.mxu0 0.0
  %2650 = vmatpush2.msra.mxu0 0.0
  %2651 = vmatprep.subr.mxu0 0.0
  %2652 = vmatpush2.msra.mxu0 0.0
  %2653 = vmatprep.subr.mxu0 0.0
  %2654 = vmatpush2.msra.mxu0 0.0
  %2655 = vmatprep.subr.mxu0 0.0
  %2656 = vmatpush2.msra.mxu0 0.0
  %2657 = vmatprep.subr.mxu0 0.0
  %2658 = vmatpush2.msra.mxu0 0.0
  %2659 = vmatprep.subr.mxu0 0.0
  %2660 = vmatpush2.msra.mxu0 0.0
  %2661 = vmatprep.subr.mxu0 0.0
  %2662 = vmatpush2.msra.mxu0 0.0
  %2663 = vmatprep.subr.mxu0 0.0
  %2664 = vmatpush2.msra.mxu0 0.0
  %2665 = vmatprep.subr.mxu0 0.0
  %2666 = vmatpush2.msra.mxu0 0.0
  %2667 = vmatprep.subr.mxu0 0.0
  %2668 = vmatpush2.msra.mxu0 0.0
  %2669 = vmatprep.subr.mxu0 0.0
  %2670 = vmatpush2.msra.mxu0 0.0
  %2671 = vmatprep.subr.mxu0 0.0
  %2672 = vmatpush2.msra.mxu0 0.0
  %2673 = vmatprep.mubr.f32.mxu0 0.0
  %2674 = vmatmul.mubr.f32.gmra.mxu0 %v574
  %v2675 = vpop.f32.mrf.mxu0
  %v2676 = vadd.f32 0.0, %v2675
  %v2677 = vpop.f32.mrf.mxu0
  %2678 = vdwg.mxu0
  %2679 = vmatprep.subr.mxu0 0.0
  %2680 = vmatpush1.msra.mxu0 0.0
  %2681 = vmatprep.subr.mxu0 0.0
  %2682 = vmatpush1.msra.mxu0 0.0
  %2683 = vmatprep.subr.mxu0 0.0
  %2684 = vmatpush1.msra.mxu0 0.0
  %2685 = vmatprep.subr.mxu0 0.0
  %2686 = vmatpush1.msra.mxu0 0.0
  %2687 = vmatprep.subr.mxu0 0.0
  %2688 = vmatpush1.msra.mxu0 0.0
  %2689 = vmatprep.subr.mxu0 0.0
  %2690 = vmatpush1.msra.mxu0 0.0
  %2691 = vmatprep.subr.mxu0 0.0
  %2692 = vmatpush1.msra.mxu0 0.0
  %2693 = vmatprep.subr.mxu0 0.0
  %2694 = vmatpush1.msra.mxu0 0.0
  %2695 = vmatprep.subr.mxu0 0.0
  %2696 = vmatpush1.msra.mxu0 0.0
  %2697 = vmatprep.subr.mxu0 0.0
  %2698 = vmatpush1.msra.mxu0 0.0
  %2699 = vmatprep.subr.mxu0 0.0
  %2700 = vmatpush1.msra.mxu0 0.0
  %2701 = vmatprep.subr.mxu0 0.0
  %2702 = vmatpush1.msra.mxu0 0.0
  %2703 = vmatprep.subr.mxu0 0.0
  %2704 = vmatpush1.msra.mxu0 0.0
  %2705 = vmatprep.subr.mxu0 0.0
  %2706 = vmatpush1.msra.mxu0 0.0
  %2707 = vmatprep.subr.mxu0 0.0
  %2708 = vmatpush1.msra.mxu0 %v2608
  %2709 = vmatprep.subr.mxu0 0.0
  %2710 = vmatpush1.msra.mxu0 %v2607
  %2711 = vmatprep.subr.mxu0 0.0
  %2712 = vmatpush2.msra.mxu0 0.0
  %2713 = vmatprep.subr.mxu0 0.0
  %2714 = vmatpush2.msra.mxu0 0.0
  %2715 = vmatprep.subr.mxu0 0.0
  %2716 = vmatpush2.msra.mxu0 0.0
  %2717 = vmatprep.subr.mxu0 0.0
  %2718 = vmatpush2.msra.mxu0 0.0
  %2719 = vmatprep.subr.mxu0 0.0
  %2720 = vmatpush2.msra.mxu0 0.0
  %2721 = vmatprep.subr.mxu0 0.0
  %2722 = vmatpush2.msra.mxu0 0.0
  %2723 = vmatprep.subr.mxu0 0.0
  %2724 = vmatpush2.msra.mxu0 0.0
  %2725 = vmatprep.subr.mxu0 0.0
  %2726 = vmatpush2.msra.mxu0 0.0
  %2727 = vmatprep.subr.mxu0 0.0
  %2728 = vmatpush2.msra.mxu0 0.0
  %2729 = vmatprep.subr.mxu0 0.0
  %2730 = vmatpush2.msra.mxu0 0.0
  %2731 = vmatprep.subr.mxu0 0.0
  %2732 = vmatpush2.msra.mxu0 0.0
  %2733 = vmatprep.subr.mxu0 0.0
  %2734 = vmatpush2.msra.mxu0 0.0
  %2735 = vmatprep.subr.mxu0 0.0
  %2736 = vmatpush2.msra.mxu0 0.0
  %2737 = vmatprep.subr.mxu0 0.0
  %2738 = vmatpush2.msra.mxu0 0.0
  %2739 = vmatprep.subr.mxu0 0.0
  %2740 = vmatpush2.msra.mxu0 0.0
  %2741 = vmatprep.subr.mxu0 0.0
  %2742 = vmatpush2.msra.mxu0 0.0
  %2743 = vmatprep.mubr.f32.mxu0 0.0
  %2744 = vmatmul.mubr.f32.gmra.mxu0 %v574
  %v2745 = vpop.f32.mrf.mxu0
  %v2746 = vadd.f32 0.0, %v2745
  %v2747 = vpop.f32.mrf.mxu0
  %2748 = vdwg.mxu0
  %v2749 = vmax.f32 %v2676, 1.0
  %v2750 = vrcp.pop %v2749
  %2752 = vset.pattern.permute.xlu0 0
  %2753 = vperm.xlu0 %2752, %v2750
  %v2754 = vpop.permute.xlu0 %2753
  %v2756 = vmul.f32 %v2746, %v2754
  %v2757 = vmul.f32 %v2600, %v66
  %v2758 = vmul.f32 %v2605, %v67
  %2759 = vxpose.xlu0.b32.start [1/16] %v2757, 128
  %2760 = vxpose.xlu0.b32.cont [2/16] %v2758, 128
  %2761 = vxpose.xlu0.b32.cont [3/16] 0.0, 128
  %2762 = vxpose.xlu0.b32.cont [4/16] 0.0, 128
  %2763 = vxpose.xlu0.b32.cont [5/16] 0.0, 128
  %2764 = vxpose.xlu0.b32.cont [6/16] 0.0, 128
  %2765 = vxpose.xlu0.b32.cont [7/16] 0.0, 128
  %2766 = vxpose.xlu0.b32.cont [8/16] 0.0, 128
  %2767 = vxpose.xlu0.b32.cont [9/16] 0.0, 128
  %2768 = vxpose.xlu0.b32.cont [10/16] 0.0, 128
  %2769 = vxpose.xlu0.b32.cont [11/16] 0.0, 128
  %2770 = vxpose.xlu0.b32.cont [12/16] 0.0, 128
  %2771 = vxpose.xlu0.b32.cont [13/16] 0.0, 128
  %2772 = vxpose.xlu0.b32.cont [14/16] 0.0, 128
  %2773 = vxpose.xlu0.b32.cont [15/16] 0.0, 128
  %2774 = vxpose.xlu0.b32.end [16/16] 0.0, 128
  %v2775 = vpop.trf.xlu0
  %v2776 = vpop.trf.xlu0
  %v2777 = vpop.trf.xlu0
  %v2778 = vpop.trf.xlu0
  %v2779 = vpop.trf.xlu0
  %v2780 = vpop.trf.xlu0
  %v2781 = vpop.trf.xlu0
  %v2782 = vpop.trf.xlu0
  %v2783 = vpop.trf.xlu0
  %v2784 = vpop.trf.xlu0
  %v2785 = vpop.trf.xlu0
  %v2786 = vpop.trf.xlu0
  %v2787 = vpop.trf.xlu0
  %v2788 = vpop.trf.xlu0
  %v2789 = vpop.trf.xlu0
  %v2790 = vpop.trf.xlu0
  %v2793 = vunpack.c.l.s4 1966171168
  %v2794 = vunpack.c.0.s8 %v2793
  %v2795 = vlaneseq
  %v2796 = vshrl.u32 %v2795, 7
  %v2797 = vsub.s32 %v2794, %v2796
  %v2798 = vrot.slane %v2775, %v2797
  %v2799 = vcombine.high %v2798, %v2798
  %v2801 = vunpack.c.l.s4 1966171168
  %v2802 = vunpack.c.0.s8 %v2801
  %v2803 = vlaneseq
  %v2804 = vshrl.u32 %v2803, 7
  %v2805 = vsub.s32 %v2802, %v2804
  %v2806 = vrot.slane %v2798, %v2805
  %v2808 = vunpack.c.l.s4 1966171168
  %v2809 = vunpack.c.0.s8 %v2808
  %v2810 = vlaneseq
  %v2811 = vshrl.u32 %v2810, 7
  %v2812 = vsub.s32 %v2809, %v2811
  %v2813 = vrot.slane %v2799, %v2812
  %vm2816 = vcmp.gt.f32.partialorder %v2806, 0.0
  %vm2817 = vcmp.gt.f32.partialorder %v2813, 0.0
  %2818 = vxpose.xlu0.b32.start [1/16] %v2607, 128
  %2819 = vxpose.xlu0.b32.cont [2/16] %v2608, 128
  %2820 = vxpose.xlu0.b32.cont [3/16] 0.0, 128
  %2821 = vxpose.xlu0.b32.cont [4/16] 0.0, 128
  %2822 = vxpose.xlu0.b32.cont [5/16] 0.0, 128
  %2823 = vxpose.xlu0.b32.cont [6/16] 0.0, 128
  %2824 = vxpose.xlu0.b32.cont [7/16] 0.0, 128
  %2825 = vxpose.xlu0.b32.cont [8/16] 0.0, 128
  %2826 = vxpose.xlu0.b32.cont [9/16] 0.0, 128
  %2827 = vxpose.xlu0.b32.cont [10/16] 0.0, 128
  %2828 = vxpose.xlu0.b32.cont [11/16] 0.0, 128
  %2829 = vxpose.xlu0.b32.cont [12/16] 0.0, 128
  %2830 = vxpose.xlu0.b32.cont [13/16] 0.0, 128
  %2831 = vxpose.xlu0.b32.cont [14/16] 0.0, 128
  %2832 = vxpose.xlu0.b32.cont [15/16] 0.0, 128
  %2833 = vxpose.xlu0.b32.end [16/16] 0.0, 128
  %v2834 = vpop.trf.xlu0
  %v2835 = vpop.trf.xlu0
  %v2836 = vpop.trf.xlu0
  %v2837 = vpop.trf.xlu0
  %v2838 = vpop.trf.xlu0
  %v2839 = vpop.trf.xlu0
  %v2840 = vpop.trf.xlu0
  %v2841 = vpop.trf.xlu0
  %v2842 = vpop.trf.xlu0
  %v2843 = vpop.trf.xlu0
  %v2844 = vpop.trf.xlu0
  %v2845 = vpop.trf.xlu0
  %v2846 = vpop.trf.xlu0
  %v2847 = vpop.trf.xlu0
  %v2848 = vpop.trf.xlu0
  %v2849 = vpop.trf.xlu0
  %v2850 = vsel %vm2816, 1, 0
  %v2851 = vsel %vm2817, 1, 0
  %v2852 = vlaneseq
  %v2853 = vshrl.u32 %v2852, 7
  %v2854 = vsub.s32 0, %v2853
  %v2855 = vrot.slane %v2850, %v2854
  %v2856 = vlaneseq
  %v2857 = vshrl.u32 %v2856, 7
  %v2858 = vsub.s32 0, %v2857
  %v2859 = vrot.slane %v2851, %v2858
  %vm2860 = vcmp.eq.s32.totalorder %v2855, 1
  %vm2861 = vcmp.eq.s32.totalorder %v2859, 1
  %v2862 = vsel %vm2860, %v2834, -1e+30
  %v2863 = vsel %vm2860, %v2835, -1e+30
  %v2864 = vsel %vm2861, %v2834, -1e+30
  %v2865 = vsel %vm2861, %v2835, -1e+30
  %v2866 = vsel %vm408, %v2862, -inf
  %2867 = vmax.xlane.f32.xlu0 %v2866
  %v2868 = vpop.xlane.xlu0 %2867
  %v2869 = vsel %vm408, %v2863, -inf
  %2870 = vmax.xlane.f32.xlu0 %v2869
  %v2871 = vpop.xlane.xlu0 %2870
  %v2872 = vsel %vm408, %v2864, -inf
  %2873 = vmax.xlane.f32.xlu0 %v2872
  %v2874 = vpop.xlane.xlu0 %2873
  %v2875 = vsel %vm408, %v2865, -inf
  %2876 = vmax.xlane.f32.xlu0 %v2875
  %v2877 = vpop.xlane.xlu0 %2876
  %vm2878 = vcmp.gt.f32.partialorder %v2676, 0.0
  %v2879 = vsel %vm2878, 1, 0
  %2880 = vset.pattern.permute.xlu0 0
  %2881 = vperm.xlu0 %2880, %v2879
  %v2882 = vpop.permute.xlu0 %2881
  %vm2883 = vcmp.eq.s32.totalorder %v2882, 1
  %v2888 = vlaneseq
  %v2889 = vshrl.u32 %v2888, 7
  %v2890 = vsub.s32 %v72, %v2889
  %v2891 = vrot.slane %v2868, %v2890
  %v2892 = vlaneseq
  %v2893 = vshrl.u32 %v2892, 7
  %v2894 = vsub.s32 %v1165, %v2893
  %v2895 = vrot.slane %v2871, %v2894
  %v2896 = vsel %vm1170, %v2895, %v2891
  %v2897 = vlaneseq
  %v2898 = vshrl.u32 %v2897, 7
  %v2899 = vsub.s32 %v72, %v2898
  %v2900 = vrot.slane %v2874, %v2899
  %v2901 = vlaneseq
  %v2902 = vshrl.u32 %v2901, 7
  %v2903 = vsub.s32 %v1165, %v2902
  %v2904 = vrot.slane %v2877, %v2903
  %v2905 = vsel %vm1170, %v2904, %v2900
  %v2906 = vsel %vm1181, %v2905, %v2896
  %v2908 = vsel %vm2883, %v2906, 0.0
  %2910 = vrot.lane.b32.xlu0 %v2908, 16
  %v2911 = vpop.permute.xlu0 %2910
  %v2913 = vsel %vm408, %v2756, %v2911
  %v2914 = vadd.f32 %v2072, %v2913
  %v2915 = vld [vmem:[%s12] sm:$0xff]
  %v2916 = vld [vmem:[%s12 + $0x8] sm:$0xff]
  %v2917 = vld [vmem:[%s12 + $0x10] sm:$0xff]
  %v2918 = vld [vmem:[%s12 + $0x18] sm:$0xff]
  %v2919 = vpack.c.bf16 %v2914, %v2914
  %v2920 = vpack.c.bf16 %v2916, %v2915
  %v2921 = vpack.c.bf16 %v2918, %v2917
  %v2922 = vld [vmem:[%s13] sm:$0x1]
  %v2924 = vlaneseq
  %v2925 = vshrl.u32 %v2924, 7
  %v2926 = vsub.s32 0, %v2925
  %v2927 = vrot.slane %v2922, %v2926
  %vm2929 = vcmask 261120
  %v2931 = vsel %vm2929, %v2919, 0
  %2933 = vmatprep.subr.bf16.mxu0 0
  %2934 = vmatpush1.bf16.msra.mxu0 0
  %2935 = vmatprep.subr.bf16.mxu0 0
  %2936 = vmatpush1.bf16.msra.mxu0 0
  %2937 = vmatprep.subr.bf16.mxu0 0
  %2938 = vmatpush1.bf16.msra.mxu0 0
  %2939 = vmatprep.subr.bf16.mxu0 0
  %2940 = vmatpush1.bf16.msra.mxu0 0
  %2941 = vmatprep.subr.bf16.mxu0 0
  %2942 = vmatpush1.bf16.msra.mxu0 0
  %2943 = vmatprep.subr.bf16.mxu0 0
  %2944 = vmatpush1.bf16.msra.mxu0 0
  %2945 = vmatprep.subr.bf16.mxu0 0
  %2946 = vmatpush1.bf16.msra.mxu0 %v2921
  %2947 = vmatprep.subr.bf16.mxu0 0
  %2948 = vmatpush1.bf16.msra.mxu0 %v2920
  %2949 = vmatprep.subr.bf16.mxu0 0
  %2950 = vmatpush2.bf16.msra.mxu0 0
  %2951 = vmatprep.subr.bf16.mxu0 0
  %2952 = vmatpush2.bf16.msra.mxu0 0
  %2953 = vmatprep.subr.bf16.mxu0 0
  %2954 = vmatpush2.bf16.msra.mxu0 0
  %2955 = vmatprep.subr.bf16.mxu0 0
  %2956 = vmatpush2.bf16.msra.mxu0 0
  %2957 = vmatprep.subr.bf16.mxu0 0
  %2958 = vmatpush2.bf16.msra.mxu0 0
  %2959 = vmatprep.subr.bf16.mxu0 0
  %2960 = vmatpush2.bf16.msra.mxu0 0
  %2961 = vmatprep.subr.bf16.mxu0 0
  %2962 = vmatpush2.bf16.msra.mxu0 0
  %2963 = vmatprep.subr.bf16.mxu0 0
  %2964 = vmatpush2.bf16.msra.mxu0 0
  %2965 = vmatprep.mubr.bf16.mxu0 0
  %2966 = vmatmul.mubr.bf16.gmra.mxu0 %v2931
  %v2967 = vpop.f32.mrf.mxu0
  %v2968 = vadd.f32 %v2927, %v2967
  %v2969 = vpop.f32.mrf.mxu0
  %v2970 = vpop.f32.mrf.mxu0
  %v2971 = vpop.f32.mrf.mxu0
  %2972 = vdwg.mxu0
  %v2973 = vmax.f32 %v2968, 0.0
  %v2974 = vld [vmem:[%s14] sm:$0xff]
  %v2975 = vld [vmem:[%s14 + $0x8] sm:$0xff]
  %v2976 = vld [vmem:[%s14 + $0x10] sm:$0xff]
  %v2977 = vld [vmem:[%s14 + $0x18] sm:$0xff]
  %v2978 = vpack.c.bf16 %v2973, %v2973
  %v2979 = vpack.c.bf16 %v2975, %v2974
  %v2980 = vpack.c.bf16 %v2977, %v2976
  %v2981 = vld [vmem:[%s15] sm:$0x1]
  %v2983 = vlaneseq
  %v2984 = vshrl.u32 %v2983, 7
  %v2985 = vsub.s32 0, %v2984
  %v2986 = vrot.slane %v2981, %v2985
  %v2989 = vsel %vm2929, %v2978, 0
  %2991 = vmatprep.subr.bf16.mxu0 0
  %2992 = vmatpush1.bf16.msra.mxu0 0
  %2993 = vmatprep.subr.bf16.mxu0 0
  %2994 = vmatpush1.bf16.msra.mxu0 0
  %2995 = vmatprep.subr.bf16.mxu0 0
  %2996 = vmatpush1.bf16.msra.mxu0 0
  %2997 = vmatprep.subr.bf16.mxu0 0
  %2998 = vmatpush1.bf16.msra.mxu0 0
  %2999 = vmatprep.subr.bf16.mxu0 0
  %3000 = vmatpush1.bf16.msra.mxu0 0
  %3001 = vmatprep.subr.bf16.mxu0 0
  %3002 = vmatpush1.bf16.msra.mxu0 0
  %3003 = vmatprep.subr.bf16.mxu0 0
  %3004 = vmatpush1.bf16.msra.mxu0 %v2980
  %3005 = vmatprep.subr.bf16.mxu0 0
  %3006 = vmatpush1.bf16.msra.mxu0 %v2979
  %3007 = vmatprep.subr.bf16.mxu0 0
  %3008 = vmatpush2.bf16.msra.mxu0 0
  %3009 = vmatprep.subr.bf16.mxu0 0
  %3010 = vmatpush2.bf16.msra.mxu0 0
  %3011 = vmatprep.subr.bf16.mxu0 0
  %3012 = vmatpush2.bf16.msra.mxu0 0
  %3013 = vmatprep.subr.bf16.mxu0 0
  %3014 = vmatpush2.bf16.msra.mxu0 0
  %3015 = vmatprep.subr.bf16.mxu0 0
  %3016 = vmatpush2.bf16.msra.mxu0 0
  %3017 = vmatprep.subr.bf16.mxu0 0
  %3018 = vmatpush2.bf16.msra.mxu0 0
  %3019 = vmatprep.subr.bf16.mxu0 0
  %3020 = vmatpush2.bf16.msra.mxu0 0
  %3021 = vmatprep.subr.bf16.mxu0 0
  %3022 = vmatpush2.bf16.msra.mxu0 0
  %3023 = vmatprep.mubr.bf16.mxu0 0
  %3024 = vmatmul.mubr.bf16.gmra.mxu0 %v2989
  %v3025 = vpop.f32.mrf.mxu0
  %v3026 = vadd.f32 %v2986, %v3025
  %v3027 = vpop.f32.mrf.mxu0
  %v3028 = vpop.f32.mrf.mxu0
  %v3029 = vpop.f32.mrf.mxu0
  %3030 = vdwg.mxu0
  %v3031 = vmax.f32 %v3026, 0.0
  %v3032 = vld [vmem:[%s16] sm:$0xff]
  %v3033 = vld [vmem:[%s16 + $0x8] sm:$0xff]
  %v3034 = vpack.c.bf16 %v3031, %v3031
  %v3035 = vpack.c.bf16 %v3033, %v3032
  %v3036 = vld [vmem:[#allocation2] sm:$0x1]
  %v3038 = vlaneseq
  %v3039 = vshrl.u32 %v3038, 7
  %v3040 = vsub.s32 0, %v3039
  %v3041 = vrot.slane %v3036, %v3040
  %v3044 = vsel %vm408, %v3034, 0
  %3046 = vmatprep.subr.bf16.mxu0 0
  %3047 = vmatpush1.bf16.msra.mxu0 0
  %3048 = vmatprep.subr.bf16.mxu0 0
  %3049 = vmatpush1.bf16.msra.mxu0 0
  %3050 = vmatprep.subr.bf16.mxu0 0
  %3051 = vmatpush1.bf16.msra.mxu0 0
  %3052 = vmatprep.subr.bf16.mxu0 0
  %3053 = vmatpush1.bf16.msra.mxu0 0
  %3054 = vmatprep.subr.bf16.mxu0 0
  %3055 = vmatpush1.bf16.msra.mxu0 0
  %3056 = vmatprep.subr.bf16.mxu0 0
  %3057 = vmatpush1.bf16.msra.mxu0 0
  %3058 = vmatprep.subr.bf16.mxu0 0
  %3059 = vmatpush1.bf16.msra.mxu0 0
  %3060 = vmatprep.subr.bf16.mxu0 0
  %3061 = vmatpush1.bf16.msra.mxu0 %v3035
  %3062 = vmatprep.subr.bf16.mxu0 0
  %3063 = vmatpush2.bf16.msra.mxu0 0
  %3064 = vmatprep.subr.bf16.mxu0 0
  %3065 = vmatpush2.bf16.msra.mxu0 0
  %3066 = vmatprep.subr.bf16.mxu0 0
  %3067 = vmatpush2.bf16.msra.mxu0 0
  %3068 = vmatprep.subr.bf16.mxu0 0
  %3069 = vmatpush2.bf16.msra.mxu0 0
  %3070 = vmatprep.subr.bf16.mxu0 0
  %3071 = vmatpush2.bf16.msra.mxu0 0
  %3072 = vmatprep.subr.bf16.mxu0 0
  %3073 = vmatpush2.bf16.msra.mxu0 0
  %3074 = vmatprep.subr.bf16.mxu0 0
  %3075 = vmatpush2.bf16.msra.mxu0 0
  %3076 = vmatprep.subr.bf16.mxu0 0
  %3077 = vmatpush2.bf16.msra.mxu0 0
  %3078 = vmatprep.mubr.bf16.mxu0 0
  %3079 = vmatmul.mubr.bf16.gmra.mxu0 %v3044
  %v3080 = vpop.f32.mrf.mxu0
  %v3081 = vadd.f32 %v3041, %v3080
  %v3082 = vpop.f32.mrf.mxu0
  %v3083 = vpop.f32.mrf.mxu0
  %v3084 = vpop.f32.mrf.mxu0
  %3085 = vdwg.mxu0
  %vm3086 = vcmask 1024
  %3087 = vst.msk [vmem:[%s18] sm:$0x3] %vm3086, %v3081
  // Predicated region
  $region74: #{gnn_forward.1} parent=0 // pred_check
    _
  $region75: #{gnn_forward.1} parent=0 // pred_check_branch
    %3089 = sbr.rel (0) target = $region77
  $region76: #{gnn_forward.1} parent=0 // pred_region
    _
  $region77: #{gnn_forward.1} parent=0 // pred_fallthru
    _
  // Predicated region
  $region78: #{gnn_forward.1} parent=0 // pred_check
    _
  $region79: #{gnn_forward.1} parent=0 // pred_check_branch
    %3091 = sbr.rel (0) target = $region81
  $region80: #{gnn_forward.1} parent=0 // pred_region
    _
  $region81: #{gnn_forward.1} parent=0 // pred_fallthru
    _

</llo_original>
